<compile_context>
chip_gen: v6e
topology: v6e:2x2x1
jax: 0.10.0
libtpu: 0.0.40
codegen_flags: <defaults>
</compile_context>

<pallas_src>
import functools

import jax
import jax.numpy as jnp
from jax import lax
from jax.experimental import pallas as pl
from jax.experimental.pallas import tpu as pltpu


# ---------------------------------------------------------------------------
# Host-side weight prep: fold Conv(1x1, bias=False) + BatchNorm(eval) into W, b
# (channels-first orientation: W (Cout, Cin), b (Cout, 1)).
# ---------------------------------------------------------------------------
def fold_conv_bn(w_conv, gamma, beta, running_mean, running_var, eps=1e-5):
    scale = gamma / jnp.sqrt(running_var + eps)            # (Cout,)
    w_eff = w_conv * scale[:, None]                        # (Cout, Cin)
    b_eff = (beta - running_mean * scale)[:, None]         # (Cout, 1)
    return w_eff.astype(jnp.float32), b_eff.astype(jnp.float32)


def relative_position_index(H, W, stride=1):
    """Reproduces the torch.meshgrid('ij') based relative position index."""
    qh = jnp.arange(0, H, step=stride)
    qw = jnp.arange(0, W, step=stride)
    kh = jnp.arange(0, H)
    kw = jnp.arange(0, W)
    q_coords = jnp.stack(jnp.meshgrid(qh, qw, indexing="ij")).reshape(2, -1)  # (2, Nq)
    k_coords = jnp.stack(jnp.meshgrid(kh, kw, indexing="ij")).reshape(2, -1)  # (2, Nk)
    rel = jnp.abs(q_coords[:, :, None] - k_coords[:, None, :])                # (2, Nq, Nk)
    rel = jnp.transpose(rel, (1, 2, 0))                                       # (Nq, Nk, 2)
    rel = rel.at[:, :, 0].multiply(W)
    return jnp.sum(rel, axis=-1)                                              # (Nq, Nk)


# ---------------------------------------------------------------------------
# Pallas kernel: one batch per grid step, channels-first (C on sublanes,
# spatial N on lanes).  Fused QKV projection, per-head attention, one K=128
# output-projection matmul, lane-dense (out_dim, N) store.
# ---------------------------------------------------------------------------
def _mhsa_kernel(x_ref, wqkv_ref, bqkv_ref, bias_ref, wp_ref, bp_ref, out_ref,
                 *, num_heads, dqk, dv):
    nq = num_heads * dqk

    x = x_ref[0]                                            # (C, N) bf16, N on lanes
    # Fused Q|K|V projection, channels-first: qkv[co, n] = sum_c w[co, c] x[c, n]
    qkv = jnp.dot(wqkv_ref[...], x,
                  preferred_element_type=jnp.float32) + bqkv_ref[...]   # (nq*2+nh*dv, N) f32

    head_outs = []
    for h in range(num_heads):                              # static unroll, num_heads small
        # Sublane-aligned row slices (offsets multiples of 8): no lane relayout.
        q = qkv[h * dqk:(h + 1) * dqk, :].astype(jnp.bfloat16)            # (dqk, N), scale pre-folded
        k = qkv[nq + h * dqk:nq + (h + 1) * dqk, :].astype(jnp.bfloat16)  # (dqk, N)
        v = qkv[2 * nq + h * dv:2 * nq + (h + 1) * dv, :].astype(jnp.bfloat16)  # (dv, N)

        # sim[qi, ki] = sum_d q[d, qi] * k[d, ki]   (TN dot; MXU, f32 accumulate)
        sim = lax.dot_general(q, k, (((0,), (0,)), ((), ())),
                              preferred_element_type=jnp.float32)         # (N, N)
        sim = sim + bias_ref[h].astype(jnp.float32)
        sim = sim - jnp.max(sim, axis=-1, keepdims=True)
        p = jnp.exp(sim)
        inv = pl.reciprocal(jnp.sum(p, axis=-1, keepdims=True), approx=True)  # EUP slot
        attn = (p * inv).astype(jnp.bfloat16)

        # o[d, qi] = sum_k v[d, k] * attn[qi, k]    (NT dot) -> (dv, N)
        o = lax.dot_general(v, attn, (((1,), (1,)), ((), ())),
                            preferred_element_type=jnp.float32)
        # Hardswish per head (elementwise == post-concat hardswish), f32 on the VPU.
        o = o * jnp.clip(o + 3.0, 0.0, 6.0) * (1.0 / 6.0)
        head_outs.append(o.astype(jnp.bfloat16))

    # Stack heads along sublanes -> (nh*dv, N) = (128, N); ONE K=128 projection
    # matmul instead of nh small matmuls + VPU adds.
    feat = jnp.concatenate(head_outs, axis=0)
    out = jnp.dot(wp_ref[...], feat,
                  preferred_element_type=jnp.float32) + bp_ref[...]       # (out_dim, N)
    out_ref[0] = out.astype(out_ref.dtype)                  # lane-dense store (N lanes)


def mhsa_pallas(x_nchw, wqkv, bqkv, attn_bias, wp, bp, *, num_heads, dqk, dv):
    """x_nchw: (B, C, H, W).  wqkv: (nh*(2*dqk+dv), C) with the attention scale
    already folded into the Q rows; bqkv: (same, 1); attn_bias: (nh, N, N);
    wp: (out_dim, nh*dv); bp: (out_dim, 1)."""
    B, C, H, W = x_nchw.shape
    N = H * W
    out_dim = wp.shape[0]

    # Channels-first per-batch slabs: pure contiguous reshape, NO HBM transpose.
    x_cn = x_nchw.reshape(B, C, N).astype(jnp.bfloat16)
    wqkv_b = wqkv.astype(jnp.bfloat16)
    wp_b = wp.astype(jnp.bfloat16)
    bias_b = attn_bias.astype(jnp.bfloat16)   # halve bias DMA; promoted to f32 in-kernel

    kernel = functools.partial(_mhsa_kernel, num_heads=num_heads, dqk=dqk, dv=dv)

    # TODO(synk): for much larger N, query-tile the per-head (N, N) f32 scores
    # (flash-style) and budget resident bytes (qkv slab + scores + double-buffered
    # x/out tiles + weights) against the 32 MiB default scoped VMEM limit
    # (64 MiB physical on v7x) or raise vmem_limit_bytes explicitly.
    # TODO(synk): on 2-TC v7x, verify the batch grid axis actually shards across
    # TensorCores (pltpu.CORE_PARALLEL / pl.core_map); "parallel" is only a hint.
    out = pl.pallas_call(
        kernel,
        out_shape=jax.ShapeDtypeStruct((B, out_dim, N), jnp.float32),
        grid_spec=pl.GridSpec(
            grid=(B,),
            in_specs=[
                pl.BlockSpec((1, C, N), lambda b: (b, 0, 0)),      # one batch per step
                pl.BlockSpec(wqkv_b.shape, lambda b: (0, 0)),      # resident weights
                pl.BlockSpec(bqkv.shape, lambda b: (0, 0)),
                pl.BlockSpec(bias_b.shape, lambda b: (0, 0, 0)),
                pl.BlockSpec(wp_b.shape, lambda b: (0, 0)),
                pl.BlockSpec(bp.shape, lambda b: (0, 0)),
            ],
            out_specs=pl.BlockSpec((1, out_dim, N), lambda b: (b, 0, 0)),
        ),
        compiler_params=pltpu.CompilerParams(dimension_semantics=("parallel",)),
    )(x_cn, wqkv_b, bqkv, bias_b, wp_b, bp)

    # (B, out_dim, N) -> NCHW with a pure reshape (no transpose).
    return out.reshape(B, out_dim, H, W)


# ---------------------------------------------------------------------------
# Pure-JAX f32 reference (same math as the PyTorch module, eval mode),
# fed the UNfused / UNscaled weights to also validate the scale/QKV folding.
# ---------------------------------------------------------------------------
def mhsa_ref(x_nchw, wq, bq, wk, bk, wv, bv, attn_bias, wp, bp,
             *, num_heads, dqk, dv, scale):
    B, C, H, W = x_nchw.shape
    N = H * W
    x = x_nchw.reshape(B, C, N)
    q = (jnp.einsum("oc,bcn->bon", wq, x) + bq[None]).reshape(B, num_heads, dqk, N)
    k = (jnp.einsum("oc,bcn->bon", wk, x) + bk[None]).reshape(B, num_heads, dqk, N)
    v = (jnp.einsum("oc,bcn->bon", wv, x) + bv[None]).reshape(B, num_heads, dv, N)
    sim = jnp.einsum("bhdq,bhdk->bhqk", q, k) * scale + attn_bias[None]
    sim = sim - jnp.max(sim, axis=-1, keepdims=True)
    p = jnp.exp(sim)
    attn = p / jnp.sum(p, axis=-1, keepdims=True)
    o = jnp.einsum("bhqk,bhdk->bhdq", attn, v)                 # (B, nh, dv, N)
    feat = o.reshape(B, num_heads * dv, N)
    feat = feat * jnp.clip(feat + 3.0, 0.0, 6.0) / 6.0
    out = jnp.einsum("od,bdn->bon", wp, feat) + bp[None]       # (B, out_dim, N)
    return out.reshape(B, -1, H, W)


# ---------------------------------------------------------------------------
if __name__ == "__main__":
    # Small shapes consistent with the module (q_subsampling=False path).
    B, C_in, H, W = 2, 32, 16, 16
    num_heads = 4
    dqk = 16
    dv = 2 * dqk               # key_value_dim_ratio = 2
    out_dim = 32
    N = H * W
    scale = dqk ** (-0.5)

    key = jax.random.PRNGKey(0)
    keys = jax.random.split(key, 8)

    def make_convnorm(k, cin, cout):
        k1, k2, k3, k4, k5 = jax.random.split(k, 5)
        w = jax.random.normal(k1, (cout, cin), jnp.float32) * 0.1
        gamma = 1.0 + 0.05 * jax.random.normal(k2, (cout,), jnp.float32)
        beta = 0.05 * jax.random.normal(k3, (cout,), jnp.float32)
        mean = 0.05 * jax.random.normal(k4, (cout,), jnp.float32)
        var = jnp.abs(jax.random.normal(k5, (cout,), jnp.float32)) * 0.1 + 0.9
        return fold_conv_bn(w, gamma, beta, mean, var)

    wq, bq = make_convnorm(keys[0], C_in, num_heads * dqk)
    wk, bk = make_convnorm(keys[1], C_in, num_heads * dqk)
    wv, bv = make_convnorm(keys[2], C_in, num_heads * dv)
    wp, bp = make_convnorm(keys[3], num_heads * dv, out_dim)

    # Fused QKV weight/bias for the kernel (rows: q | k | v), with the attention
    # scale folded into BOTH the Q weights and the Q bias (exact algebraically).
    wqkv = jnp.concatenate([wq * scale, wk, wv], axis=0)     # (nh*(2*dqk+dv), C) = (256, 32)
    bqkv = jnp.concatenate([bq * scale, bk, bv], axis=0)     # (256, 1)

    # Attention bias table (zeros nn.Parameter in PyTorch; random here to
    # exercise the add path); relative-position gather is done once on host.
    bias_table = 0.1 * jax.random.normal(keys[4], (num_heads, H * W), jnp.float32)
    rel_idx = relative_position_index(H, W, stride=1)                     # (N, N)
    attn_bias = bias_table[:, rel_idx.reshape(-1)].reshape(num_heads, N, N)

    x = jax.random.normal(keys[5], (B, C_in, H, W), jnp.float32)

    out = mhsa_pallas(x, wqkv, bqkv, attn_bias, wp, bp,
                      num_heads=num_heads, dqk=dqk, dv=dv)
    out = jax.block_until_ready(out)

    ref = mhsa_ref(x, wq, bq, wk, bk, wv, bv, attn_bias, wp, bp,
                   num_heads=num_heads, dqk=dqk, dv=dv, scale=scale)
    assert out.shape == (B, out_dim, H, W)
    # bf16 matmul operands / bf16 bias transport (f32 accumulation) + approx
    # reciprocal -> relaxed tolerance vs the pure-f32 reference.
    max_err = float(jnp.max(jnp.abs(out - ref)))
    assert jnp.allclose(out, ref, atol=3e-2, rtol=3e-2), \
        f"mismatch vs reference, max abs err = {max_err}"

    print("KERNEL_OK")
</pallas_src>

<mosaic_0001>
module attributes {stable_mosaic.version = 11 : i64} {
  func.func @_mhsa_kernel(%arg0: i32, %arg1: memref<1x32x256xbf16, #tpu.memory_space<vmem>>, %arg2: memref<256x32xbf16, #tpu.memory_space<vmem>>, %arg3: memref<256x1xf32, #tpu.memory_space<vmem>>, %arg4: memref<4x256x256xbf16, #tpu.memory_space<vmem>>, %arg5: memref<32x128xbf16, #tpu.memory_space<vmem>>, %arg6: memref<32x1xf32, #tpu.memory_space<vmem>>, %arg7: memref<1x32x256xf32, #tpu.memory_space<vmem>>) attributes {dimension_semantics = [#tpu.dimension_semantics<parallel>], iteration_bounds = array<i64: 2>, scalar_prefetch = 0 : i64, scratch_operands = 0 : i64, tpu.core_type = #tpu.core_type<tc>, window_params = [{transform_indices = @transform_0, window_bounds = array<i64: 1, 32, 256>}, {pipeline_mode = #tpu.pipeline_mode<synchronous>, transform_indices = @transform_1, window_bounds = array<i64: 256, 32>}, {pipeline_mode = #tpu.pipeline_mode<synchronous>, transform_indices = @transform_2, window_bounds = array<i64: 256, 1>}, {pipeline_mode = #tpu.pipeline_mode<synchronous>, transform_indices = @transform_3, window_bounds = array<i64: 4, 256, 256>}, {pipeline_mode = #tpu.pipeline_mode<synchronous>, transform_indices = @transform_4, window_bounds = array<i64: 32, 128>}, {pipeline_mode = #tpu.pipeline_mode<synchronous>, transform_indices = @transform_5, window_bounds = array<i64: 32, 1>}, {transform_indices = @transform_6, window_bounds = array<i64: 1, 32, 256>}]} {
    %c0 = arith.constant 0 : index
    %c0_0 = arith.constant 0 : index
    %c0_1 = arith.constant 0 : index
    %0 = vector.load %arg1[%c0, %c0_0, %c0_1] : memref<1x32x256xbf16, #tpu.memory_space<vmem>>, vector<1x32x256xbf16>
    %1 = vector.shape_cast %0 : vector<1x32x256xbf16> to vector<32x256xbf16>
    %c0_2 = arith.constant 0 : index
    %c0_3 = arith.constant 0 : index
    %2 = vector.load %arg2[%c0_2, %c0_3] : memref<256x32xbf16, #tpu.memory_space<vmem>>, vector<256x32xbf16>
    %cst = arith.constant dense<0.000000e+00> : vector<256x256xf32>
    %3 = tpu.matmul %2, %1, %cst {dimension_numbers = #tpu.dot_dimension_numbers<[1], [0], [0], [1], [0, 0, 1, 1], [], []>} : vector<256x32xbf16>, vector<32x256xbf16>, vector<256x256xf32> -> vector<256x256xf32>
    %c0_4 = arith.constant 0 : index
    %c0_5 = arith.constant 0 : index
    %4 = vector.load %arg3[%c0_4, %c0_5] : memref<256x1xf32, #tpu.memory_space<vmem>>, vector<256x1xf32>
    %5 = vector.broadcast %4 : vector<256x1xf32> to vector<256x256xf32>
    %6 = arith.addf %3, %5 : vector<256x256xf32>
    %7 = vector.extract_strided_slice %6 {offsets = [0, 0], sizes = [16, 256], strides = [1, 1]} : vector<256x256xf32> to vector<16x256xf32>
    %8 = arith.truncf %7 : vector<16x256xf32> to vector<16x256xbf16>
    %9 = vector.extract_strided_slice %6 {offsets = [64, 0], sizes = [16, 256], strides = [1, 1]} : vector<256x256xf32> to vector<16x256xf32>
    %10 = arith.truncf %9 : vector<16x256xf32> to vector<16x256xbf16>
    %11 = vector.extract_strided_slice %6 {offsets = [128, 0], sizes = [32, 256], strides = [1, 1]} : vector<256x256xf32> to vector<32x256xf32>
    %12 = arith.truncf %11 : vector<32x256xf32> to vector<32x256xbf16>
    %cst_6 = arith.constant dense<0.000000e+00> : vector<256x256xf32>
    %13 = tpu.matmul %8, %10, %cst_6 {dimension_numbers = #tpu.dot_dimension_numbers<[0], [0], [1], [1], [0, 1, 1, 1], [], []>} : vector<16x256xbf16>, vector<16x256xbf16>, vector<256x256xf32> -> vector<256x256xf32>
    %c0_7 = arith.constant 0 : index
    %c0_8 = arith.constant 0 : index
    %c0_9 = arith.constant 0 : index
    %14 = vector.load %arg4[%c0_7, %c0_8, %c0_9] : memref<4x256x256xbf16, #tpu.memory_space<vmem>>, vector<1x256x256xbf16>
    %15 = vector.shape_cast %14 : vector<1x256x256xbf16> to vector<256x256xbf16>
    %16 = arith.extf %15 : vector<256x256xbf16> to vector<256x256xf32>
    %17 = arith.addf %13, %16 : vector<256x256xf32>
    %cst_10 = arith.constant dense<0xFF800000> : vector<256xf32>
    %18 = vector.multi_reduction <maximumf>, %17, %cst_10 [1] : vector<256x256xf32> to vector<256xf32>
    %19 = vector.shape_cast %18 : vector<256xf32> to vector<256x1xf32>
    %20 = vector.broadcast %19 : vector<256x1xf32> to vector<256x256xf32>
    %21 = arith.subf %17, %20 : vector<256x256xf32>
    %22 = math.exp %21 : vector<256x256xf32>
    %cst_11 = arith.constant dense<0.000000e+00> : vector<256xf32>
    %23 = vector.multi_reduction <add>, %22, %cst_11 [1] : vector<256x256xf32> to vector<256xf32>
    %24 = vector.shape_cast %23 : vector<256xf32> to vector<256x1xf32>
    %25 = tpu.reciprocal %24 {approx = true} : vector<256x1xf32> -> vector<256x1xf32>
    %26 = vector.broadcast %25 : vector<256x1xf32> to vector<256x256xf32>
    %27 = arith.mulf %22, %26 : vector<256x256xf32>
    %28 = arith.truncf %27 : vector<256x256xf32> to vector<256x256xbf16>
    %cst_12 = arith.constant dense<0.000000e+00> : vector<32x256xf32>
    %29 = tpu.matmul %12, %28, %cst_12 {dimension_numbers = #tpu.dot_dimension_numbers<[1], [1], [0], [0], [0, 0, 1, 0], [], []>} : vector<32x256xbf16>, vector<256x256xbf16>, vector<32x256xf32> -> vector<32x256xf32>
    %cst_13 = arith.constant 3.000000e+00 : f32
    %30 = vector.broadcast %cst_13 : f32 to vector<32x256xf32>
    %31 = arith.addf %29, %30 : vector<32x256xf32>
    %cst_14 = arith.constant 0.000000e+00 : f32
    %cst_15 = arith.constant 6.000000e+00 : f32
    %32 = vector.broadcast %cst_14 : f32 to vector<32x256xf32>
    %33 = arith.maximumf %32, %31 : vector<32x256xf32>
    %34 = vector.broadcast %cst_15 : f32 to vector<32x256xf32>
    %35 = arith.minimumf %34, %33 : vector<32x256xf32>
    %36 = arith.mulf %29, %35 : vector<32x256xf32>
    %cst_16 = arith.constant 0.166666672 : f32
    %37 = vector.broadcast %cst_16 : f32 to vector<32x256xf32>
    %38 = arith.mulf %36, %37 : vector<32x256xf32>
    %39 = arith.truncf %38 : vector<32x256xf32> to vector<32x256xbf16>
    %40 = vector.extract_strided_slice %6 {offsets = [16, 0], sizes = [16, 256], strides = [1, 1]} : vector<256x256xf32> to vector<16x256xf32>
    %41 = arith.truncf %40 : vector<16x256xf32> to vector<16x256xbf16>
    %42 = vector.extract_strided_slice %6 {offsets = [80, 0], sizes = [16, 256], strides = [1, 1]} : vector<256x256xf32> to vector<16x256xf32>
    %43 = arith.truncf %42 : vector<16x256xf32> to vector<16x256xbf16>
    %44 = vector.extract_strided_slice %6 {offsets = [160, 0], sizes = [32, 256], strides = [1, 1]} : vector<256x256xf32> to vector<32x256xf32>
    %45 = arith.truncf %44 : vector<32x256xf32> to vector<32x256xbf16>
    %cst_17 = arith.constant dense<0.000000e+00> : vector<256x256xf32>
    %46 = tpu.matmul %41, %43, %cst_17 {dimension_numbers = #tpu.dot_dimension_numbers<[0], [0], [1], [1], [0, 1, 1, 1], [], []>} : vector<16x256xbf16>, vector<16x256xbf16>, vector<256x256xf32> -> vector<256x256xf32>
    %c1 = arith.constant 1 : index
    %c0_18 = arith.constant 0 : index
    %c0_19 = arith.constant 0 : index
    %47 = vector.load %arg4[%c1, %c0_18, %c0_19] : memref<4x256x256xbf16, #tpu.memory_space<vmem>>, vector<1x256x256xbf16>
    %48 = vector.shape_cast %47 : vector<1x256x256xbf16> to vector<256x256xbf16>
    %49 = arith.extf %48 : vector<256x256xbf16> to vector<256x256xf32>
    %50 = arith.addf %46, %49 : vector<256x256xf32>
    %cst_20 = arith.constant dense<0xFF800000> : vector<256xf32>
    %51 = vector.multi_reduction <maximumf>, %50, %cst_20 [1] : vector<256x256xf32> to vector<256xf32>
    %52 = vector.shape_cast %51 : vector<256xf32> to vector<256x1xf32>
    %53 = vector.broadcast %52 : vector<256x1xf32> to vector<256x256xf32>
    %54 = arith.subf %50, %53 : vector<256x256xf32>
    %55 = math.exp %54 : vector<256x256xf32>
    %cst_21 = arith.constant dense<0.000000e+00> : vector<256xf32>
    %56 = vector.multi_reduction <add>, %55, %cst_21 [1] : vector<256x256xf32> to vector<256xf32>
    %57 = vector.shape_cast %56 : vector<256xf32> to vector<256x1xf32>
    %58 = tpu.reciprocal %57 {approx = true} : vector<256x1xf32> -> vector<256x1xf32>
    %59 = vector.broadcast %58 : vector<256x1xf32> to vector<256x256xf32>
    %60 = arith.mulf %55, %59 : vector<256x256xf32>
    %61 = arith.truncf %60 : vector<256x256xf32> to vector<256x256xbf16>
    %cst_22 = arith.constant dense<0.000000e+00> : vector<32x256xf32>
    %62 = tpu.matmul %45, %61, %cst_22 {dimension_numbers = #tpu.dot_dimension_numbers<[1], [1], [0], [0], [0, 0, 1, 0], [], []>} : vector<32x256xbf16>, vector<256x256xbf16>, vector<32x256xf32> -> vector<32x256xf32>
    %cst_23 = arith.constant 3.000000e+00 : f32
    %63 = vector.broadcast %cst_23 : f32 to vector<32x256xf32>
    %64 = arith.addf %62, %63 : vector<32x256xf32>
    %cst_24 = arith.constant 0.000000e+00 : f32
    %cst_25 = arith.constant 6.000000e+00 : f32
    %65 = vector.broadcast %cst_24 : f32 to vector<32x256xf32>
    %66 = arith.maximumf %65, %64 : vector<32x256xf32>
    %67 = vector.broadcast %cst_25 : f32 to vector<32x256xf32>
    %68 = arith.minimumf %67, %66 : vector<32x256xf32>
    %69 = arith.mulf %62, %68 : vector<32x256xf32>
    %cst_26 = arith.constant 0.166666672 : f32
    %70 = vector.broadcast %cst_26 : f32 to vector<32x256xf32>
    %71 = arith.mulf %69, %70 : vector<32x256xf32>
    %72 = arith.truncf %71 : vector<32x256xf32> to vector<32x256xbf16>
    %73 = vector.extract_strided_slice %6 {offsets = [32, 0], sizes = [16, 256], strides = [1, 1]} : vector<256x256xf32> to vector<16x256xf32>
    %74 = arith.truncf %73 : vector<16x256xf32> to vector<16x256xbf16>
    %75 = vector.extract_strided_slice %6 {offsets = [96, 0], sizes = [16, 256], strides = [1, 1]} : vector<256x256xf32> to vector<16x256xf32>
    %76 = arith.truncf %75 : vector<16x256xf32> to vector<16x256xbf16>
    %77 = vector.extract_strided_slice %6 {offsets = [192, 0], sizes = [32, 256], strides = [1, 1]} : vector<256x256xf32> to vector<32x256xf32>
    %78 = arith.truncf %77 : vector<32x256xf32> to vector<32x256xbf16>
    %cst_27 = arith.constant dense<0.000000e+00> : vector<256x256xf32>
    %79 = tpu.matmul %74, %76, %cst_27 {dimension_numbers = #tpu.dot_dimension_numbers<[0], [0], [1], [1], [0, 1, 1, 1], [], []>} : vector<16x256xbf16>, vector<16x256xbf16>, vector<256x256xf32> -> vector<256x256xf32>
    %c2 = arith.constant 2 : index
    %c0_28 = arith.constant 0 : index
    %c0_29 = arith.constant 0 : index
    %80 = vector.load %arg4[%c2, %c0_28, %c0_29] : memref<4x256x256xbf16, #tpu.memory_space<vmem>>, vector<1x256x256xbf16>
    %81 = vector.shape_cast %80 : vector<1x256x256xbf16> to vector<256x256xbf16>
    %82 = arith.extf %81 : vector<256x256xbf16> to vector<256x256xf32>
    %83 = arith.addf %79, %82 : vector<256x256xf32>
    %cst_30 = arith.constant dense<0xFF800000> : vector<256xf32>
    %84 = vector.multi_reduction <maximumf>, %83, %cst_30 [1] : vector<256x256xf32> to vector<256xf32>
    %85 = vector.shape_cast %84 : vector<256xf32> to vector<256x1xf32>
    %86 = vector.broadcast %85 : vector<256x1xf32> to vector<256x256xf32>
    %87 = arith.subf %83, %86 : vector<256x256xf32>
    %88 = math.exp %87 : vector<256x256xf32>
    %cst_31 = arith.constant dense<0.000000e+00> : vector<256xf32>
    %89 = vector.multi_reduction <add>, %88, %cst_31 [1] : vector<256x256xf32> to vector<256xf32>
    %90 = vector.shape_cast %89 : vector<256xf32> to vector<256x1xf32>
    %91 = tpu.reciprocal %90 {approx = true} : vector<256x1xf32> -> vector<256x1xf32>
    %92 = vector.broadcast %91 : vector<256x1xf32> to vector<256x256xf32>
    %93 = arith.mulf %88, %92 : vector<256x256xf32>
    %94 = arith.truncf %93 : vector<256x256xf32> to vector<256x256xbf16>
    %cst_32 = arith.constant dense<0.000000e+00> : vector<32x256xf32>
    %95 = tpu.matmul %78, %94, %cst_32 {dimension_numbers = #tpu.dot_dimension_numbers<[1], [1], [0], [0], [0, 0, 1, 0], [], []>} : vector<32x256xbf16>, vector<256x256xbf16>, vector<32x256xf32> -> vector<32x256xf32>
    %cst_33 = arith.constant 3.000000e+00 : f32
    %96 = vector.broadcast %cst_33 : f32 to vector<32x256xf32>
    %97 = arith.addf %95, %96 : vector<32x256xf32>
    %cst_34 = arith.constant 0.000000e+00 : f32
    %cst_35 = arith.constant 6.000000e+00 : f32
    %98 = vector.broadcast %cst_34 : f32 to vector<32x256xf32>
    %99 = arith.maximumf %98, %97 : vector<32x256xf32>
    %100 = vector.broadcast %cst_35 : f32 to vector<32x256xf32>
    %101 = arith.minimumf %100, %99 : vector<32x256xf32>
    %102 = arith.mulf %95, %101 : vector<32x256xf32>
    %cst_36 = arith.constant 0.166666672 : f32
    %103 = vector.broadcast %cst_36 : f32 to vector<32x256xf32>
    %104 = arith.mulf %102, %103 : vector<32x256xf32>
    %105 = arith.truncf %104 : vector<32x256xf32> to vector<32x256xbf16>
    %106 = vector.extract_strided_slice %6 {offsets = [48, 0], sizes = [16, 256], strides = [1, 1]} : vector<256x256xf32> to vector<16x256xf32>
    %107 = arith.truncf %106 : vector<16x256xf32> to vector<16x256xbf16>
    %108 = vector.extract_strided_slice %6 {offsets = [112, 0], sizes = [16, 256], strides = [1, 1]} : vector<256x256xf32> to vector<16x256xf32>
    %109 = arith.truncf %108 : vector<16x256xf32> to vector<16x256xbf16>
    %110 = vector.extract_strided_slice %6 {offsets = [224, 0], sizes = [32, 256], strides = [1, 1]} : vector<256x256xf32> to vector<32x256xf32>
    %111 = arith.truncf %110 : vector<32x256xf32> to vector<32x256xbf16>
    %cst_37 = arith.constant dense<0.000000e+00> : vector<256x256xf32>
    %112 = tpu.matmul %107, %109, %cst_37 {dimension_numbers = #tpu.dot_dimension_numbers<[0], [0], [1], [1], [0, 1, 1, 1], [], []>} : vector<16x256xbf16>, vector<16x256xbf16>, vector<256x256xf32> -> vector<256x256xf32>
    %c3 = arith.constant 3 : index
    %c0_38 = arith.constant 0 : index
    %c0_39 = arith.constant 0 : index
    %113 = vector.load %arg4[%c3, %c0_38, %c0_39] : memref<4x256x256xbf16, #tpu.memory_space<vmem>>, vector<1x256x256xbf16>
    %114 = vector.shape_cast %113 : vector<1x256x256xbf16> to vector<256x256xbf16>
    %115 = arith.extf %114 : vector<256x256xbf16> to vector<256x256xf32>
    %116 = arith.addf %112, %115 : vector<256x256xf32>
    %cst_40 = arith.constant dense<0xFF800000> : vector<256xf32>
    %117 = vector.multi_reduction <maximumf>, %116, %cst_40 [1] : vector<256x256xf32> to vector<256xf32>
    %118 = vector.shape_cast %117 : vector<256xf32> to vector<256x1xf32>
    %119 = vector.broadcast %118 : vector<256x1xf32> to vector<256x256xf32>
    %120 = arith.subf %116, %119 : vector<256x256xf32>
    %121 = math.exp %120 : vector<256x256xf32>
    %cst_41 = arith.constant dense<0.000000e+00> : vector<256xf32>
    %122 = vector.multi_reduction <add>, %121, %cst_41 [1] : vector<256x256xf32> to vector<256xf32>
    %123 = vector.shape_cast %122 : vector<256xf32> to vector<256x1xf32>
    %124 = tpu.reciprocal %123 {approx = true} : vector<256x1xf32> -> vector<256x1xf32>
    %125 = vector.broadcast %124 : vector<256x1xf32> to vector<256x256xf32>
    %126 = arith.mulf %121, %125 : vector<256x256xf32>
    %127 = arith.truncf %126 : vector<256x256xf32> to vector<256x256xbf16>
    %cst_42 = arith.constant dense<0.000000e+00> : vector<32x256xf32>
    %128 = tpu.matmul %111, %127, %cst_42 {dimension_numbers = #tpu.dot_dimension_numbers<[1], [1], [0], [0], [0, 0, 1, 0], [], []>} : vector<32x256xbf16>, vector<256x256xbf16>, vector<32x256xf32> -> vector<32x256xf32>
    %cst_43 = arith.constant 3.000000e+00 : f32
    %129 = vector.broadcast %cst_43 : f32 to vector<32x256xf32>
    %130 = arith.addf %128, %129 : vector<32x256xf32>
    %cst_44 = arith.constant 0.000000e+00 : f32
    %cst_45 = arith.constant 6.000000e+00 : f32
    %131 = vector.broadcast %cst_44 : f32 to vector<32x256xf32>
    %132 = arith.maximumf %131, %130 : vector<32x256xf32>
    %133 = vector.broadcast %cst_45 : f32 to vector<32x256xf32>
    %134 = arith.minimumf %133, %132 : vector<32x256xf32>
    %135 = arith.mulf %128, %134 : vector<32x256xf32>
    %cst_46 = arith.constant 0.166666672 : f32
    %136 = vector.broadcast %cst_46 : f32 to vector<32x256xf32>
    %137 = arith.mulf %135, %136 : vector<32x256xf32>
    %138 = arith.truncf %137 : vector<32x256xf32> to vector<32x256xbf16>
    %139 = tpu.concatenate %39, %72, %105, %138 in 0 : vector<32x256xbf16>, vector<32x256xbf16>, vector<32x256xbf16>, vector<32x256xbf16> -> vector<128x256xbf16>
    %c0_47 = arith.constant 0 : index
    %c0_48 = arith.constant 0 : index
    %140 = vector.load %arg5[%c0_47, %c0_48] : memref<32x128xbf16, #tpu.memory_space<vmem>>, vector<32x128xbf16>
    %cst_49 = arith.constant dense<0.000000e+00> : vector<32x256xf32>
    %141 = tpu.matmul %140, %139, %cst_49 {dimension_numbers = #tpu.dot_dimension_numbers<[1], [0], [0], [1], [0, 0, 1, 1], [], []>} : vector<32x128xbf16>, vector<128x256xbf16>, vector<32x256xf32> -> vector<32x256xf32>
    %c0_50 = arith.constant 0 : index
    %c0_51 = arith.constant 0 : index
    %142 = vector.load %arg6[%c0_50, %c0_51] : memref<32x1xf32, #tpu.memory_space<vmem>>, vector<32x1xf32>
    %143 = vector.broadcast %142 : vector<32x1xf32> to vector<32x256xf32>
    %144 = arith.addf %141, %143 : vector<32x256xf32>
    %c0_52 = arith.constant 0 : index
    %c0_53 = arith.constant 0 : index
    %c0_54 = arith.constant 0 : index
    %145 = vector.load %arg7[%c0_52, %c0_53, %c0_54] : memref<1x32x256xf32, #tpu.memory_space<vmem>>, vector<1x32x256xf32>
    %146 = vector.shape_cast %145 : vector<1x32x256xf32> to vector<32x256xf32>
    %147 = vector.shape_cast %144 : vector<32x256xf32> to vector<1x32x256xf32>
    tpu.vector_store %arg7[%c0_52, %c0_53, %c0_54], %147 {strides = array<i32>} : memref<1x32x256xf32, #tpu.memory_space<vmem>>, vector<1x32x256xf32>,
    return
  }
  func.func @transform_0(%arg0: i32) -> (i32, i32, i32) {
    %c0_i32 = arith.constant 0 : i32
    %c0_i32_0 = arith.constant 0 : i32
    %c0_i32_1 = arith.constant 0 : i32
    return %arg0, %c0_i32, %c0_i32_0 : i32, i32, i32
  }
  func.func @transform_1(%arg0: i32) -> (i32, i32) {
    %c0_i32 = arith.constant 0 : i32
    %c0_i32_0 = arith.constant 0 : i32
    %c0_i32_1 = arith.constant 0 : i32
    return %c0_i32, %c0_i32_0 : i32, i32
  }
  func.func @transform_2(%arg0: i32) -> (i32, i32) {
    %c0_i32 = arith.constant 0 : i32
    %c0_i32_0 = arith.constant 0 : i32
    %c0_i32_1 = arith.constant 0 : i32
    return %c0_i32, %c0_i32_0 : i32, i32
  }
  func.func @transform_3(%arg0: i32) -> (i32, i32, i32) {
    %c0_i32 = arith.constant 0 : i32
    %c0_i32_0 = arith.constant 0 : i32
    %c0_i32_1 = arith.constant 0 : i32
    %c0_i32_2 = arith.constant 0 : i32
    return %c0_i32, %c0_i32_0, %c0_i32_1 : i32, i32, i32
  }
  func.func @transform_4(%arg0: i32) -> (i32, i32) {
    %c0_i32 = arith.constant 0 : i32
    %c0_i32_0 = arith.constant 0 : i32
    %c0_i32_1 = arith.constant 0 : i32
    return %c0_i32, %c0_i32_0 : i32, i32
  }
  func.func @transform_5(%arg0: i32) -> (i32, i32) {
    %c0_i32 = arith.constant 0 : i32
    %c0_i32_0 = arith.constant 0 : i32
    %c0_i32_1 = arith.constant 0 : i32
    return %c0_i32, %c0_i32_0 : i32, i32
  }
  func.func @transform_6(%arg0: i32) -> (i32, i32, i32) {
    %c0_i32 = arith.constant 0 : i32
    %c0_i32_0 = arith.constant 0 : i32
    %c0_i32_1 = arith.constant 0 : i32
    return %arg0, %c0_i32, %c0_i32_0 : i32, i32, i32
  }
}

</mosaic_0001>

<llo_original>
// kernel: tpu_custom_call.1
$region0: #{tpu_custom_call.1}
  #allocation0 [shape = 'u32[]', space=smem, size = 0x4, offset = 0x4, fixed_abs, tag = 'smem constant byte address 0x4 - core index']
  #allocation1 [shape = 'u32[144,128]{1,0:T(1,128)}', space=vmem, size = 0x12000, scoped, tag = 'internal scratch']
  %s0 = inlined_call_operand.vmem [shape: bf16[2,32,256], index: 0, kind: input, shape index: {}]
  %s1 = inlined_call_operand.vmem [shape: bf16[256,32], index: 1, kind: input, shape index: {}]
  %s2 = inlined_call_operand.vmem [shape: f32[256,1], index: 2, kind: input, shape index: {}]
  %s3 = inlined_call_operand.hbm [shape: bf16[4,256,256], index: 3, kind: input, shape index: {}]
  %s4 = inlined_call_operand.vmem [shape: bf16[32,128], index: 4, kind: input, shape index: {}]
  %s5 = inlined_call_operand.vmem [shape: f32[32,1], index: 5, kind: input, shape index: {}]
  %s6 = inlined_call_operand.hbm [shape: f32[2,32,256], index: 6, kind: output, shape index: {}]
  %s7 = sld [smem:[#allocation0]]
  $region61: #{tpu_custom_call.1} parent=0
    _
  %s9 = ssub.s32 1, %s7
  %s10 = scalar_select 0, %s9, %s7
  $region1: #{tpu_custom_call.1} parent=0
    #allocation2 [shape = 'u8[524288]{0}', space=vmem, size = 0x80000, scoped, tag = 'input window, operand 3, single buffered']
    #allocation3 [shape = 's32[2]{0}', space=sflag, size = 0x8, scoped, tag = 'scoped memory for tpu_custom_call.1']
    #allocation4 [shape = 's32[2]{0}', space=sflag, size = 0x8, scoped, tag = 'scoped memory for tpu_custom_call.1']
    #allocation5 [shape = 'u8[65536]{0}', space=vmem, size = 0x10000, scoped, tag = 'output window, operand 0']
    %11 = vsyncpa [#allocation3], 0
    %12 = vsyncpa [#allocation4], 0
    %s13 = scalar_lea.sflag [#allocation4], 1
    %14 = vsyncpa %s13, 0
    loop: start=0, step=1, limit=4
    $region2: #{tpu_custom_call.1} parent=1 // loop_pre_header
      _
    $region3: #{tpu_custom_call.1} parent=1 // loop_header
      %s16 = sphi 0, %s20
      %p17 = scmp.ge.s32.totalorder %s16, 4
      %s26 = sphi 0, %s28
      %s29 = sphi 0, %s26
      %s30 = sphi 0, %s29
      %s46 = sphi 0, %s30
      %s50 = sphi 0, %s50
      %s52 = sphi 0, %s50
      %s53 = sphi 0, %s52
      %s67 = sphi 0, %s53
      %s71 = sphi 0, %s71
      %s73 = sphi 0, %s71
      %s74 = sphi 0, %s73
      %s88 = sphi 0, %s74
      %s92 = sphi 0, %s92
      %s94 = sphi 0, %s92
      %s95 = sphi 0, %s94
      %s109 = sphi 0, %s95
      %s113 = sphi 0, %s113
      %s115 = sphi 0, %s113
      %s116 = sphi 0, %s115
      %s130 = sphi 0, %s116
      %s134 = sphi 0, %s134
      %s136 = sphi 0, %s134
      %s137 = sphi 0, %s136
      %s151 = sphi 0, %s137
      %s157 = sphi 0, %s159
      %s160 = sphi 0, %s157
      %s161 = sphi 0, %s160
      %s177 = sphi 0, %s161
    $region4: #{tpu_custom_call.1} parent=1 // loop_header_branch
      %19 = sbr.rel (%p17) target = $region8
    $region5: #{tpu_custom_call.1} parent=1 // loop_body
      %s21 = ssub.s32 %s16, 1
      %s22 = ssub.s32 %s16, 2
      %s23 = sadd.s32 %s16, 1
      %s24 = ssub.s32 %s16, %s23
      %p25 = scmp.eq.s32.totalorder %s24, 0
      %s27 = sadd.s32 %s26, 1
      %s28 = scalar_select %p25, %s26, %s27
      %p31 = pneg %p25
      %p32 = scmp.eq.s32.totalorder %s16, 1
      %p33 = por %p31, %p32
      %p34 = scmp.ne.s32.totalorder %s26, %s29
      %p35 = scmp.eq.s32.totalorder %s16, 0
      %p36 = por %p34, %p35
      %p37 = scmp.ne.s32.totalorder %s26, %s29
      %p38 = scmp.eq.s32.totalorder %s21, 1
      %p39 = por %p37, %p38
      %p40 = scmp.ne.s32.totalorder %s29, %s30
      %p41 = scmp.eq.s32.totalorder %s21, 0
      %p42 = por %p40, %p41
      %p43 = scmp.ne.s32.totalorder %s29, %s30
      %p44 = scmp.eq.s32.totalorder %s22, 1
      %p45 = por %p43, %p44
      %p47 = scmp.ne.s32.totalorder %s30, %s46
      %p48 = scmp.eq.s32.totalorder %s22, 0
      %p49 = por %p47, %p48
      %s51 = sadd.s32 %s50, 1
      %p54 = scmp.eq.s32.totalorder %s16, 1
      %p55 = scmp.ne.s32.totalorder %s50, %s52
      %p56 = scmp.eq.s32.totalorder %s16, 0
      %p57 = por %p55, %p56
      %p58 = scmp.ne.s32.totalorder %s50, %s52
      %p59 = scmp.eq.s32.totalorder %s21, 1
      %p60 = por %p58, %p59
      %p61 = scmp.ne.s32.totalorder %s52, %s53
      %p62 = scmp.eq.s32.totalorder %s21, 0
      %p63 = por %p61, %p62
      %p64 = scmp.ne.s32.totalorder %s52, %s53
      %p65 = scmp.eq.s32.totalorder %s22, 1
      %p66 = por %p64, %p65
      %p68 = scmp.ne.s32.totalorder %s53, %s67
      %p69 = scmp.eq.s32.totalorder %s22, 0
      %p70 = por %p68, %p69
      %s72 = sadd.s32 %s71, 1
      %p75 = scmp.eq.s32.totalorder %s16, 1
      %p76 = scmp.ne.s32.totalorder %s71, %s73
      %p77 = scmp.eq.s32.totalorder %s16, 0
      %p78 = por %p76, %p77
      %p79 = scmp.ne.s32.totalorder %s71, %s73
      %p80 = scmp.eq.s32.totalorder %s21, 1
      %p81 = por %p79, %p80
      %p82 = scmp.ne.s32.totalorder %s73, %s74
      %p83 = scmp.eq.s32.totalorder %s21, 0
      %p84 = por %p82, %p83
      %p85 = scmp.ne.s32.totalorder %s73, %s74
      %p86 = scmp.eq.s32.totalorder %s22, 1
      %p87 = por %p85, %p86
      %p89 = scmp.ne.s32.totalorder %s74, %s88
      %p90 = scmp.eq.s32.totalorder %s22, 0
      %p91 = por %p89, %p90
      %s93 = sadd.s32 %s92, 1
      %p96 = scmp.eq.s32.totalorder %s16, 1
      %p97 = scmp.ne.s32.totalorder %s92, %s94
      %p98 = scmp.eq.s32.totalorder %s16, 0
      %p99 = por %p97, %p98
      %p100 = scmp.ne.s32.totalorder %s92, %s94
      %p101 = scmp.eq.s32.totalorder %s21, 1
      %p102 = por %p100, %p101
      %p103 = scmp.ne.s32.totalorder %s94, %s95
      %p104 = scmp.eq.s32.totalorder %s21, 0
      %p105 = por %p103, %p104
      %p106 = scmp.ne.s32.totalorder %s94, %s95
      %p107 = scmp.eq.s32.totalorder %s22, 1
      %p108 = por %p106, %p107
      %p110 = scmp.ne.s32.totalorder %s95, %s109
      %p111 = scmp.eq.s32.totalorder %s22, 0
      %p112 = por %p110, %p111
      %s114 = sadd.s32 %s113, 1
      %p117 = scmp.eq.s32.totalorder %s16, 1
      %p118 = scmp.ne.s32.totalorder %s113, %s115
      %p119 = scmp.eq.s32.totalorder %s16, 0
      %p120 = por %p118, %p119
      %p121 = scmp.ne.s32.totalorder %s113, %s115
      %p122 = scmp.eq.s32.totalorder %s21, 1
      %p123 = por %p121, %p122
      %p124 = scmp.ne.s32.totalorder %s115, %s116
      %p125 = scmp.eq.s32.totalorder %s21, 0
      %p126 = por %p124, %p125
      %p127 = scmp.ne.s32.totalorder %s115, %s116
      %p128 = scmp.eq.s32.totalorder %s22, 1
      %p129 = por %p127, %p128
      %p131 = scmp.ne.s32.totalorder %s116, %s130
      %p132 = scmp.eq.s32.totalorder %s22, 0
      %p133 = por %p131, %p132
      %s135 = sadd.s32 %s134, 1
      %p138 = scmp.eq.s32.totalorder %s16, 1
      %p139 = scmp.ne.s32.totalorder %s134, %s136
      %p140 = scmp.eq.s32.totalorder %s16, 0
      %p141 = por %p139, %p140
      %p142 = scmp.ne.s32.totalorder %s134, %s136
      %p143 = scmp.eq.s32.totalorder %s21, 1
      %p144 = por %p142, %p143
      %p145 = scmp.ne.s32.totalorder %s136, %s137
      %p146 = scmp.eq.s32.totalorder %s21, 0
      %p147 = por %p145, %p146
      %p148 = scmp.ne.s32.totalorder %s136, %s137
      %p149 = scmp.eq.s32.totalorder %s22, 1
      %p150 = por %p148, %p149
      %p152 = scmp.ne.s32.totalorder %s137, %s151
      %p153 = scmp.eq.s32.totalorder %s22, 0
      %p154 = por %p152, %p153
      %s155 = ssub.s32 %s16, %s23
      %p156 = scmp.eq.s32.totalorder %s155, 0
      %s158 = sadd.s32 %s157, 1
      %s159 = scalar_select %p156, %s157, %s158
      %p162 = pneg %p156
      %p163 = scmp.eq.s32.totalorder %s16, 1
      %p164 = por %p162, %p163
      %p165 = scmp.ne.s32.totalorder %s157, %s160
      %p166 = scmp.eq.s32.totalorder %s16, 0
      %p167 = por %p165, %p166
      %p168 = scmp.ne.s32.totalorder %s157, %s160
      %p169 = scmp.eq.s32.totalorder %s21, 1
      %p170 = por %p168, %p169
      %p171 = scmp.ne.s32.totalorder %s160, %s161
      %p172 = scmp.eq.s32.totalorder %s21, 0
      %p173 = por %p171, %p172
      %p174 = scmp.ne.s32.totalorder %s160, %s161
      %p175 = scmp.eq.s32.totalorder %s22, 1
      %p176 = por %p174, %p175
      %p178 = scmp.ne.s32.totalorder %s161, %s177
      %p179 = scmp.eq.s32.totalorder %s22, 0
      %p180 = por %p178, %p179
      %p181 = scmp.le.s32.totalorder 1, %s16
      %p182 = scmp.lt.s32.totalorder %s16, 3
      %p183 = pnand %p181, %p182
      %p184 = pneg %p183
      // Predicated region
      $region9: #{tpu_custom_call.1} parent=5 // pred_check
        _
      $region10: #{tpu_custom_call.1} parent=5 // pred_check_branch
        %186 = sbr.rel (%p183) target = $region12
      $region11: #{tpu_custom_call.1} parent=5 // pred_region
        %s187 = ssub.s32 %s16, 1
        // Predicated region
        $region13: #{tpu_custom_call.1} parent=11 // pred_check
          %p188 = pneg %p63
        $region14: #{tpu_custom_call.1} parent=11 // pred_check_branch
          %190 = sbr.rel (%p188) target = $region16
        $region15: #{tpu_custom_call.1} parent=11 // pred_region
          _
        $region16: #{tpu_custom_call.1} parent=11 // pred_fallthru
          _
        // Predicated region
        $region17: #{tpu_custom_call.1} parent=11 // pred_check
          %p191 = pneg %p84
        $region18: #{tpu_custom_call.1} parent=11 // pred_check_branch
          %193 = sbr.rel (%p191) target = $region20
        $region19: #{tpu_custom_call.1} parent=11 // pred_region
          _
        $region20: #{tpu_custom_call.1} parent=11 // pred_fallthru
          _
        // Predicated region
        $region21: #{tpu_custom_call.1} parent=11 // pred_check
          %p194 = pneg %p105
        $region22: #{tpu_custom_call.1} parent=11 // pred_check_branch
          %196 = sbr.rel (%p194) target = $region24
        $region23: #{tpu_custom_call.1} parent=11 // pred_region
          %s198 = ssub.s32 16384, 16384
          %199 = vsyncadd [#allocation3], %s198
          %s200 = sshll.u32 [#allocation2], 4
          %s201 = int_to_ptr.vmem [resolvable:$true] %s200
          %206 = dma.hbm_to_vmem [thread:$0]  %s3, 16384, %s201, [#allocation3], 128, 128, 8
        $region24: #{tpu_custom_call.1} parent=11 // pred_fallthru
          _
        // Predicated region
        $region25: #{tpu_custom_call.1} parent=11 // pred_check
          %p207 = pneg %p126
        $region26: #{tpu_custom_call.1} parent=11 // pred_check_branch
          %209 = sbr.rel (%p207) target = $region28
        $region27: #{tpu_custom_call.1} parent=11 // pred_region
          _
        $region28: #{tpu_custom_call.1} parent=11 // pred_fallthru
          _
        // Predicated region
        $region29: #{tpu_custom_call.1} parent=11 // pred_check
          %p210 = pneg %p147
        $region30: #{tpu_custom_call.1} parent=11 // pred_check_branch
          %212 = sbr.rel (%p210) target = $region32
        $region31: #{tpu_custom_call.1} parent=11 // pred_region
          _
        $region32: #{tpu_custom_call.1} parent=11 // pred_fallthru
          _
      $region12: #{tpu_custom_call.1} parent=5 // pred_fallthru
        _
      %p213 = scmp.lt.s32.totalorder %s16, 2
      // Predicated region
      $region33: #{tpu_custom_call.1} parent=5 // pred_check
        %p214 = pneg %p213
      $region34: #{tpu_custom_call.1} parent=5 // pred_check_branch
        %216 = sbr.rel (%p214) target = $region36
      $region35: #{tpu_custom_call.1} parent=5 // pred_region
        // Predicated region
        $region37: #{tpu_custom_call.1} parent=35 // pred_check
          %p217 = pneg %p36
        $region38: #{tpu_custom_call.1} parent=35 // pred_check_branch
          %219 = sbr.rel (%p217) target = $region40
        $region39: #{tpu_custom_call.1} parent=35 // pred_region
          %p220 = scmp.lt.s32.totalorder %s16, 1
          %s221 = scalar_select %p220, %s16, 1
          %s222 = smul.addr %s221, 8
          %s223 = smul.addr %s222, 4
          %s224 = scalar_lea.vmem %s0, %s223
        $region40: #{tpu_custom_call.1} parent=35 // pred_fallthru
          _
      $region36: #{tpu_custom_call.1} parent=5 // pred_fallthru
        _
      %p225 = scmp.le.s32.totalorder 1, %s16
      %p226 = scmp.lt.s32.totalorder %s16, 3
      %p227 = pnand %p225, %p226
      %p228 = pneg %p227
      // Predicated region
      $region41: #{tpu_custom_call.1} parent=5 // pred_check
        _
      $region42: #{tpu_custom_call.1} parent=5 // pred_check_branch
        %230 = sbr.rel (%p227) target = $region44
      $region43: #{tpu_custom_call.1} parent=5 // pred_region
        %s231 = ssub.s32 %s16, 1
        // Predicated region
        $region45: #{tpu_custom_call.1} parent=43 // pred_check
          %p232 = pneg %p105
        $region46: #{tpu_custom_call.1} parent=43 // pred_check_branch
          %234 = sbr.rel (%p232) target = $region48
        $region47: #{tpu_custom_call.1} parent=43 // pred_region
          %235 = dma.done [#allocation3], 16384
        $region48: #{tpu_custom_call.1} parent=43 // pred_fallthru
          _
        %p236 = scmp.lt.s32.totalorder %s21, 1
        %s237 = scalar_select %p236, %s21, 1
        %s238 = smul.addr %s237, 8
        %s239 = smul.addr %s238, 4
        %s240 = scalar_lea.vmem %s0, %s239
        %p241 = pneg %p42
        %p242 = pneg %p39
        %p243 = pneg %p63
        %p244 = pneg %p60
        %p245 = pneg %p84
        %p246 = pneg %p81
        %p247 = pneg %p105
        %p248 = pneg %p102
        %p249 = pneg %p126
        %p250 = pneg %p123
        %p251 = pneg %p147
        %p252 = pneg %p144
        %p253 = pneg %p173
        %p254 = pneg %p170
        %s255 = sand.u32 %s160, 1
        %s256 = scalar_lea.sflag [#allocation4], %s255
        %s257 = sand.u32 %s160, 1
        %s258 = smul.addr %s257, 64
        %s259 = scalar_lea.vmem [#allocation5], %s258
        %p260 = scmp.lt.s32.totalorder %s21, 1
        %s261 = scalar_select %p260, %s21, 1
        %s262 = smul.addr %s261, 8
        %s263 = smul.addr %s262, 4
        %s264 = scalar_lea.vmem %s0, %s263
        %v266 = vld [vmem:[%s264] sm:$0xff]
        %v267 = vld [vmem:[%s264 + $0x8] sm:$0xff]
        %v268 = vld [vmem:[%s264 + $0x10] sm:$0xff]
        %v269 = vld [vmem:[%s264 + $0x18] sm:$0xff]
        %v270 = vld [vmem:[%s1] sm:$0xf]
        %v271 = vld [vmem:[%s1 + $0x4] sm:$0xf]
        %v272 = vld [vmem:[%s1 + $0x8] sm:$0xf]
        %v273 = vld [vmem:[%s1 + $0xc] sm:$0xf]
        %v274 = vld [vmem:[%s1 + $0x10] sm:$0xf]
        %v275 = vld [vmem:[%s1 + $0x14] sm:$0xf]
        %v276 = vld [vmem:[%s1 + $0x18] sm:$0xf]
        %v277 = vld [vmem:[%s1 + $0x1c] sm:$0xf]
        %v278 = vld [vmem:[%s1 + $0x20] sm:$0xf]
        %v279 = vld [vmem:[%s1 + $0x24] sm:$0xf]
        %v280 = vld [vmem:[%s1 + $0x28] sm:$0xf]
        %v281 = vld [vmem:[%s1 + $0x2c] sm:$0xf]
        %v282 = vld [vmem:[%s1 + $0x30] sm:$0xf]
        %v283 = vld [vmem:[%s1 + $0x34] sm:$0xf]
        %v284 = vld [vmem:[%s1 + $0x38] sm:$0xf]
        %v285 = vld [vmem:[%s1 + $0x3c] sm:$0xf]
        %v286 = vld [vmem:[%s1 + $0x40] sm:$0xf]
        %v287 = vld [vmem:[%s1 + $0x44] sm:$0xf]
        %v288 = vld [vmem:[%s1 + $0x48] sm:$0xf]
        %v289 = vld [vmem:[%s1 + $0x4c] sm:$0xf]
        %v290 = vld [vmem:[%s1 + $0x50] sm:$0xf]
        %v291 = vld [vmem:[%s1 + $0x54] sm:$0xf]
        %v292 = vld [vmem:[%s1 + $0x58] sm:$0xf]
        %v293 = vld [vmem:[%s1 + $0x5c] sm:$0xf]
        %v294 = vld [vmem:[%s1 + $0x60] sm:$0xf]
        %v295 = vld [vmem:[%s1 + $0x64] sm:$0xf]
        %v296 = vld [vmem:[%s1 + $0x68] sm:$0xf]
        %v297 = vld [vmem:[%s1 + $0x6c] sm:$0xf]
        %v298 = vld [vmem:[%s1 + $0x70] sm:$0xf]
        %v299 = vld [vmem:[%s1 + $0x74] sm:$0xf]
        %v300 = vld [vmem:[%s1 + $0x78] sm:$0xf]
        %v301 = vld [vmem:[%s1 + $0x7c] sm:$0xf]
        %v302 = vld [vmem:[%s2] sm:$0xff]
        %v303 = vld [vmem:[%s2 + $0x8] sm:$0xff]
        %v304 = vld [vmem:[%s2 + $0x10] sm:$0xff]
        %v305 = vld [vmem:[%s2 + $0x18] sm:$0xff]
        %v306 = vld [vmem:[%s2 + $0x20] sm:$0xff]
        %v307 = vld [vmem:[%s2 + $0x28] sm:$0xff]
        %v308 = vld [vmem:[%s2 + $0x30] sm:$0xff]
        %v309 = vld [vmem:[%s2 + $0x38] sm:$0xff]
        %v310 = vld [vmem:[%s2 + $0x40] sm:$0xff]
        %v311 = vld [vmem:[%s2 + $0x48] sm:$0xff]
        %v312 = vld [vmem:[%s2 + $0x50] sm:$0xff]
        %v313 = vld [vmem:[%s2 + $0x58] sm:$0xff]
        %v314 = vld [vmem:[%s2 + $0x60] sm:$0xff]
        %v315 = vld [vmem:[%s2 + $0x68] sm:$0xff]
        %v316 = vld [vmem:[%s2 + $0x70] sm:$0xff]
        %v317 = vld [vmem:[%s2 + $0x78] sm:$0xff]
        %v318 = vld [vmem:[%s2 + $0x80] sm:$0xff]
        %v319 = vld [vmem:[%s2 + $0x88] sm:$0xff]
        %v320 = vld [vmem:[%s2 + $0x90] sm:$0xff]
        %v321 = vld [vmem:[%s2 + $0x98] sm:$0xff]
        %v322 = vld [vmem:[%s2 + $0xa0] sm:$0xff]
        %v323 = vld [vmem:[%s2 + $0xa8] sm:$0xff]
        %v324 = vld [vmem:[%s2 + $0xb0] sm:$0xff]
        %v325 = vld [vmem:[%s2 + $0xb8] sm:$0xff]
        %v326 = vld [vmem:[%s2 + $0xc0] sm:$0xff]
        %v327 = vld [vmem:[%s2 + $0xc8] sm:$0xff]
        %v328 = vld [vmem:[%s2 + $0xd0] sm:$0xff]
        %v329 = vld [vmem:[%s2 + $0xd8] sm:$0xff]
        %v330 = vld [vmem:[%s2 + $0xe0] sm:$0xff]
        %v331 = vld [vmem:[%s2 + $0xe8] sm:$0xff]
        %v332 = vld [vmem:[%s2 + $0xf0] sm:$0xff]
        %v333 = vld [vmem:[%s2 + $0xf8] sm:$0xff]
        %335 = vset.pattern.permute.xlu0 0
        %336 = vperm.xlu0 %335, %v302
        %v337 = vpop.permute.xlu0 %336
        %340 = vset.pattern.permute.xlu0 0
        %341 = vperm.xlu0 %340, %v303
        %v342 = vpop.permute.xlu0 %341
        %345 = vset.pattern.permute.xlu0 0
        %346 = vperm.xlu0 %345, %v304
        %v347 = vpop.permute.xlu0 %346
        %350 = vset.pattern.permute.xlu0 0
        %351 = vperm.xlu0 %350, %v305
        %v352 = vpop.permute.xlu0 %351
        %355 = vset.pattern.permute.xlu0 0
        %356 = vperm.xlu0 %355, %v306
        %v357 = vpop.permute.xlu0 %356
        %360 = vset.pattern.permute.xlu0 0
        %361 = vperm.xlu0 %360, %v307
        %v362 = vpop.permute.xlu0 %361
        %365 = vset.pattern.permute.xlu0 0
        %366 = vperm.xlu0 %365, %v308
        %v367 = vpop.permute.xlu0 %366
        %370 = vset.pattern.permute.xlu0 0
        %371 = vperm.xlu0 %370, %v309
        %v372 = vpop.permute.xlu0 %371
        %375 = vset.pattern.permute.xlu0 0
        %376 = vperm.xlu0 %375, %v310
        %v377 = vpop.permute.xlu0 %376
        %380 = vset.pattern.permute.xlu0 0
        %381 = vperm.xlu0 %380, %v311
        %v382 = vpop.permute.xlu0 %381
        %385 = vset.pattern.permute.xlu0 0
        %386 = vperm.xlu0 %385, %v312
        %v387 = vpop.permute.xlu0 %386
        %390 = vset.pattern.permute.xlu0 0
        %391 = vperm.xlu0 %390, %v313
        %v392 = vpop.permute.xlu0 %391
        %395 = vset.pattern.permute.xlu0 0
        %396 = vperm.xlu0 %395, %v314
        %v397 = vpop.permute.xlu0 %396
        %400 = vset.pattern.permute.xlu0 0
        %401 = vperm.xlu0 %400, %v315
        %v402 = vpop.permute.xlu0 %401
        %405 = vset.pattern.permute.xlu0 0
        %406 = vperm.xlu0 %405, %v316
        %v407 = vpop.permute.xlu0 %406
        %410 = vset.pattern.permute.xlu0 0
        %411 = vperm.xlu0 %410, %v317
        %v412 = vpop.permute.xlu0 %411
        %415 = vset.pattern.permute.xlu0 0
        %416 = vperm.xlu0 %415, %v318
        %v417 = vpop.permute.xlu0 %416
        %420 = vset.pattern.permute.xlu0 0
        %421 = vperm.xlu0 %420, %v319
        %v422 = vpop.permute.xlu0 %421
        %425 = vset.pattern.permute.xlu0 0
        %426 = vperm.xlu0 %425, %v320
        %v427 = vpop.permute.xlu0 %426
        %430 = vset.pattern.permute.xlu0 0
        %431 = vperm.xlu0 %430, %v321
        %v432 = vpop.permute.xlu0 %431
        %435 = vset.pattern.permute.xlu0 0
        %436 = vperm.xlu0 %435, %v322
        %v437 = vpop.permute.xlu0 %436
        %440 = vset.pattern.permute.xlu0 0
        %441 = vperm.xlu0 %440, %v323
        %v442 = vpop.permute.xlu0 %441
        %445 = vset.pattern.permute.xlu0 0
        %446 = vperm.xlu0 %445, %v324
        %v447 = vpop.permute.xlu0 %446
        %450 = vset.pattern.permute.xlu0 0
        %451 = vperm.xlu0 %450, %v325
        %v452 = vpop.permute.xlu0 %451
        %455 = vset.pattern.permute.xlu0 0
        %456 = vperm.xlu0 %455, %v326
        %v457 = vpop.permute.xlu0 %456
        %460 = vset.pattern.permute.xlu0 0
        %461 = vperm.xlu0 %460, %v327
        %v462 = vpop.permute.xlu0 %461
        %465 = vset.pattern.permute.xlu0 0
        %466 = vperm.xlu0 %465, %v328
        %v467 = vpop.permute.xlu0 %466
        %470 = vset.pattern.permute.xlu0 0
        %471 = vperm.xlu0 %470, %v329
        %v472 = vpop.permute.xlu0 %471
        %475 = vset.pattern.permute.xlu0 0
        %476 = vperm.xlu0 %475, %v330
        %v477 = vpop.permute.xlu0 %476
        %480 = vset.pattern.permute.xlu0 0
        %481 = vperm.xlu0 %480, %v331
        %v482 = vpop.permute.xlu0 %481
        %485 = vset.pattern.permute.xlu0 0
        %486 = vperm.xlu0 %485, %v332
        %v487 = vpop.permute.xlu0 %486
        %490 = vset.pattern.permute.xlu0 0
        %491 = vperm.xlu0 %490, %v333
        %v492 = vpop.permute.xlu0 %491
        %v526 = vunpack.c.l.b16 %v270
        %v527 = vunpack.c.l.b16 %v271
        %v528 = vunpack.c.l.b16 %v272
        %v529 = vunpack.c.l.b16 %v273
        %v530 = vunpack.c.l.b16 %v274
        %v531 = vunpack.c.l.b16 %v275
        %v532 = vunpack.c.l.b16 %v276
        %v533 = vunpack.c.l.b16 %v277
        %v534 = vunpack.c.l.b16 %v278
        %v535 = vunpack.c.l.b16 %v279
        %v536 = vunpack.c.l.b16 %v280
        %v537 = vunpack.c.l.b16 %v281
        %v538 = vunpack.c.l.b16 %v282
        %v539 = vunpack.c.l.b16 %v283
        %v540 = vunpack.c.l.b16 %v284
        %v541 = vunpack.c.l.b16 %v285
        %v542 = vunpack.c.l.b16 %v286
        %v543 = vunpack.c.l.b16 %v287
        %v544 = vunpack.c.l.b16 %v288
        %v545 = vunpack.c.l.b16 %v289
        %v546 = vunpack.c.l.b16 %v290
        %v547 = vunpack.c.l.b16 %v291
        %v548 = vunpack.c.l.b16 %v292
        %v549 = vunpack.c.l.b16 %v293
        %v550 = vunpack.c.l.b16 %v294
        %v551 = vunpack.c.l.b16 %v295
        %v552 = vunpack.c.l.b16 %v296
        %v553 = vunpack.c.l.b16 %v297
        %v554 = vunpack.c.l.b16 %v298
        %v555 = vunpack.c.l.b16 %v299
        %v556 = vunpack.c.l.b16 %v300
        %v557 = vunpack.c.l.b16 %v301
        %v558 = vpack.c.b16 %v527, %v526
        %v559 = vpack.c.b16 %v529, %v528
        %v560 = vpack.c.b16 %v531, %v530
        %v561 = vpack.c.b16 %v533, %v532
        %v562 = vpack.c.b16 %v535, %v534
        %v563 = vpack.c.b16 %v537, %v536
        %v564 = vpack.c.b16 %v539, %v538
        %v565 = vpack.c.b16 %v541, %v540
        %v566 = vpack.c.b16 %v543, %v542
        %v567 = vpack.c.b16 %v545, %v544
        %v568 = vpack.c.b16 %v547, %v546
        %v569 = vpack.c.b16 %v549, %v548
        %v570 = vpack.c.b16 %v551, %v550
        %v571 = vpack.c.b16 %v553, %v552
        %v572 = vpack.c.b16 %v555, %v554
        %v573 = vpack.c.b16 %v557, %v556
        %v578 = vunpack.c.l.b16 %v266
        %v579 = vunpack.c.h.b16 %v266
        %v580 = vunpack.c.l.b16 %v267
        %v581 = vunpack.c.h.b16 %v267
        %v582 = vunpack.c.l.b16 %v268
        %v583 = vunpack.c.h.b16 %v268
        %v584 = vunpack.c.l.b16 %v269
        %v585 = vunpack.c.h.b16 %v269
        %v586 = vpack.c.b16 %v580, %v578
        %v587 = vpack.c.b16 %v581, %v579
        %v588 = vpack.c.b16 %v584, %v582
        %v589 = vpack.c.b16 %v585, %v583
        %vm594 = vcmask 261120
        %v596 = vsel %vm594, %v558, 0
        %v599 = vsel %vm594, %v559, 0
        %v602 = vsel %vm594, %v560, 0
        %v605 = vsel %vm594, %v561, 0
        %v608 = vsel %vm594, %v562, 0
        %v611 = vsel %vm594, %v563, 0
        %v614 = vsel %vm594, %v564, 0
        %v617 = vsel %vm594, %v565, 0
        %v620 = vsel %vm594, %v566, 0
        %v623 = vsel %vm594, %v567, 0
        %v626 = vsel %vm594, %v568, 0
        %v629 = vsel %vm594, %v569, 0
        %v632 = vsel %vm594, %v570, 0
        %v635 = vsel %vm594, %v571, 0
        %v638 = vsel %vm594, %v572, 0
        %v641 = vsel %vm594, %v573, 0
        %643 = vmatprep.subr.bf16.mxu0 0
        %644 = vmatpush1.bf16.msra.mxu0 0
        %645 = vmatprep.subr.bf16.mxu0 0
        %646 = vmatpush1.bf16.msra.mxu0 0
        %647 = vmatprep.subr.bf16.mxu0 0
        %648 = vmatpush1.bf16.msra.mxu0 0
        %649 = vmatprep.subr.bf16.mxu0 0
        %650 = vmatpush1.bf16.msra.mxu0 0
        %651 = vmatprep.subr.bf16.mxu0 0
        %652 = vmatpush1.bf16.msra.mxu0 0
        %653 = vmatprep.subr.bf16.mxu0 0
        %654 = vmatpush1.bf16.msra.mxu0 0
        %655 = vmatprep.subr.bf16.mxu0 %v589
        %656 = vmatpush1.bf16.msra.mxu0 %v588
        %657 = vmatprep.subr.bf16.mxu0 %v587
        %658 = vmatpush1.bf16.msra.mxu0 %v586
        %659 = vmatprep.subr.bf16.mxu0 0
        %660 = vmatpush2.bf16.msra.mxu0 0
        %661 = vmatprep.subr.bf16.mxu0 0
        %662 = vmatpush2.bf16.msra.mxu0 0
        %663 = vmatprep.subr.bf16.mxu0 0
        %664 = vmatpush2.bf16.msra.mxu0 0
        %665 = vmatprep.subr.bf16.mxu0 0
        %666 = vmatpush2.bf16.msra.mxu0 0
        %667 = vmatprep.subr.bf16.mxu0 0
        %668 = vmatpush2.bf16.msra.mxu0 0
        %669 = vmatprep.subr.bf16.mxu0 0
        %670 = vmatpush2.bf16.msra.mxu0 0
        %671 = vmatprep.subr.bf16.mxu0 0
        %672 = vmatpush2.bf16.msra.mxu0 0
        %673 = vmatprep.subr.bf16.mxu0 0
        %674 = vmatpush2.bf16.msra.mxu0 0
        %675 = vmatprep.mubr.bf16.mxu0 0
        %676 = vmatmul.mubr.bf16.gmra.mxu0 %v596
        %v677 = vpop.f32.mrf.mxu0
        %v678 = vadd.f32 %v337, %v677
        %v679 = vpop.f32.mrf.mxu0
        %v680 = vadd.f32 %v337, %v679
        %v681 = vpop.f32.mrf.mxu0
        %v682 = vadd.f32 %v342, %v681
        %v683 = vpop.f32.mrf.mxu0
        %v684 = vadd.f32 %v342, %v683
        %685 = vmatprep.mubr.bf16.mxu0 0
        %686 = vmatmul.mubr.bf16.gmra.mxu0 %v599
        %v687 = vpop.f32.mrf.mxu0
        %v688 = vadd.f32 %v347, %v687
        %v689 = vpop.f32.mrf.mxu0
        %v690 = vadd.f32 %v347, %v689
        %v691 = vpop.f32.mrf.mxu0
        %v692 = vadd.f32 %v352, %v691
        %v693 = vpop.f32.mrf.mxu0
        %v694 = vadd.f32 %v352, %v693
        %695 = vmatprep.mubr.bf16.mxu0 0
        %696 = vmatmul.mubr.bf16.gmra.mxu0 %v602
        %v697 = vpop.f32.mrf.mxu0
        %v698 = vadd.f32 %v357, %v697
        %v699 = vpop.f32.mrf.mxu0
        %v700 = vadd.f32 %v357, %v699
        %v701 = vpop.f32.mrf.mxu0
        %v702 = vadd.f32 %v362, %v701
        %v703 = vpop.f32.mrf.mxu0
        %v704 = vadd.f32 %v362, %v703
        %705 = vmatprep.mubr.bf16.mxu0 0
        %706 = vmatmul.mubr.bf16.gmra.mxu0 %v605
        %v707 = vpop.f32.mrf.mxu0
        %v708 = vadd.f32 %v367, %v707
        %v709 = vpop.f32.mrf.mxu0
        %v710 = vadd.f32 %v367, %v709
        %v711 = vpop.f32.mrf.mxu0
        %v712 = vadd.f32 %v372, %v711
        %v713 = vpop.f32.mrf.mxu0
        %v714 = vadd.f32 %v372, %v713
        %715 = vmatprep.mubr.bf16.mxu0 0
        %716 = vmatmul.mubr.bf16.gmra.mxu0 %v608
        %v717 = vpop.f32.mrf.mxu0
        %v718 = vadd.f32 %v377, %v717
        %v719 = vpop.f32.mrf.mxu0
        %v720 = vadd.f32 %v377, %v719
        %v721 = vpop.f32.mrf.mxu0
        %v722 = vadd.f32 %v382, %v721
        %v723 = vpop.f32.mrf.mxu0
        %v724 = vadd.f32 %v382, %v723
        %725 = vmatprep.mubr.bf16.mxu0 0
        %726 = vmatmul.mubr.bf16.gmra.mxu0 %v611
        %v727 = vpop.f32.mrf.mxu0
        %v728 = vadd.f32 %v387, %v727
        %v729 = vpop.f32.mrf.mxu0
        %v730 = vadd.f32 %v387, %v729
        %v731 = vpop.f32.mrf.mxu0
        %v732 = vadd.f32 %v392, %v731
        %v733 = vpop.f32.mrf.mxu0
        %v734 = vadd.f32 %v392, %v733
        %735 = vmatprep.mubr.bf16.mxu0 0
        %736 = vmatmul.mubr.bf16.gmra.mxu0 %v614
        %v737 = vpop.f32.mrf.mxu0
        %v738 = vadd.f32 %v397, %v737
        %v739 = vpop.f32.mrf.mxu0
        %v740 = vadd.f32 %v397, %v739
        %v741 = vpop.f32.mrf.mxu0
        %v742 = vadd.f32 %v402, %v741
        %v743 = vpop.f32.mrf.mxu0
        %v744 = vadd.f32 %v402, %v743
        %745 = vmatprep.mubr.bf16.mxu0 0
        %746 = vmatmul.mubr.bf16.gmra.mxu0 %v617
        %v747 = vpop.f32.mrf.mxu0
        %v748 = vadd.f32 %v407, %v747
        %v749 = vpop.f32.mrf.mxu0
        %v750 = vadd.f32 %v407, %v749
        %v751 = vpop.f32.mrf.mxu0
        %v752 = vadd.f32 %v412, %v751
        %v753 = vpop.f32.mrf.mxu0
        %v754 = vadd.f32 %v412, %v753
        %755 = vmatprep.mubr.bf16.mxu0 0
        %756 = vmatmul.mubr.bf16.gmra.mxu0 %v620
        %v757 = vpop.f32.mrf.mxu0
        %v758 = vadd.f32 %v417, %v757
        %v759 = vpop.f32.mrf.mxu0
        %v760 = vadd.f32 %v417, %v759
        %v761 = vpop.f32.mrf.mxu0
        %v762 = vadd.f32 %v422, %v761
        %v763 = vpop.f32.mrf.mxu0
        %v764 = vadd.f32 %v422, %v763
        %765 = vmatprep.mubr.bf16.mxu0 0
        %766 = vmatmul.mubr.bf16.gmra.mxu0 %v623
        %v767 = vpop.f32.mrf.mxu0
        %v768 = vadd.f32 %v427, %v767
        %v769 = vpop.f32.mrf.mxu0
        %v770 = vadd.f32 %v427, %v769
        %v771 = vpop.f32.mrf.mxu0
        %v772 = vadd.f32 %v432, %v771
        %v773 = vpop.f32.mrf.mxu0
        %v774 = vadd.f32 %v432, %v773
        %775 = vmatprep.mubr.bf16.mxu0 0
        %776 = vmatmul.mubr.bf16.gmra.mxu0 %v626
        %v777 = vpop.f32.mrf.mxu0
        %v778 = vadd.f32 %v437, %v777
        %v779 = vpop.f32.mrf.mxu0
        %v780 = vadd.f32 %v437, %v779
        %v781 = vpop.f32.mrf.mxu0
        %v782 = vadd.f32 %v442, %v781
        %v783 = vpop.f32.mrf.mxu0
        %v784 = vadd.f32 %v442, %v783
        %785 = vmatprep.mubr.bf16.mxu0 0
        %786 = vmatmul.mubr.bf16.gmra.mxu0 %v629
        %v787 = vpop.f32.mrf.mxu0
        %v788 = vadd.f32 %v447, %v787
        %v789 = vpop.f32.mrf.mxu0
        %v790 = vadd.f32 %v447, %v789
        %v791 = vpop.f32.mrf.mxu0
        %v792 = vadd.f32 %v452, %v791
        %v793 = vpop.f32.mrf.mxu0
        %v794 = vadd.f32 %v452, %v793
        %795 = vmatprep.mubr.bf16.mxu0 0
        %796 = vmatmul.mubr.bf16.gmra.mxu0 %v632
        %v797 = vpop.f32.mrf.mxu0
        %v798 = vadd.f32 %v457, %v797
        %v799 = vpop.f32.mrf.mxu0
        %v800 = vadd.f32 %v457, %v799
        %v801 = vpop.f32.mrf.mxu0
        %v802 = vadd.f32 %v462, %v801
        %v803 = vpop.f32.mrf.mxu0
        %v804 = vadd.f32 %v462, %v803
        %805 = vmatprep.mubr.bf16.mxu0 0
        %806 = vmatmul.mubr.bf16.gmra.mxu0 %v635
        %v807 = vpop.f32.mrf.mxu0
        %v808 = vadd.f32 %v467, %v807
        %v809 = vpop.f32.mrf.mxu0
        %v810 = vadd.f32 %v467, %v809
        %v811 = vpop.f32.mrf.mxu0
        %v812 = vadd.f32 %v472, %v811
        %v813 = vpop.f32.mrf.mxu0
        %v814 = vadd.f32 %v472, %v813
        %815 = vmatprep.mubr.bf16.mxu0 0
        %816 = vmatmul.mubr.bf16.gmra.mxu0 %v638
        %v817 = vpop.f32.mrf.mxu0
        %v818 = vadd.f32 %v477, %v817
        %v819 = vpop.f32.mrf.mxu0
        %v820 = vadd.f32 %v477, %v819
        %v821 = vpop.f32.mrf.mxu0
        %v822 = vadd.f32 %v482, %v821
        %v823 = vpop.f32.mrf.mxu0
        %v824 = vadd.f32 %v482, %v823
        %825 = vmatprep.mubr.bf16.mxu0 0
        %826 = vmatmul.mubr.bf16.gmra.mxu0 %v641
        %v827 = vpop.f32.mrf.mxu0
        %v828 = vadd.f32 %v487, %v827
        %v829 = vpop.f32.mrf.mxu0
        %v830 = vadd.f32 %v487, %v829
        %v831 = vpop.f32.mrf.mxu0
        %v832 = vadd.f32 %v492, %v831
        %v833 = vpop.f32.mrf.mxu0
        %v834 = vadd.f32 %v492, %v833
        %835 = vdwg.mxu0
        %v836 = vpack.c.bf16 %v682, %v678
        %v837 = vpack.c.bf16 %v684, %v680
        %v838 = vpack.c.bf16 %v722, %v718
        %v839 = vpack.c.bf16 %v724, %v720
        %v840 = vpack.c.bf16 %v762, %v758
        %v841 = vpack.c.bf16 %v764, %v760
        %v842 = vpack.c.bf16 %v772, %v768
        %v843 = vpack.c.bf16 %v774, %v770
        %v844 = vld [vmem:[#allocation2] sm:$0xff]
        %v845 = vld [vmem:[#allocation2 + $0x8] sm:$0xff]
        %v846 = vld [vmem:[#allocation2 + $0x10] sm:$0xff]
        %v847 = vld [vmem:[#allocation2 + $0x18] sm:$0xff]
        %v848 = vld [vmem:[#allocation2 + $0x20] sm:$0xff]
        %v849 = vld [vmem:[#allocation2 + $0x28] sm:$0xff]
        %v850 = vld [vmem:[#allocation2 + $0x30] sm:$0xff]
        %v851 = vld [vmem:[#allocation2 + $0x38] sm:$0xff]
        %v852 = vld [vmem:[#allocation2 + $0x40] sm:$0xff]
        %v853 = vld [vmem:[#allocation2 + $0x48] sm:$0xff]
        %v854 = vld [vmem:[#allocation2 + $0x50] sm:$0xff]
        %v855 = vld [vmem:[#allocation2 + $0x58] sm:$0xff]
        %v856 = vld [vmem:[#allocation2 + $0x60] sm:$0xff]
        %v857 = vld [vmem:[#allocation2 + $0x68] sm:$0xff]
        %v858 = vld [vmem:[#allocation2 + $0x70] sm:$0xff]
        %v859 = vld [vmem:[#allocation2 + $0x78] sm:$0xff]
        %v860 = vld [vmem:[#allocation2 + $0x80] sm:$0xff]
        %v861 = vld [vmem:[#allocation2 + $0x88] sm:$0xff]
        %v862 = vld [vmem:[#allocation2 + $0x90] sm:$0xff]
        %v863 = vld [vmem:[#allocation2 + $0x98] sm:$0xff]
        %v864 = vld [vmem:[#allocation2 + $0xa0] sm:$0xff]
        %v865 = vld [vmem:[#allocation2 + $0xa8] sm:$0xff]
        %v866 = vld [vmem:[#allocation2 + $0xb0] sm:$0xff]
        %v867 = vld [vmem:[#allocation2 + $0xb8] sm:$0xff]
        %v868 = vld [vmem:[#allocation2 + $0xc0] sm:$0xff]
        %v869 = vld [vmem:[#allocation2 + $0xc8] sm:$0xff]
        %v870 = vld [vmem:[#allocation2 + $0xd0] sm:$0xff]
        %v871 = vld [vmem:[#allocation2 + $0xd8] sm:$0xff]
        %v872 = vld [vmem:[#allocation2 + $0xe0] sm:$0xff]
        %v873 = vld [vmem:[#allocation2 + $0xe8] sm:$0xff]
        %v874 = vld [vmem:[#allocation2 + $0xf0] sm:$0xff]
        %v875 = vld [vmem:[#allocation2 + $0xf8] sm:$0xff]
        %v876 = vunpack.c.l.bf16 %v844
        %v877 = vunpack.c.h.bf16 %v844
        %v878 = vunpack.c.l.bf16 %v845
        %v879 = vunpack.c.h.bf16 %v845
        %v880 = vunpack.c.l.bf16 %v846
        %v881 = vunpack.c.h.bf16 %v846
        %v882 = vunpack.c.l.bf16 %v847
        %v883 = vunpack.c.h.bf16 %v847
        %v884 = vunpack.c.l.bf16 %v848
        %v885 = vunpack.c.h.bf16 %v848
        %v886 = vunpack.c.l.bf16 %v849
        %v887 = vunpack.c.h.bf16 %v849
        %v888 = vunpack.c.l.bf16 %v850
        %v889 = vunpack.c.h.bf16 %v850
        %v890 = vunpack.c.l.bf16 %v851
        %v891 = vunpack.c.h.bf16 %v851
        %v892 = vunpack.c.l.bf16 %v852
        %v893 = vunpack.c.h.bf16 %v852
        %v894 = vunpack.c.l.bf16 %v853
        %v895 = vunpack.c.h.bf16 %v853
        %v896 = vunpack.c.l.bf16 %v854
        %v897 = vunpack.c.h.bf16 %v854
        %v898 = vunpack.c.l.bf16 %v855
        %v899 = vunpack.c.h.bf16 %v855
        %v900 = vunpack.c.l.bf16 %v856
        %v901 = vunpack.c.h.bf16 %v856
        %v902 = vunpack.c.l.bf16 %v857
        %v903 = vunpack.c.h.bf16 %v857
        %v904 = vunpack.c.l.bf16 %v858
        %v905 = vunpack.c.h.bf16 %v858
        %v906 = vunpack.c.l.bf16 %v859
        %v907 = vunpack.c.h.bf16 %v859
        %v908 = vunpack.c.l.bf16 %v860
        %v909 = vunpack.c.h.bf16 %v860
        %v910 = vunpack.c.l.bf16 %v861
        %v911 = vunpack.c.h.bf16 %v861
        %v912 = vunpack.c.l.bf16 %v862
        %v913 = vunpack.c.h.bf16 %v862
        %v914 = vunpack.c.l.bf16 %v863
        %v915 = vunpack.c.h.bf16 %v863
        %v916 = vunpack.c.l.bf16 %v864
        %v917 = vunpack.c.h.bf16 %v864
        %v918 = vunpack.c.l.bf16 %v865
        %v919 = vunpack.c.h.bf16 %v865
        %v920 = vunpack.c.l.bf16 %v866
        %v921 = vunpack.c.h.bf16 %v866
        %v922 = vunpack.c.l.bf16 %v867
        %v923 = vunpack.c.h.bf16 %v867
        %v924 = vunpack.c.l.bf16 %v868
        %v925 = vunpack.c.h.bf16 %v868
        %v926 = vunpack.c.l.bf16 %v869
        %v927 = vunpack.c.h.bf16 %v869
        %v928 = vunpack.c.l.bf16 %v870
        %v929 = vunpack.c.h.bf16 %v870
        %v930 = vunpack.c.l.bf16 %v871
        %v931 = vunpack.c.h.bf16 %v871
        %v932 = vunpack.c.l.bf16 %v872
        %v933 = vunpack.c.h.bf16 %v872
        %v934 = vunpack.c.l.bf16 %v873
        %v935 = vunpack.c.h.bf16 %v873
        %v936 = vunpack.c.l.bf16 %v874
        %v937 = vunpack.c.h.bf16 %v874
        %v938 = vunpack.c.l.bf16 %v875
        %v939 = vunpack.c.h.bf16 %v875
        %940 = vxpose.xlu0.c.b16.start [1/8] %v836, 128
        %941 = vxpose.xlu0.c.b16.cont [2/8] 0, 128
        %942 = vxpose.xlu0.c.b16.cont [3/8] 0, 128
        %943 = vxpose.xlu0.c.b16.cont [4/8] 0, 128
        %944 = vxpose.xlu0.c.b16.cont [5/8] 0, 128
        %945 = vxpose.xlu0.c.b16.cont [6/8] 0, 128
        %946 = vxpose.xlu0.c.b16.cont [7/8] 0, 128
        %947 = vxpose.xlu0.c.b16.end [8/8] 0, 128
        %v948 = vpop.trf.xlu0
        %v949 = vpop.trf.xlu0
        %v950 = vpop.trf.xlu0
        %v951 = vpop.trf.xlu0
        %v952 = vpop.trf.xlu0
        %v953 = vpop.trf.xlu0
        %v954 = vpop.trf.xlu0
        %v955 = vpop.trf.xlu0
        %956 = vxpose.xlu0.c.b16.start [1/8] %v837, 128
        %957 = vxpose.xlu0.c.b16.cont [2/8] 0, 128
        %958 = vxpose.xlu0.c.b16.cont [3/8] 0, 128
        %959 = vxpose.xlu0.c.b16.cont [4/8] 0, 128
        %960 = vxpose.xlu0.c.b16.cont [5/8] 0, 128
        %961 = vxpose.xlu0.c.b16.cont [6/8] 0, 128
        %962 = vxpose.xlu0.c.b16.cont [7/8] 0, 128
        %963 = vxpose.xlu0.c.b16.end [8/8] 0, 128
        %v964 = vpop.trf.xlu0
        %v965 = vpop.trf.xlu0
        %v966 = vpop.trf.xlu0
        %v967 = vpop.trf.xlu0
        %v968 = vpop.trf.xlu0
        %v969 = vpop.trf.xlu0
        %v970 = vpop.trf.xlu0
        %v971 = vpop.trf.xlu0
        %vm972 = vcmask 130048
        %v974 = vsel %vm972, %v948, 0
        %v977 = vsel %vm972, %v949, 0
        %v980 = vsel %vm972, %v950, 0
        %v983 = vsel %vm972, %v951, 0
        %v986 = vsel %vm972, %v952, 0
        %v989 = vsel %vm972, %v953, 0
        %v992 = vsel %vm972, %v954, 0
        %v995 = vsel %vm972, %v955, 0
        %v998 = vsel %vm972, %v964, 0
        %v1001 = vsel %vm972, %v965, 0
        %v1004 = vsel %vm972, %v966, 0
        %v1007 = vsel %vm972, %v967, 0
        %v1010 = vsel %vm972, %v968, 0
        %v1013 = vsel %vm972, %v969, 0
        %v1016 = vsel %vm972, %v970, 0
        %v1019 = vsel %vm972, %v971, 0
        %1021 = vmatprep.subr.bf16.mxu0 0
        %1022 = vmatpush1.bf16.msra.mxu0 0
        %1023 = vmatprep.subr.bf16.mxu0 0
        %1024 = vmatpush1.bf16.msra.mxu0 0
        %1025 = vmatprep.subr.bf16.mxu0 0
        %1026 = vmatpush1.bf16.msra.mxu0 0
        %1027 = vmatprep.subr.bf16.mxu0 0
        %1028 = vmatpush1.bf16.msra.mxu0 0
        %1029 = vmatprep.subr.bf16.mxu0 0
        %1030 = vmatpush1.bf16.msra.mxu0 0
        %1031 = vmatprep.subr.bf16.mxu0 0
        %1032 = vmatpush1.bf16.msra.mxu0 0
        %1033 = vmatprep.subr.bf16.mxu0 0
        %1034 = vmatpush1.bf16.msra.mxu0 0
        %1035 = vmatprep.subr.bf16.mxu0 %v839
        %1036 = vmatpush1.bf16.msra.mxu0 %v838
        %1037 = vmatprep.subr.bf16.mxu0 0
        %1038 = vmatpush2.bf16.msra.mxu0 0
        %1039 = vmatprep.subr.bf16.mxu0 0
        %1040 = vmatpush2.bf16.msra.mxu0 0
        %1041 = vmatprep.subr.bf16.mxu0 0
        %1042 = vmatpush2.bf16.msra.mxu0 0
        %1043 = vmatprep.subr.bf16.mxu0 0
        %1044 = vmatpush2.bf16.msra.mxu0 0
        %1045 = vmatprep.subr.bf16.mxu0 0
        %1046 = vmatpush2.bf16.msra.mxu0 0
        %1047 = vmatprep.subr.bf16.mxu0 0
        %1048 = vmatpush2.bf16.msra.mxu0 0
        %1049 = vmatprep.subr.bf16.mxu0 0
        %1050 = vmatpush2.bf16.msra.mxu0 0
        %1051 = vmatprep.subr.bf16.mxu0 0
        %1052 = vmatpush2.bf16.msra.mxu0 0
        %1053 = vmatprep.mubr.bf16.mxu0 0
        %1054 = vmatmul.mubr.bf16.gmra.mxu0 %v974
        %v1055 = vpop.f32.mrf.mxu0
        %v1056 = vadd.f32 %v876, %v1055
        %v1057 = vpop.f32.mrf.mxu0
        %v1058 = vadd.f32 %v877, %v1057
        %v1059 = vpop.f32.mrf.mxu0
        %v1060 = vadd.f32 %v878, %v1059
        %v1061 = vpop.f32.mrf.mxu0
        %v1062 = vadd.f32 %v879, %v1061
        %1063 = vmatprep.mubr.bf16.mxu0 0
        %1064 = vmatmul.mubr.bf16.gmra.mxu0 %v977
        %v1065 = vpop.f32.mrf.mxu0
        %v1066 = vadd.f32 %v880, %v1065
        %v1067 = vpop.f32.mrf.mxu0
        %v1068 = vadd.f32 %v881, %v1067
        %v1069 = vpop.f32.mrf.mxu0
        %v1070 = vadd.f32 %v882, %v1069
        %v1071 = vpop.f32.mrf.mxu0
        %v1072 = vadd.f32 %v883, %v1071
        %1073 = vmatprep.mubr.bf16.mxu0 0
        %1074 = vmatmul.mubr.bf16.gmra.mxu0 %v980
        %v1075 = vpop.f32.mrf.mxu0
        %v1076 = vadd.f32 %v884, %v1075
        %v1077 = vpop.f32.mrf.mxu0
        %v1078 = vadd.f32 %v885, %v1077
        %v1079 = vpop.f32.mrf.mxu0
        %v1080 = vadd.f32 %v886, %v1079
        %v1081 = vpop.f32.mrf.mxu0
        %v1082 = vadd.f32 %v887, %v1081
        %1083 = vmatprep.mubr.bf16.mxu0 0
        %1084 = vmatmul.mubr.bf16.gmra.mxu0 %v983
        %v1085 = vpop.f32.mrf.mxu0
        %v1086 = vadd.f32 %v888, %v1085
        %v1087 = vpop.f32.mrf.mxu0
        %v1088 = vadd.f32 %v889, %v1087
        %v1089 = vpop.f32.mrf.mxu0
        %v1090 = vadd.f32 %v890, %v1089
        %v1091 = vpop.f32.mrf.mxu0
        %v1092 = vadd.f32 %v891, %v1091
        %1093 = vmatprep.mubr.bf16.mxu0 0
        %1094 = vmatmul.mubr.bf16.gmra.mxu0 %v986
        %v1095 = vpop.f32.mrf.mxu0
        %v1096 = vadd.f32 %v892, %v1095
        %v1097 = vpop.f32.mrf.mxu0
        %v1098 = vadd.f32 %v893, %v1097
        %v1099 = vpop.f32.mrf.mxu0
        %v1100 = vadd.f32 %v894, %v1099
        %v1101 = vpop.f32.mrf.mxu0
        %v1102 = vadd.f32 %v895, %v1101
        %1103 = vmatprep.mubr.bf16.mxu0 0
        %1104 = vmatmul.mubr.bf16.gmra.mxu0 %v989
        %v1105 = vpop.f32.mrf.mxu0
        %v1106 = vadd.f32 %v896, %v1105
        %v1107 = vpop.f32.mrf.mxu0
        %v1108 = vadd.f32 %v897, %v1107
        %v1109 = vpop.f32.mrf.mxu0
        %v1110 = vadd.f32 %v898, %v1109
        %v1111 = vpop.f32.mrf.mxu0
        %v1112 = vadd.f32 %v899, %v1111
        %1113 = vmatprep.mubr.bf16.mxu0 0
        %1114 = vmatmul.mubr.bf16.gmra.mxu0 %v992
        %v1115 = vpop.f32.mrf.mxu0
        %v1116 = vadd.f32 %v900, %v1115
        %v1117 = vpop.f32.mrf.mxu0
        %v1118 = vadd.f32 %v901, %v1117
        %v1119 = vpop.f32.mrf.mxu0
        %v1120 = vadd.f32 %v902, %v1119
        %v1121 = vpop.f32.mrf.mxu0
        %v1122 = vadd.f32 %v903, %v1121
        %1123 = vmatprep.mubr.bf16.mxu0 0
        %1124 = vmatmul.mubr.bf16.gmra.mxu0 %v995
        %v1125 = vpop.f32.mrf.mxu0
        %v1126 = vadd.f32 %v904, %v1125
        %v1127 = vpop.f32.mrf.mxu0
        %v1128 = vadd.f32 %v905, %v1127
        %v1129 = vpop.f32.mrf.mxu0
        %v1130 = vadd.f32 %v906, %v1129
        %v1131 = vpop.f32.mrf.mxu0
        %v1132 = vadd.f32 %v907, %v1131
        %1133 = vmatprep.mubr.bf16.mxu0 0
        %1134 = vmatmul.mubr.bf16.gmra.mxu0 %v998
        %v1135 = vpop.f32.mrf.mxu0
        %v1136 = vadd.f32 %v908, %v1135
        %v1137 = vpop.f32.mrf.mxu0
        %v1138 = vadd.f32 %v909, %v1137
        %v1139 = vpop.f32.mrf.mxu0
        %v1140 = vadd.f32 %v910, %v1139
        %v1141 = vpop.f32.mrf.mxu0
        %v1142 = vadd.f32 %v911, %v1141
        %1143 = vmatprep.mubr.bf16.mxu0 0
        %1144 = vmatmul.mubr.bf16.gmra.mxu0 %v1001
        %v1145 = vpop.f32.mrf.mxu0
        %v1146 = vadd.f32 %v912, %v1145
        %v1147 = vpop.f32.mrf.mxu0
        %v1148 = vadd.f32 %v913, %v1147
        %v1149 = vpop.f32.mrf.mxu0
        %v1150 = vadd.f32 %v914, %v1149
        %v1151 = vpop.f32.mrf.mxu0
        %v1152 = vadd.f32 %v915, %v1151
        %1153 = vmatprep.mubr.bf16.mxu0 0
        %1154 = vmatmul.mubr.bf16.gmra.mxu0 %v1004
        %v1155 = vpop.f32.mrf.mxu0
        %v1156 = vadd.f32 %v916, %v1155
        %v1157 = vpop.f32.mrf.mxu0
        %v1158 = vadd.f32 %v917, %v1157
        %v1159 = vpop.f32.mrf.mxu0
        %v1160 = vadd.f32 %v918, %v1159
        %v1161 = vpop.f32.mrf.mxu0
        %v1162 = vadd.f32 %v919, %v1161
        %1163 = vmatprep.mubr.bf16.mxu0 0
        %1164 = vmatmul.mubr.bf16.gmra.mxu0 %v1007
        %v1165 = vpop.f32.mrf.mxu0
        %v1166 = vadd.f32 %v920, %v1165
        %v1167 = vpop.f32.mrf.mxu0
        %v1168 = vadd.f32 %v921, %v1167
        %v1169 = vpop.f32.mrf.mxu0
        %v1170 = vadd.f32 %v922, %v1169
        %v1171 = vpop.f32.mrf.mxu0
        %v1172 = vadd.f32 %v923, %v1171
        %1173 = vmatprep.mubr.bf16.mxu0 0
        %1174 = vmatmul.mubr.bf16.gmra.mxu0 %v1010
        %v1175 = vpop.f32.mrf.mxu0
        %v1176 = vadd.f32 %v924, %v1175
        %v1177 = vpop.f32.mrf.mxu0
        %v1178 = vadd.f32 %v925, %v1177
        %v1179 = vpop.f32.mrf.mxu0
        %v1180 = vadd.f32 %v926, %v1179
        %v1181 = vpop.f32.mrf.mxu0
        %v1182 = vadd.f32 %v927, %v1181
        %1183 = vmatprep.mubr.bf16.mxu0 0
        %1184 = vmatmul.mubr.bf16.gmra.mxu0 %v1013
        %v1185 = vpop.f32.mrf.mxu0
        %v1186 = vadd.f32 %v928, %v1185
        %v1187 = vpop.f32.mrf.mxu0
        %v1188 = vadd.f32 %v929, %v1187
        %v1189 = vpop.f32.mrf.mxu0
        %v1190 = vadd.f32 %v930, %v1189
        %v1191 = vpop.f32.mrf.mxu0
        %v1192 = vadd.f32 %v931, %v1191
        %1193 = vmatprep.mubr.bf16.mxu0 0
        %1194 = vmatmul.mubr.bf16.gmra.mxu0 %v1016
        %v1195 = vpop.f32.mrf.mxu0
        %v1196 = vadd.f32 %v932, %v1195
        %v1197 = vpop.f32.mrf.mxu0
        %v1198 = vadd.f32 %v933, %v1197
        %v1199 = vpop.f32.mrf.mxu0
        %v1200 = vadd.f32 %v934, %v1199
        %v1201 = vpop.f32.mrf.mxu0
        %v1202 = vadd.f32 %v935, %v1201
        %1203 = vmatprep.mubr.bf16.mxu0 0
        %1204 = vmatmul.mubr.bf16.gmra.mxu0 %v1019
        %v1205 = vpop.f32.mrf.mxu0
        %v1206 = vadd.f32 %v936, %v1205
        %v1207 = vpop.f32.mrf.mxu0
        %v1208 = vadd.f32 %v937, %v1207
        %v1209 = vpop.f32.mrf.mxu0
        %v1210 = vadd.f32 %v938, %v1209
        %v1211 = vpop.f32.mrf.mxu0
        %v1212 = vadd.f32 %v939, %v1211
        %1213 = vdwg.mxu0
        %v1214 = vmax.f32 %v1056, %v1058
        %1215 = vmax.xlane.f32.xlu0 %v1214
        %v1216 = vpop.xlane.xlu0 %1215
        %v1217 = vmax.f32 %v1060, %v1062
        %1218 = vmax.xlane.f32.xlu0 %v1217
        %v1219 = vpop.xlane.xlu0 %1218
        %v1220 = vmax.f32 %v1066, %v1068
        %1221 = vmax.xlane.f32.xlu0 %v1220
        %v1222 = vpop.xlane.xlu0 %1221
        %v1223 = vmax.f32 %v1070, %v1072
        %1224 = vmax.xlane.f32.xlu0 %v1223
        %v1225 = vpop.xlane.xlu0 %1224
        %v1226 = vmax.f32 %v1076, %v1078
        %1227 = vmax.xlane.f32.xlu0 %v1226
        %v1228 = vpop.xlane.xlu0 %1227
        %v1229 = vmax.f32 %v1080, %v1082
        %1230 = vmax.xlane.f32.xlu0 %v1229
        %v1231 = vpop.xlane.xlu0 %1230
        %v1232 = vmax.f32 %v1086, %v1088
        %1233 = vmax.xlane.f32.xlu0 %v1232
        %v1234 = vpop.xlane.xlu0 %1233
        %v1235 = vmax.f32 %v1090, %v1092
        %1236 = vmax.xlane.f32.xlu0 %v1235
        %v1237 = vpop.xlane.xlu0 %1236
        %v1238 = vmax.f32 %v1096, %v1098
        %1239 = vmax.xlane.f32.xlu0 %v1238
        %v1240 = vpop.xlane.xlu0 %1239
        %v1241 = vmax.f32 %v1100, %v1102
        %1242 = vmax.xlane.f32.xlu0 %v1241
        %v1243 = vpop.xlane.xlu0 %1242
        %v1244 = vmax.f32 %v1106, %v1108
        %1245 = vmax.xlane.f32.xlu0 %v1244
        %v1246 = vpop.xlane.xlu0 %1245
        %v1247 = vmax.f32 %v1110, %v1112
        %1248 = vmax.xlane.f32.xlu0 %v1247
        %v1249 = vpop.xlane.xlu0 %1248
        %v1250 = vmax.f32 %v1116, %v1118
        %1251 = vmax.xlane.f32.xlu0 %v1250
        %v1252 = vpop.xlane.xlu0 %1251
        %v1253 = vmax.f32 %v1120, %v1122
        %1254 = vmax.xlane.f32.xlu0 %v1253
        %v1255 = vpop.xlane.xlu0 %1254
        %v1256 = vmax.f32 %v1126, %v1128
        %1257 = vmax.xlane.f32.xlu0 %v1256
        %v1258 = vpop.xlane.xlu0 %1257
        %v1259 = vmax.f32 %v1130, %v1132
        %1260 = vmax.xlane.f32.xlu0 %v1259
        %v1261 = vpop.xlane.xlu0 %1260
        %v1262 = vmax.f32 %v1136, %v1138
        %1263 = vmax.xlane.f32.xlu0 %v1262
        %v1264 = vpop.xlane.xlu0 %1263
        %v1265 = vmax.f32 %v1140, %v1142
        %1266 = vmax.xlane.f32.xlu0 %v1265
        %v1267 = vpop.xlane.xlu0 %1266
        %v1268 = vmax.f32 %v1146, %v1148
        %1269 = vmax.xlane.f32.xlu0 %v1268
        %v1270 = vpop.xlane.xlu0 %1269
        %v1271 = vmax.f32 %v1150, %v1152
        %1272 = vmax.xlane.f32.xlu0 %v1271
        %v1273 = vpop.xlane.xlu0 %1272
        %v1274 = vmax.f32 %v1156, %v1158
        %1275 = vmax.xlane.f32.xlu0 %v1274
        %v1276 = vpop.xlane.xlu0 %1275
        %v1277 = vmax.f32 %v1160, %v1162
        %1278 = vmax.xlane.f32.xlu0 %v1277
        %v1279 = vpop.xlane.xlu0 %1278
        %v1280 = vmax.f32 %v1166, %v1168
        %1281 = vmax.xlane.f32.xlu0 %v1280
        %v1282 = vpop.xlane.xlu0 %1281
        %v1283 = vmax.f32 %v1170, %v1172
        %1284 = vmax.xlane.f32.xlu0 %v1283
        %v1285 = vpop.xlane.xlu0 %1284
        %v1286 = vmax.f32 %v1176, %v1178
        %1287 = vmax.xlane.f32.xlu0 %v1286
        %v1288 = vpop.xlane.xlu0 %1287
        %v1289 = vmax.f32 %v1180, %v1182
        %1290 = vmax.xlane.f32.xlu0 %v1289
        %v1291 = vpop.xlane.xlu0 %1290
        %v1292 = vmax.f32 %v1186, %v1188
        %1293 = vmax.xlane.f32.xlu0 %v1292
        %v1294 = vpop.xlane.xlu0 %1293
        %v1295 = vmax.f32 %v1190, %v1192
        %1296 = vmax.xlane.f32.xlu0 %v1295
        %v1297 = vpop.xlane.xlu0 %1296
        %v1298 = vmax.f32 %v1196, %v1198
        %1299 = vmax.xlane.f32.xlu0 %v1298
        %v1300 = vpop.xlane.xlu0 %1299
        %v1301 = vmax.f32 %v1200, %v1202
        %1302 = vmax.xlane.f32.xlu0 %v1301
        %v1303 = vpop.xlane.xlu0 %1302
        %v1304 = vmax.f32 %v1206, %v1208
        %1305 = vmax.xlane.f32.xlu0 %v1304
        %v1306 = vpop.xlane.xlu0 %1305
        %v1307 = vmax.f32 %v1210, %v1212
        %1308 = vmax.xlane.f32.xlu0 %v1307
        %v1309 = vpop.xlane.xlu0 %1308
        %v1310 = vsub.f32 %v1056, %v1216
        %v1311 = vsub.f32 %v1058, %v1216
        %v1312 = vsub.f32 %v1060, %v1219
        %v1313 = vsub.f32 %v1062, %v1219
        %v1314 = vsub.f32 %v1066, %v1222
        %v1315 = vsub.f32 %v1068, %v1222
        %v1316 = vsub.f32 %v1070, %v1225
        %v1317 = vsub.f32 %v1072, %v1225
        %v1318 = vsub.f32 %v1076, %v1228
        %v1319 = vsub.f32 %v1078, %v1228
        %v1320 = vsub.f32 %v1080, %v1231
        %v1321 = vsub.f32 %v1082, %v1231
        %v1322 = vsub.f32 %v1086, %v1234
        %v1323 = vsub.f32 %v1088, %v1234
        %v1324 = vsub.f32 %v1090, %v1237
        %v1325 = vsub.f32 %v1092, %v1237
        %v1326 = vsub.f32 %v1096, %v1240
        %v1327 = vsub.f32 %v1098, %v1240
        %v1328 = vsub.f32 %v1100, %v1243
        %v1329 = vsub.f32 %v1102, %v1243
        %v1330 = vsub.f32 %v1106, %v1246
        %v1331 = vsub.f32 %v1108, %v1246
        %v1332 = vsub.f32 %v1110, %v1249
        %v1333 = vsub.f32 %v1112, %v1249
        %v1334 = vsub.f32 %v1116, %v1252
        %v1335 = vsub.f32 %v1118, %v1252
        %v1336 = vsub.f32 %v1120, %v1255
        %v1337 = vsub.f32 %v1122, %v1255
        %v1338 = vsub.f32 %v1126, %v1258
        %v1339 = vsub.f32 %v1128, %v1258
        %v1340 = vsub.f32 %v1130, %v1261
        %v1341 = vsub.f32 %v1132, %v1261
        %v1342 = vsub.f32 %v1136, %v1264
        %v1343 = vsub.f32 %v1138, %v1264
        %v1344 = vsub.f32 %v1140, %v1267
        %v1345 = vsub.f32 %v1142, %v1267
        %v1346 = vsub.f32 %v1146, %v1270
        %v1347 = vsub.f32 %v1148, %v1270
        %v1348 = vsub.f32 %v1150, %v1273
        %v1349 = vsub.f32 %v1152, %v1273
        %v1350 = vsub.f32 %v1156, %v1276
        %v1351 = vsub.f32 %v1158, %v1276
        %v1352 = vsub.f32 %v1160, %v1279
        %v1353 = vsub.f32 %v1162, %v1279
        %v1354 = vsub.f32 %v1166, %v1282
        %v1355 = vsub.f32 %v1168, %v1282
        %v1356 = vsub.f32 %v1170, %v1285
        %v1357 = vsub.f32 %v1172, %v1285
        %v1358 = vsub.f32 %v1176, %v1288
        %v1359 = vsub.f32 %v1178, %v1288
        %v1360 = vsub.f32 %v1180, %v1291
        %v1361 = vsub.f32 %v1182, %v1291
        %v1362 = vsub.f32 %v1186, %v1294
        %v1363 = vsub.f32 %v1188, %v1294
        %v1364 = vsub.f32 %v1190, %v1297
        %v1365 = vsub.f32 %v1192, %v1297
        %v1366 = vsub.f32 %v1196, %v1300
        %v1367 = vsub.f32 %v1198, %v1300
        %v1368 = vsub.f32 %v1200, %v1303
        %v1369 = vsub.f32 %v1202, %v1303
        %v1370 = vsub.f32 %v1206, %v1306
        %v1371 = vsub.f32 %v1208, %v1306
        %v1372 = vsub.f32 %v1210, %v1309
        %v1373 = vsub.f32 %v1212, %v1309
        %v1374 = vmul.f32 %v1310, 1.442695
        %v1375 = vpow.pop %v1374
        %v1376 = vmul.f32 %v1311, 1.442695
        %v1377 = vpow.pop %v1376
        %v1378 = vmul.f32 %v1312, 1.442695
        %v1379 = vpow.pop %v1378
        %v1380 = vmul.f32 %v1313, 1.442695
        %v1381 = vpow.pop %v1380
        %v1382 = vmul.f32 %v1314, 1.442695
        %v1383 = vpow.pop %v1382
        %v1384 = vmul.f32 %v1315, 1.442695
        %v1385 = vpow.pop %v1384
        %v1386 = vmul.f32 %v1316, 1.442695
        %v1387 = vpow.pop %v1386
        %v1388 = vmul.f32 %v1317, 1.442695
        %v1389 = vpow.pop %v1388
        %v1390 = vmul.f32 %v1318, 1.442695
        %v1391 = vpow.pop %v1390
        %v1392 = vmul.f32 %v1319, 1.442695
        %v1393 = vpow.pop %v1392
        %v1394 = vmul.f32 %v1320, 1.442695
        %v1395 = vpow.pop %v1394
        %v1396 = vmul.f32 %v1321, 1.442695
        %v1397 = vpow.pop %v1396
        %v1398 = vmul.f32 %v1322, 1.442695
        %v1399 = vpow.pop %v1398
        %v1400 = vmul.f32 %v1323, 1.442695
        %v1401 = vpow.pop %v1400
        %v1402 = vmul.f32 %v1324, 1.442695
        %v1403 = vpow.pop %v1402
        %v1404 = vmul.f32 %v1325, 1.442695
        %v1405 = vpow.pop %v1404
        %v1406 = vmul.f32 %v1326, 1.442695
        %v1407 = vpow.pop %v1406
        %v1408 = vmul.f32 %v1327, 1.442695
        %v1409 = vpow.pop %v1408
        %v1410 = vmul.f32 %v1328, 1.442695
        %v1411 = vpow.pop %v1410
        %v1412 = vmul.f32 %v1329, 1.442695
        %v1413 = vpow.pop %v1412
        %v1414 = vmul.f32 %v1330, 1.442695
        %v1415 = vpow.pop %v1414
        %v1416 = vmul.f32 %v1331, 1.442695
        %v1417 = vpow.pop %v1416
        %v1418 = vmul.f32 %v1332, 1.442695
        %v1419 = vpow.pop %v1418
        %v1420 = vmul.f32 %v1333, 1.442695
        %v1421 = vpow.pop %v1420
        %v1422 = vmul.f32 %v1334, 1.442695
        %v1423 = vpow.pop %v1422
        %v1424 = vmul.f32 %v1335, 1.442695
        %v1425 = vpow.pop %v1424
        %v1426 = vmul.f32 %v1336, 1.442695
        %v1427 = vpow.pop %v1426
        %v1428 = vmul.f32 %v1337, 1.442695
        %v1429 = vpow.pop %v1428
        %v1430 = vmul.f32 %v1338, 1.442695
        %v1431 = vpow.pop %v1430
        %v1432 = vmul.f32 %v1339, 1.442695
        %v1433 = vpow.pop %v1432
        %v1434 = vmul.f32 %v1340, 1.442695
        %v1435 = vpow.pop %v1434
        %v1436 = vmul.f32 %v1341, 1.442695
        %v1437 = vpow.pop %v1436
        %v1438 = vmul.f32 %v1342, 1.442695
        %v1439 = vpow.pop %v1438
        %v1440 = vmul.f32 %v1343, 1.442695
        %v1441 = vpow.pop %v1440
        %v1442 = vmul.f32 %v1344, 1.442695
        %v1443 = vpow.pop %v1442
        %v1444 = vmul.f32 %v1345, 1.442695
        %v1445 = vpow.pop %v1444
        %v1446 = vmul.f32 %v1346, 1.442695
        %v1447 = vpow.pop %v1446
        %v1448 = vmul.f32 %v1347, 1.442695
        %v1449 = vpow.pop %v1448
        %v1450 = vmul.f32 %v1348, 1.442695
        %v1451 = vpow.pop %v1450
        %v1452 = vmul.f32 %v1349, 1.442695
        %v1453 = vpow.pop %v1452
        %v1454 = vmul.f32 %v1350, 1.442695
        %v1455 = vpow.pop %v1454
        %v1456 = vmul.f32 %v1351, 1.442695
        %v1457 = vpow.pop %v1456
        %v1458 = vmul.f32 %v1352, 1.442695
        %v1459 = vpow.pop %v1458
        %v1460 = vmul.f32 %v1353, 1.442695
        %v1461 = vpow.pop %v1460
        %v1462 = vmul.f32 %v1354, 1.442695
        %v1463 = vpow.pop %v1462
        %v1464 = vmul.f32 %v1355, 1.442695
        %v1465 = vpow.pop %v1464
        %v1466 = vmul.f32 %v1356, 1.442695
        %v1467 = vpow.pop %v1466
        %v1468 = vmul.f32 %v1357, 1.442695
        %v1469 = vpow.pop %v1468
        %v1470 = vmul.f32 %v1358, 1.442695
        %v1471 = vpow.pop %v1470
        %v1472 = vmul.f32 %v1359, 1.442695
        %v1473 = vpow.pop %v1472
        %v1474 = vmul.f32 %v1360, 1.442695
        %v1475 = vpow.pop %v1474
        %v1476 = vmul.f32 %v1361, 1.442695
        %v1477 = vpow.pop %v1476
        %v1478 = vmul.f32 %v1362, 1.442695
        %v1479 = vpow.pop %v1478
        %v1480 = vmul.f32 %v1363, 1.442695
        %v1481 = vpow.pop %v1480
        %v1482 = vmul.f32 %v1364, 1.442695
        %v1483 = vpow.pop %v1482
        %v1484 = vmul.f32 %v1365, 1.442695
        %v1485 = vpow.pop %v1484
        %v1486 = vmul.f32 %v1366, 1.442695
        %v1487 = vpow.pop %v1486
        %v1488 = vmul.f32 %v1367, 1.442695
        %v1489 = vpow.pop %v1488
        %v1490 = vmul.f32 %v1368, 1.442695
        %v1491 = vpow.pop %v1490
        %v1492 = vmul.f32 %v1369, 1.442695
        %v1493 = vpow.pop %v1492
        %v1494 = vmul.f32 %v1370, 1.442695
        %v1495 = vpow.pop %v1494
        %v1496 = vmul.f32 %v1371, 1.442695
        %v1497 = vpow.pop %v1496
        %v1498 = vmul.f32 %v1372, 1.442695
        %v1499 = vpow.pop %v1498
        %v1500 = vmul.f32 %v1373, 1.442695
        %v1501 = vpow.pop %v1500
        %v1502 = vadd.f32 %v1375, %v1377
        %1503 = vadd.xlane.f32.xlu0 %v1502
        %v1504 = vpop.xlane.xlu0 %1503
        %v1505 = vadd.f32 %v1379, %v1381
        %1506 = vadd.xlane.f32.xlu0 %v1505
        %v1507 = vpop.xlane.xlu0 %1506
        %v1508 = vadd.f32 %v1383, %v1385
        %1509 = vadd.xlane.f32.xlu0 %v1508
        %v1510 = vpop.xlane.xlu0 %1509
        %v1511 = vadd.f32 %v1387, %v1389
        %1512 = vadd.xlane.f32.xlu0 %v1511
        %v1513 = vpop.xlane.xlu0 %1512
        %v1514 = vadd.f32 %v1391, %v1393
        %1515 = vadd.xlane.f32.xlu0 %v1514
        %v1516 = vpop.xlane.xlu0 %1515
        %v1517 = vadd.f32 %v1395, %v1397
        %1518 = vadd.xlane.f32.xlu0 %v1517
        %v1519 = vpop.xlane.xlu0 %1518
        %v1520 = vadd.f32 %v1399, %v1401
        %1521 = vadd.xlane.f32.xlu0 %v1520
        %v1522 = vpop.xlane.xlu0 %1521
        %v1523 = vadd.f32 %v1403, %v1405
        %1524 = vadd.xlane.f32.xlu0 %v1523
        %v1525 = vpop.xlane.xlu0 %1524
        %v1526 = vadd.f32 %v1407, %v1409
        %1527 = vadd.xlane.f32.xlu0 %v1526
        %v1528 = vpop.xlane.xlu0 %1527
        %v1529 = vadd.f32 %v1411, %v1413
        %1530 = vadd.xlane.f32.xlu0 %v1529
        %v1531 = vpop.xlane.xlu0 %1530
        %v1532 = vadd.f32 %v1415, %v1417
        %1533 = vadd.xlane.f32.xlu0 %v1532
        %v1534 = vpop.xlane.xlu0 %1533
        %v1535 = vadd.f32 %v1419, %v1421
        %1536 = vadd.xlane.f32.xlu0 %v1535
        %v1537 = vpop.xlane.xlu0 %1536
        %v1538 = vadd.f32 %v1423, %v1425
        %1539 = vadd.xlane.f32.xlu0 %v1538
        %v1540 = vpop.xlane.xlu0 %1539
        %v1541 = vadd.f32 %v1427, %v1429
        %1542 = vadd.xlane.f32.xlu0 %v1541
        %v1543 = vpop.xlane.xlu0 %1542
        %v1544 = vadd.f32 %v1431, %v1433
        %1545 = vadd.xlane.f32.xlu0 %v1544
        %v1546 = vpop.xlane.xlu0 %1545
        %v1547 = vadd.f32 %v1435, %v1437
        %1548 = vadd.xlane.f32.xlu0 %v1547
        %v1549 = vpop.xlane.xlu0 %1548
        %v1550 = vadd.f32 %v1439, %v1441
        %1551 = vadd.xlane.f32.xlu0 %v1550
        %v1552 = vpop.xlane.xlu0 %1551
        %v1553 = vadd.f32 %v1443, %v1445
        %1554 = vadd.xlane.f32.xlu0 %v1553
        %v1555 = vpop.xlane.xlu0 %1554
        %v1556 = vadd.f32 %v1447, %v1449
        %1557 = vadd.xlane.f32.xlu0 %v1556
        %v1558 = vpop.xlane.xlu0 %1557
        %v1559 = vadd.f32 %v1451, %v1453
        %1560 = vadd.xlane.f32.xlu0 %v1559
        %v1561 = vpop.xlane.xlu0 %1560
        %v1562 = vadd.f32 %v1455, %v1457
        %1563 = vadd.xlane.f32.xlu0 %v1562
        %v1564 = vpop.xlane.xlu0 %1563
        %v1565 = vadd.f32 %v1459, %v1461
        %1566 = vadd.xlane.f32.xlu0 %v1565
        %v1567 = vpop.xlane.xlu0 %1566
        %v1568 = vadd.f32 %v1463, %v1465
        %1569 = vadd.xlane.f32.xlu0 %v1568
        %v1570 = vpop.xlane.xlu0 %1569
        %v1571 = vadd.f32 %v1467, %v1469
        %1572 = vadd.xlane.f32.xlu0 %v1571
        %v1573 = vpop.xlane.xlu0 %1572
        %v1574 = vadd.f32 %v1471, %v1473
        %1575 = vadd.xlane.f32.xlu0 %v1574
        %v1576 = vpop.xlane.xlu0 %1575
        %v1577 = vadd.f32 %v1475, %v1477
        %1578 = vadd.xlane.f32.xlu0 %v1577
        %v1579 = vpop.xlane.xlu0 %1578
        %v1580 = vadd.f32 %v1479, %v1481
        %1581 = vadd.xlane.f32.xlu0 %v1580
        %v1582 = vpop.xlane.xlu0 %1581
        %v1583 = vadd.f32 %v1483, %v1485
        %1584 = vadd.xlane.f32.xlu0 %v1583
        %v1585 = vpop.xlane.xlu0 %1584
        %v1586 = vadd.f32 %v1487, %v1489
        %1587 = vadd.xlane.f32.xlu0 %v1586
        %v1588 = vpop.xlane.xlu0 %1587
        %v1589 = vadd.f32 %v1491, %v1493
        %1590 = vadd.xlane.f32.xlu0 %v1589
        %v1591 = vpop.xlane.xlu0 %1590
        %v1592 = vadd.f32 %v1495, %v1497
        %1593 = vadd.xlane.f32.xlu0 %v1592
        %v1594 = vpop.xlane.xlu0 %1593
        %v1595 = vadd.f32 %v1499, %v1501
        %1596 = vadd.xlane.f32.xlu0 %v1595
        %v1597 = vpop.xlane.xlu0 %1596
        %v1598 = vrcp.pop %v1504
        %v1599 = vrcp.pop %v1507
        %v1600 = vrcp.pop %v1510
        %v1601 = vrcp.pop %v1513
        %v1602 = vrcp.pop %v1516
        %v1603 = vrcp.pop %v1519
        %v1604 = vrcp.pop %v1522
        %v1605 = vrcp.pop %v1525
        %v1606 = vrcp.pop %v1528
        %v1607 = vrcp.pop %v1531
        %v1608 = vrcp.pop %v1534
        %v1609 = vrcp.pop %v1537
        %v1610 = vrcp.pop %v1540
        %v1611 = vrcp.pop %v1543
        %v1612 = vrcp.pop %v1546
        %v1613 = vrcp.pop %v1549
        %v1614 = vrcp.pop %v1552
        %v1615 = vrcp.pop %v1555
        %v1616 = vrcp.pop %v1558
        %v1617 = vrcp.pop %v1561
        %v1618 = vrcp.pop %v1564
        %v1619 = vrcp.pop %v1567
        %v1620 = vrcp.pop %v1570
        %v1621 = vrcp.pop %v1573
        %v1622 = vrcp.pop %v1576
        %v1623 = vrcp.pop %v1579
        %v1624 = vrcp.pop %v1582
        %v1625 = vrcp.pop %v1585
        %v1626 = vrcp.pop %v1588
        %v1627 = vrcp.pop %v1591
        %v1628 = vrcp.pop %v1594
        %v1629 = vrcp.pop %v1597
        %v1630 = vmul.f32 %v1375, %v1598
        %v1631 = vmul.f32 %v1377, %v1598
        %v1632 = vmul.f32 %v1379, %v1599
        %v1633 = vmul.f32 %v1381, %v1599
        %v1634 = vmul.f32 %v1383, %v1600
        %v1635 = vmul.f32 %v1385, %v1600
        %v1636 = vmul.f32 %v1387, %v1601
        %v1637 = vmul.f32 %v1389, %v1601
        %v1638 = vmul.f32 %v1391, %v1602
        %v1639 = vmul.f32 %v1393, %v1602
        %v1640 = vmul.f32 %v1395, %v1603
        %v1641 = vmul.f32 %v1397, %v1603
        %v1642 = vmul.f32 %v1399, %v1604
        %v1643 = vmul.f32 %v1401, %v1604
        %v1644 = vmul.f32 %v1403, %v1605
        %v1645 = vmul.f32 %v1405, %v1605
        %v1646 = vmul.f32 %v1407, %v1606
        %v1647 = vmul.f32 %v1409, %v1606
        %v1648 = vmul.f32 %v1411, %v1607
        %v1649 = vmul.f32 %v1413, %v1607
        %v1650 = vmul.f32 %v1415, %v1608
        %v1651 = vmul.f32 %v1417, %v1608
        %v1652 = vmul.f32 %v1419, %v1609
        %v1653 = vmul.f32 %v1421, %v1609
        %v1654 = vmul.f32 %v1423, %v1610
        %v1655 = vmul.f32 %v1425, %v1610
        %v1656 = vmul.f32 %v1427, %v1611
        %v1657 = vmul.f32 %v1429, %v1611
        %v1658 = vmul.f32 %v1431, %v1612
        %v1659 = vmul.f32 %v1433, %v1612
        %v1660 = vmul.f32 %v1435, %v1613
        %v1661 = vmul.f32 %v1437, %v1613
        %v1662 = vmul.f32 %v1439, %v1614
        %v1663 = vmul.f32 %v1441, %v1614
        %v1664 = vmul.f32 %v1443, %v1615
        %v1665 = vmul.f32 %v1445, %v1615
        %v1666 = vmul.f32 %v1447, %v1616
        %v1667 = vmul.f32 %v1449, %v1616
        %v1668 = vmul.f32 %v1451, %v1617
        %v1669 = vmul.f32 %v1453, %v1617
        %v1670 = vmul.f32 %v1455, %v1618
        %v1671 = vmul.f32 %v1457, %v1618
        %v1672 = vmul.f32 %v1459, %v1619
        %v1673 = vmul.f32 %v1461, %v1619
        %v1674 = vmul.f32 %v1463, %v1620
        %v1675 = vmul.f32 %v1465, %v1620
        %v1676 = vmul.f32 %v1467, %v1621
        %v1677 = vmul.f32 %v1469, %v1621
        %v1678 = vmul.f32 %v1471, %v1622
        %v1679 = vmul.f32 %v1473, %v1622
        %v1680 = vmul.f32 %v1475, %v1623
        %v1681 = vmul.f32 %v1477, %v1623
        %v1682 = vmul.f32 %v1479, %v1624
        %v1683 = vmul.f32 %v1481, %v1624
        %v1684 = vmul.f32 %v1483, %v1625
        %v1685 = vmul.f32 %v1485, %v1625
        %v1686 = vmul.f32 %v1487, %v1626
        %v1687 = vmul.f32 %v1489, %v1626
        %v1688 = vmul.f32 %v1491, %v1627
        %v1689 = vmul.f32 %v1493, %v1627
        %v1690 = vmul.f32 %v1495, %v1628
        %v1691 = vmul.f32 %v1497, %v1628
        %v1692 = vmul.f32 %v1499, %v1629
        %v1693 = vmul.f32 %v1501, %v1629
        %v1694 = vpack.c.bf16 %v1632, %v1630
        %v1695 = vpack.c.bf16 %v1633, %v1631
        %v1696 = vpack.c.bf16 %v1636, %v1634
        %v1697 = vpack.c.bf16 %v1637, %v1635
        %v1698 = vpack.c.bf16 %v1640, %v1638
        %v1699 = vpack.c.bf16 %v1641, %v1639
        %v1700 = vpack.c.bf16 %v1644, %v1642
        %v1701 = vpack.c.bf16 %v1645, %v1643
        %v1702 = vpack.c.bf16 %v1648, %v1646
        %v1703 = vpack.c.bf16 %v1649, %v1647
        %v1704 = vpack.c.bf16 %v1652, %v1650
        %v1705 = vpack.c.bf16 %v1653, %v1651
        %v1706 = vpack.c.bf16 %v1656, %v1654
        %v1707 = vpack.c.bf16 %v1657, %v1655
        %v1708 = vpack.c.bf16 %v1660, %v1658
        %v1709 = vpack.c.bf16 %v1661, %v1659
        %v1710 = vpack.c.bf16 %v1664, %v1662
        %v1711 = vpack.c.bf16 %v1665, %v1663
        %v1712 = vpack.c.bf16 %v1668, %v1666
        %v1713 = vpack.c.bf16 %v1669, %v1667
        %v1714 = vpack.c.bf16 %v1672, %v1670
        %v1715 = vpack.c.bf16 %v1673, %v1671
        %v1716 = vpack.c.bf16 %v1676, %v1674
        %v1717 = vpack.c.bf16 %v1677, %v1675
        %v1718 = vpack.c.bf16 %v1680, %v1678
        %v1719 = vpack.c.bf16 %v1681, %v1679
        %v1720 = vpack.c.bf16 %v1684, %v1682
        %v1721 = vpack.c.bf16 %v1685, %v1683
        %v1722 = vpack.c.bf16 %v1688, %v1686
        %v1723 = vpack.c.bf16 %v1689, %v1687
        %v1724 = vpack.c.bf16 %v1692, %v1690
        %v1725 = vpack.c.bf16 %v1693, %v1691
        %1726 = vmatprep.subr.bf16.mxu0 %v1709
        %1727 = vmatpush1.bf16.xpose.msra.mxu0 %v1708
        %1728 = vmatprep.subr.bf16.mxu0 %v1707
        %1729 = vmatpush1.bf16.xpose.msra.mxu0 %v1706
        %1730 = vmatprep.subr.bf16.mxu0 %v1705
        %1731 = vmatpush1.bf16.xpose.msra.mxu0 %v1704
        %1732 = vmatprep.subr.bf16.mxu0 %v1703
        %1733 = vmatpush1.bf16.xpose.msra.mxu0 %v1702
        %1734 = vmatprep.subr.bf16.mxu0 %v1701
        %1735 = vmatpush1.bf16.xpose.msra.mxu0 %v1700
        %1736 = vmatprep.subr.bf16.mxu0 %v1699
        %1737 = vmatpush1.bf16.xpose.msra.mxu0 %v1698
        %1738 = vmatprep.subr.bf16.mxu0 %v1697
        %1739 = vmatpush1.bf16.xpose.msra.mxu0 %v1696
        %1740 = vmatprep.subr.bf16.mxu0 %v1695
        %1741 = vmatpush1.bf16.xpose.msra.mxu0 %v1694
        %1742 = vmatprep.subr.bf16.mxu0 %v1725
        %1743 = vmatpush2.bf16.xpose.msra.mxu0 %v1724
        %1744 = vmatprep.subr.bf16.mxu0 %v1723
        %1745 = vmatpush2.bf16.xpose.msra.mxu0 %v1722
        %1746 = vmatprep.subr.bf16.mxu0 %v1721
        %1747 = vmatpush2.bf16.xpose.msra.mxu0 %v1720
        %1748 = vmatprep.subr.bf16.mxu0 %v1719
        %1749 = vmatpush2.bf16.xpose.msra.mxu0 %v1718
        %1750 = vmatprep.subr.bf16.mxu0 %v1717
        %1751 = vmatpush2.bf16.xpose.msra.mxu0 %v1716
        %1752 = vmatprep.subr.bf16.mxu0 %v1715
        %1753 = vmatpush2.bf16.xpose.msra.mxu0 %v1714
        %1754 = vmatprep.subr.bf16.mxu0 %v1713
        %1755 = vmatpush2.bf16.xpose.msra.mxu0 %v1712
        %1756 = vmatprep.subr.bf16.mxu0 %v1711
        %1757 = vmatpush2.bf16.xpose.msra.mxu0 %v1710
        %1758 = vmatprep.mubr.bf16.mxu0 %v841
        %1759 = vmatmul.mubr.bf16.gmra.mxu0 %v840
        %v1760 = vpop.f32.mrf.mxu0
        %v1761 = vadd.f32 0.0, %v1760
        %v1762 = vpop.f32.mrf.mxu0
        %v1763 = vadd.f32 0.0, %v1762
        %v1764 = vpop.f32.mrf.mxu0
        %v1765 = vadd.f32 0.0, %v1764
        %v1766 = vpop.f32.mrf.mxu0
        %v1767 = vadd.f32 0.0, %v1766
        %1768 = vmatprep.mubr.bf16.mxu0 %v843
        %1769 = vmatmul.mubr.bf16.gmra.mxu0 %v842
        %v1770 = vpop.f32.mrf.mxu0
        %v1771 = vadd.f32 0.0, %v1770
        %v1772 = vpop.f32.mrf.mxu0
        %v1773 = vadd.f32 0.0, %v1772
        %v1774 = vpop.f32.mrf.mxu0
        %v1775 = vadd.f32 0.0, %v1774
        %v1776 = vpop.f32.mrf.mxu0
        %v1777 = vadd.f32 0.0, %v1776
        %1778 = vdwg.mxu0
        %v1779 = vadd.f32 %v1761, 3.0
        %v1780 = vadd.f32 %v1763, 3.0
        %v1781 = vadd.f32 %v1765, 3.0
        %v1782 = vadd.f32 %v1767, 3.0
        %v1783 = vadd.f32 %v1771, 3.0
        %v1784 = vadd.f32 %v1773, 3.0
        %v1785 = vadd.f32 %v1775, 3.0
        %v1786 = vadd.f32 %v1777, 3.0
        %v1787 = vmax.f32 %v1779, 0.0
        %v1788 = vmax.f32 %v1780, 0.0
        %v1789 = vmax.f32 %v1781, 0.0
        %v1790 = vmax.f32 %v1782, 0.0
        %v1791 = vmax.f32 %v1783, 0.0
        %v1792 = vmax.f32 %v1784, 0.0
        %v1793 = vmax.f32 %v1785, 0.0
        %v1794 = vmax.f32 %v1786, 0.0
        %v1795 = vmin.f32 %v1787, 6.0
        %v1796 = vmin.f32 %v1788, 6.0
        %v1797 = vmin.f32 %v1789, 6.0
        %v1798 = vmin.f32 %v1790, 6.0
        %v1799 = vmin.f32 %v1791, 6.0
        %v1800 = vmin.f32 %v1792, 6.0
        %v1801 = vmin.f32 %v1793, 6.0
        %v1802 = vmin.f32 %v1794, 6.0
        %v1803 = vmul.f32 %v1761, %v1795
        %v1804 = vmul.f32 %v1763, %v1796
        %v1805 = vmul.f32 %v1765, %v1797
        %v1806 = vmul.f32 %v1767, %v1798
        %v1807 = vmul.f32 %v1771, %v1799
        %v1808 = vmul.f32 %v1773, %v1800
        %v1809 = vmul.f32 %v1775, %v1801
        %v1810 = vmul.f32 %v1777, %v1802
        %v1811 = vmul.f32 %v1803, 0.16666667
        %v1812 = vmul.f32 %v1804, 0.16666667
        %v1813 = vmul.f32 %v1805, 0.16666667
        %v1814 = vmul.f32 %v1806, 0.16666667
        %v1815 = vmul.f32 %v1807, 0.16666667
        %v1816 = vmul.f32 %v1808, 0.16666667
        %v1817 = vmul.f32 %v1809, 0.16666667
        %v1818 = vmul.f32 %v1810, 0.16666667
        %v1819 = vpack.c.bf16 %v1813, %v1811
        %v1820 = vpack.c.bf16 %v1814, %v1812
        %v1821 = vpack.c.bf16 %v1817, %v1815
        %v1822 = vpack.c.bf16 %v1818, %v1816
        %v1823 = vpack.c.bf16 %v692, %v688
        %v1824 = vpack.c.bf16 %v694, %v690
        %v1825 = vpack.c.bf16 %v732, %v728
        %v1826 = vpack.c.bf16 %v734, %v730
        %v1827 = vpack.c.bf16 %v782, %v778
        %v1828 = vpack.c.bf16 %v784, %v780
        %v1829 = vpack.c.bf16 %v792, %v788
        %v1830 = vpack.c.bf16 %v794, %v790
        %s1831 = scalar_lea.vmem [#allocation2], 256
        %v1832 = vld [vmem:[%s1831] sm:$0xff]
        %v1833 = vld [vmem:[%s1831 + $0x8] sm:$0xff]
        %v1834 = vld [vmem:[%s1831 + $0x10] sm:$0xff]
        %v1835 = vld [vmem:[%s1831 + $0x18] sm:$0xff]
        %v1836 = vld [vmem:[%s1831 + $0x20] sm:$0xff]
        %v1837 = vld [vmem:[%s1831 + $0x28] sm:$0xff]
        %v1838 = vld [vmem:[%s1831 + $0x30] sm:$0xff]
        %v1839 = vld [vmem:[%s1831 + $0x38] sm:$0xff]
        %v1840 = vld [vmem:[%s1831 + $0x40] sm:$0xff]
        %v1841 = vld [vmem:[%s1831 + $0x48] sm:$0xff]
        %v1842 = vld [vmem:[%s1831 + $0x50] sm:$0xff]
        %v1843 = vld [vmem:[%s1831 + $0x58] sm:$0xff]
        %v1844 = vld [vmem:[%s1831 + $0x60] sm:$0xff]
        %v1845 = vld [vmem:[%s1831 + $0x68] sm:$0xff]
        %v1846 = vld [vmem:[%s1831 + $0x70] sm:$0xff]
        %v1847 = vld [vmem:[%s1831 + $0x78] sm:$0xff]
        %v1848 = vld [vmem:[%s1831 + $0x80] sm:$0xff]
        %v1849 = vld [vmem:[%s1831 + $0x88] sm:$0xff]
        %v1850 = vld [vmem:[%s1831 + $0x90] sm:$0xff]
        %v1851 = vld [vmem:[%s1831 + $0x98] sm:$0xff]
        %v1852 = vld [vmem:[%s1831 + $0xa0] sm:$0xff]
        %v1853 = vld [vmem:[%s1831 + $0xa8] sm:$0xff]
        %v1854 = vld [vmem:[%s1831 + $0xb0] sm:$0xff]
        %v1855 = vld [vmem:[%s1831 + $0xb8] sm:$0xff]
        %v1856 = vld [vmem:[%s1831 + $0xc0] sm:$0xff]
        %v1857 = vld [vmem:[%s1831 + $0xc8] sm:$0xff]
        %v1858 = vld [vmem:[%s1831 + $0xd0] sm:$0xff]
        %v1859 = vld [vmem:[%s1831 + $0xd8] sm:$0xff]
        %v1860 = vld [vmem:[%s1831 + $0xe0] sm:$0xff]
        %v1861 = vld [vmem:[%s1831 + $0xe8] sm:$0xff]
        %v1862 = vld [vmem:[%s1831 + $0xf0] sm:$0xff]
        %v1863 = vld [vmem:[%s1831 + $0xf8] sm:$0xff]
        %v1864 = vunpack.c.l.bf16 %v1832
        %v1865 = vunpack.c.h.bf16 %v1832
        %v1866 = vunpack.c.l.bf16 %v1833
        %v1867 = vunpack.c.h.bf16 %v1833
        %v1868 = vunpack.c.l.bf16 %v1834
        %v1869 = vunpack.c.h.bf16 %v1834
        %v1870 = vunpack.c.l.bf16 %v1835
        %v1871 = vunpack.c.h.bf16 %v1835
        %v1872 = vunpack.c.l.bf16 %v1836
        %v1873 = vunpack.c.h.bf16 %v1836
        %v1874 = vunpack.c.l.bf16 %v1837
        %v1875 = vunpack.c.h.bf16 %v1837
        %v1876 = vunpack.c.l.bf16 %v1838
        %v1877 = vunpack.c.h.bf16 %v1838
        %v1878 = vunpack.c.l.bf16 %v1839
        %v1879 = vunpack.c.h.bf16 %v1839
        %v1880 = vunpack.c.l.bf16 %v1840
        %v1881 = vunpack.c.h.bf16 %v1840
        %v1882 = vunpack.c.l.bf16 %v1841
        %v1883 = vunpack.c.h.bf16 %v1841
        %v1884 = vunpack.c.l.bf16 %v1842
        %v1885 = vunpack.c.h.bf16 %v1842
        %v1886 = vunpack.c.l.bf16 %v1843
        %v1887 = vunpack.c.h.bf16 %v1843
        %v1888 = vunpack.c.l.bf16 %v1844
        %v1889 = vunpack.c.h.bf16 %v1844
        %v1890 = vunpack.c.l.bf16 %v1845
        %v1891 = vunpack.c.h.bf16 %v1845
        %v1892 = vunpack.c.l.bf16 %v1846
        %v1893 = vunpack.c.h.bf16 %v1846
        %v1894 = vunpack.c.l.bf16 %v1847
        %v1895 = vunpack.c.h.bf16 %v1847
        %v1896 = vunpack.c.l.bf16 %v1848
        %v1897 = vunpack.c.h.bf16 %v1848
        %v1898 = vunpack.c.l.bf16 %v1849
        %v1899 = vunpack.c.h.bf16 %v1849
        %v1900 = vunpack.c.l.bf16 %v1850
        %v1901 = vunpack.c.h.bf16 %v1850
        %v1902 = vunpack.c.l.bf16 %v1851
        %v1903 = vunpack.c.h.bf16 %v1851
        %v1904 = vunpack.c.l.bf16 %v1852
        %v1905 = vunpack.c.h.bf16 %v1852
        %v1906 = vunpack.c.l.bf16 %v1853
        %v1907 = vunpack.c.h.bf16 %v1853
        %v1908 = vunpack.c.l.bf16 %v1854
        %v1909 = vunpack.c.h.bf16 %v1854
        %v1910 = vunpack.c.l.bf16 %v1855
        %v1911 = vunpack.c.h.bf16 %v1855
        %v1912 = vunpack.c.l.bf16 %v1856
        %v1913 = vunpack.c.h.bf16 %v1856
        %v1914 = vunpack.c.l.bf16 %v1857
        %v1915 = vunpack.c.h.bf16 %v1857
        %v1916 = vunpack.c.l.bf16 %v1858
        %v1917 = vunpack.c.h.bf16 %v1858
        %v1918 = vunpack.c.l.bf16 %v1859
        %v1919 = vunpack.c.h.bf16 %v1859
        %v1920 = vunpack.c.l.bf16 %v1860
        %v1921 = vunpack.c.h.bf16 %v1860
        %v1922 = vunpack.c.l.bf16 %v1861
        %v1923 = vunpack.c.h.bf16 %v1861
        %v1924 = vunpack.c.l.bf16 %v1862
        %v1925 = vunpack.c.h.bf16 %v1862
        %v1926 = vunpack.c.l.bf16 %v1863
        %v1927 = vunpack.c.h.bf16 %v1863
        %1928 = vxpose.xlu0.c.b16.start [1/8] %v1823, 128
        %1929 = vxpose.xlu0.c.b16.cont [2/8] 0, 128
        %1930 = vxpose.xlu0.c.b16.cont [3/8] 0, 128
        %1931 = vxpose.xlu0.c.b16.cont [4/8] 0, 128
        %1932 = vxpose.xlu0.c.b16.cont [5/8] 0, 128
        %1933 = vxpose.xlu0.c.b16.cont [6/8] 0, 128
        %1934 = vxpose.xlu0.c.b16.cont [7/8] 0, 128
        %1935 = vxpose.xlu0.c.b16.end [8/8] 0, 128
        %v1936 = vpop.trf.xlu0
        %v1937 = vpop.trf.xlu0
        %v1938 = vpop.trf.xlu0
        %v1939 = vpop.trf.xlu0
        %v1940 = vpop.trf.xlu0
        %v1941 = vpop.trf.xlu0
        %v1942 = vpop.trf.xlu0
        %v1943 = vpop.trf.xlu0
        %1944 = vxpose.xlu0.c.b16.start [1/8] %v1824, 128
        %1945 = vxpose.xlu0.c.b16.cont [2/8] 0, 128
        %1946 = vxpose.xlu0.c.b16.cont [3/8] 0, 128
        %1947 = vxpose.xlu0.c.b16.cont [4/8] 0, 128
        %1948 = vxpose.xlu0.c.b16.cont [5/8] 0, 128
        %1949 = vxpose.xlu0.c.b16.cont [6/8] 0, 128
        %1950 = vxpose.xlu0.c.b16.cont [7/8] 0, 128
        %1951 = vxpose.xlu0.c.b16.end [8/8] 0, 128
        %v1952 = vpop.trf.xlu0
        %v1953 = vpop.trf.xlu0
        %v1954 = vpop.trf.xlu0
        %v1955 = vpop.trf.xlu0
        %v1956 = vpop.trf.xlu0
        %v1957 = vpop.trf.xlu0
        %v1958 = vpop.trf.xlu0
        %v1959 = vpop.trf.xlu0
        %v1961 = vsel %vm972, %v1936, 0
        %v1964 = vsel %vm972, %v1937, 0
        %v1967 = vsel %vm972, %v1938, 0
        %v1970 = vsel %vm972, %v1939, 0
        %v1973 = vsel %vm972, %v1940, 0
        %v1976 = vsel %vm972, %v1941, 0
        %v1979 = vsel %vm972, %v1942, 0
        %v1982 = vsel %vm972, %v1943, 0
        %v1985 = vsel %vm972, %v1952, 0
        %v1988 = vsel %vm972, %v1953, 0
        %v1991 = vsel %vm972, %v1954, 0
        %v1994 = vsel %vm972, %v1955, 0
        %v1997 = vsel %vm972, %v1956, 0
        %v2000 = vsel %vm972, %v1957, 0
        %v2003 = vsel %vm972, %v1958, 0
        %v2006 = vsel %vm972, %v1959, 0
        %2008 = vmatprep.subr.bf16.mxu0 0
        %2009 = vmatpush1.bf16.msra.mxu0 0
        %2010 = vmatprep.subr.bf16.mxu0 0
        %2011 = vmatpush1.bf16.msra.mxu0 0
        %2012 = vmatprep.subr.bf16.mxu0 0
        %2013 = vmatpush1.bf16.msra.mxu0 0
        %2014 = vmatprep.subr.bf16.mxu0 0
        %2015 = vmatpush1.bf16.msra.mxu0 0
        %2016 = vmatprep.subr.bf16.mxu0 0
        %2017 = vmatpush1.bf16.msra.mxu0 0
        %2018 = vmatprep.subr.bf16.mxu0 0
        %2019 = vmatpush1.bf16.msra.mxu0 0
        %2020 = vmatprep.subr.bf16.mxu0 0
        %2021 = vmatpush1.bf16.msra.mxu0 0
        %2022 = vmatprep.subr.bf16.mxu0 %v1826
        %2023 = vmatpush1.bf16.msra.mxu0 %v1825
        %2024 = vmatprep.subr.bf16.mxu0 0
        %2025 = vmatpush2.bf16.msra.mxu0 0
        %2026 = vmatprep.subr.bf16.mxu0 0
        %2027 = vmatpush2.bf16.msra.mxu0 0
        %2028 = vmatprep.subr.bf16.mxu0 0
        %2029 = vmatpush2.bf16.msra.mxu0 0
        %2030 = vmatprep.subr.bf16.mxu0 0
        %2031 = vmatpush2.bf16.msra.mxu0 0
        %2032 = vmatprep.subr.bf16.mxu0 0
        %2033 = vmatpush2.bf16.msra.mxu0 0
        %2034 = vmatprep.subr.bf16.mxu0 0
        %2035 = vmatpush2.bf16.msra.mxu0 0
        %2036 = vmatprep.subr.bf16.mxu0 0
        %2037 = vmatpush2.bf16.msra.mxu0 0
        %2038 = vmatprep.subr.bf16.mxu0 0
        %2039 = vmatpush2.bf16.msra.mxu0 0
        %2040 = vmatprep.mubr.bf16.mxu0 0
        %2041 = vmatmul.mubr.bf16.gmra.mxu0 %v1961
        %v2042 = vpop.f32.mrf.mxu0
        %v2043 = vadd.f32 %v1864, %v2042
        %v2044 = vpop.f32.mrf.mxu0
        %v2045 = vadd.f32 %v1865, %v2044
        %v2046 = vpop.f32.mrf.mxu0
        %v2047 = vadd.f32 %v1866, %v2046
        %v2048 = vpop.f32.mrf.mxu0
        %v2049 = vadd.f32 %v1867, %v2048
        %2050 = vmatprep.mubr.bf16.mxu0 0
        %2051 = vmatmul.mubr.bf16.gmra.mxu0 %v1964
        %v2052 = vpop.f32.mrf.mxu0
        %v2053 = vadd.f32 %v1868, %v2052
        %v2054 = vpop.f32.mrf.mxu0
        %v2055 = vadd.f32 %v1869, %v2054
        %v2056 = vpop.f32.mrf.mxu0
        %v2057 = vadd.f32 %v1870, %v2056
        %v2058 = vpop.f32.mrf.mxu0
        %v2059 = vadd.f32 %v1871, %v2058
        %2060 = vmatprep.mubr.bf16.mxu0 0
        %2061 = vmatmul.mubr.bf16.gmra.mxu0 %v1967
        %v2062 = vpop.f32.mrf.mxu0
        %v2063 = vadd.f32 %v1872, %v2062
        %v2064 = vpop.f32.mrf.mxu0
        %v2065 = vadd.f32 %v1873, %v2064
        %v2066 = vpop.f32.mrf.mxu0
        %v2067 = vadd.f32 %v1874, %v2066
        %v2068 = vpop.f32.mrf.mxu0
        %v2069 = vadd.f32 %v1875, %v2068
        %2070 = vmatprep.mubr.bf16.mxu0 0
        %2071 = vmatmul.mubr.bf16.gmra.mxu0 %v1970
        %v2072 = vpop.f32.mrf.mxu0
        %v2073 = vadd.f32 %v1876, %v2072
        %v2074 = vpop.f32.mrf.mxu0
        %v2075 = vadd.f32 %v1877, %v2074
        %v2076 = vpop.f32.mrf.mxu0
        %v2077 = vadd.f32 %v1878, %v2076
        %v2078 = vpop.f32.mrf.mxu0
        %v2079 = vadd.f32 %v1879, %v2078
        %2080 = vmatprep.mubr.bf16.mxu0 0
        %2081 = vmatmul.mubr.bf16.gmra.mxu0 %v1973
        %v2082 = vpop.f32.mrf.mxu0
        %v2083 = vadd.f32 %v1880, %v2082
        %v2084 = vpop.f32.mrf.mxu0
        %v2085 = vadd.f32 %v1881, %v2084
        %v2086 = vpop.f32.mrf.mxu0
        %v2087 = vadd.f32 %v1882, %v2086
        %v2088 = vpop.f32.mrf.mxu0
        %v2089 = vadd.f32 %v1883, %v2088
        %2090 = vmatprep.mubr.bf16.mxu0 0
        %2091 = vmatmul.mubr.bf16.gmra.mxu0 %v1976
        %v2092 = vpop.f32.mrf.mxu0
        %v2093 = vadd.f32 %v1884, %v2092
        %v2094 = vpop.f32.mrf.mxu0
        %v2095 = vadd.f32 %v1885, %v2094
        %v2096 = vpop.f32.mrf.mxu0
        %v2097 = vadd.f32 %v1886, %v2096
        %v2098 = vpop.f32.mrf.mxu0
        %v2099 = vadd.f32 %v1887, %v2098
        %2100 = vmatprep.mubr.bf16.mxu0 0
        %2101 = vmatmul.mubr.bf16.gmra.mxu0 %v1979
        %v2102 = vpop.f32.mrf.mxu0
        %v2103 = vadd.f32 %v1888, %v2102
        %v2104 = vpop.f32.mrf.mxu0
        %v2105 = vadd.f32 %v1889, %v2104
        %v2106 = vpop.f32.mrf.mxu0
        %v2107 = vadd.f32 %v1890, %v2106
        %v2108 = vpop.f32.mrf.mxu0
        %v2109 = vadd.f32 %v1891, %v2108
        %2110 = vmatprep.mubr.bf16.mxu0 0
        %2111 = vmatmul.mubr.bf16.gmra.mxu0 %v1982
        %v2112 = vpop.f32.mrf.mxu0
        %v2113 = vadd.f32 %v1892, %v2112
        %v2114 = vpop.f32.mrf.mxu0
        %v2115 = vadd.f32 %v1893, %v2114
        %v2116 = vpop.f32.mrf.mxu0
        %v2117 = vadd.f32 %v1894, %v2116
        %v2118 = vpop.f32.mrf.mxu0
        %v2119 = vadd.f32 %v1895, %v2118
        %2120 = vmatprep.mubr.bf16.mxu0 0
        %2121 = vmatmul.mubr.bf16.gmra.mxu0 %v1985
        %v2122 = vpop.f32.mrf.mxu0
        %v2123 = vadd.f32 %v1896, %v2122
        %v2124 = vpop.f32.mrf.mxu0
        %v2125 = vadd.f32 %v1897, %v2124
        %v2126 = vpop.f32.mrf.mxu0
        %v2127 = vadd.f32 %v1898, %v2126
        %v2128 = vpop.f32.mrf.mxu0
        %v2129 = vadd.f32 %v1899, %v2128
        %2130 = vmatprep.mubr.bf16.mxu0 0
        %2131 = vmatmul.mubr.bf16.gmra.mxu0 %v1988
        %v2132 = vpop.f32.mrf.mxu0
        %v2133 = vadd.f32 %v1900, %v2132
        %v2134 = vpop.f32.mrf.mxu0
        %v2135 = vadd.f32 %v1901, %v2134
        %v2136 = vpop.f32.mrf.mxu0
        %v2137 = vadd.f32 %v1902, %v2136
        %v2138 = vpop.f32.mrf.mxu0
        %v2139 = vadd.f32 %v1903, %v2138
        %2140 = vmatprep.mubr.bf16.mxu0 0
        %2141 = vmatmul.mubr.bf16.gmra.mxu0 %v1991
        %v2142 = vpop.f32.mrf.mxu0
        %v2143 = vadd.f32 %v1904, %v2142
        %v2144 = vpop.f32.mrf.mxu0
        %v2145 = vadd.f32 %v1905, %v2144
        %v2146 = vpop.f32.mrf.mxu0
        %v2147 = vadd.f32 %v1906, %v2146
        %v2148 = vpop.f32.mrf.mxu0
        %v2149 = vadd.f32 %v1907, %v2148
        %2150 = vmatprep.mubr.bf16.mxu0 0
        %2151 = vmatmul.mubr.bf16.gmra.mxu0 %v1994
        %v2152 = vpop.f32.mrf.mxu0
        %v2153 = vadd.f32 %v1908, %v2152
        %v2154 = vpop.f32.mrf.mxu0
        %v2155 = vadd.f32 %v1909, %v2154
        %v2156 = vpop.f32.mrf.mxu0
        %v2157 = vadd.f32 %v1910, %v2156
        %v2158 = vpop.f32.mrf.mxu0
        %v2159 = vadd.f32 %v1911, %v2158
        %2160 = vmatprep.mubr.bf16.mxu0 0
        %2161 = vmatmul.mubr.bf16.gmra.mxu0 %v1997
        %v2162 = vpop.f32.mrf.mxu0
        %v2163 = vadd.f32 %v1912, %v2162
        %v2164 = vpop.f32.mrf.mxu0
        %v2165 = vadd.f32 %v1913, %v2164
        %v2166 = vpop.f32.mrf.mxu0
        %v2167 = vadd.f32 %v1914, %v2166
        %v2168 = vpop.f32.mrf.mxu0
        %v2169 = vadd.f32 %v1915, %v2168
        %2170 = vmatprep.mubr.bf16.mxu0 0
        %2171 = vmatmul.mubr.bf16.gmra.mxu0 %v2000
        %v2172 = vpop.f32.mrf.mxu0
        %v2173 = vadd.f32 %v1916, %v2172
        %v2174 = vpop.f32.mrf.mxu0
        %v2175 = vadd.f32 %v1917, %v2174
        %v2176 = vpop.f32.mrf.mxu0
        %v2177 = vadd.f32 %v1918, %v2176
        %v2178 = vpop.f32.mrf.mxu0
        %v2179 = vadd.f32 %v1919, %v2178
        %2180 = vmatprep.mubr.bf16.mxu0 0
        %2181 = vmatmul.mubr.bf16.gmra.mxu0 %v2003
        %v2182 = vpop.f32.mrf.mxu0
        %v2183 = vadd.f32 %v1920, %v2182
        %v2184 = vpop.f32.mrf.mxu0
        %v2185 = vadd.f32 %v1921, %v2184
        %v2186 = vpop.f32.mrf.mxu0
        %v2187 = vadd.f32 %v1922, %v2186
        %v2188 = vpop.f32.mrf.mxu0
        %v2189 = vadd.f32 %v1923, %v2188
        %2190 = vmatprep.mubr.bf16.mxu0 0
        %2191 = vmatmul.mubr.bf16.gmra.mxu0 %v2006
        %v2192 = vpop.f32.mrf.mxu0
        %v2193 = vadd.f32 %v1924, %v2192
        %v2194 = vpop.f32.mrf.mxu0
        %v2195 = vadd.f32 %v1925, %v2194
        %v2196 = vpop.f32.mrf.mxu0
        %v2197 = vadd.f32 %v1926, %v2196
        %v2198 = vpop.f32.mrf.mxu0
        %v2199 = vadd.f32 %v1927, %v2198
        %2200 = vdwg.mxu0
        %v2201 = vmax.f32 %v2043, %v2045
        %2202 = vmax.xlane.f32.xlu0 %v2201
        %v2203 = vpop.xlane.xlu0 %2202
        %v2204 = vmax.f32 %v2047, %v2049
        %2205 = vmax.xlane.f32.xlu0 %v2204
        %v2206 = vpop.xlane.xlu0 %2205
        %v2207 = vmax.f32 %v2053, %v2055
        %2208 = vmax.xlane.f32.xlu0 %v2207
        %v2209 = vpop.xlane.xlu0 %2208
        %v2210 = vmax.f32 %v2057, %v2059
        %2211 = vmax.xlane.f32.xlu0 %v2210
        %v2212 = vpop.xlane.xlu0 %2211
        %v2213 = vmax.f32 %v2063, %v2065
        %2214 = vmax.xlane.f32.xlu0 %v2213
        %v2215 = vpop.xlane.xlu0 %2214
        %v2216 = vmax.f32 %v2067, %v2069
        %2217 = vmax.xlane.f32.xlu0 %v2216
        %v2218 = vpop.xlane.xlu0 %2217
        %v2219 = vmax.f32 %v2073, %v2075
        %2220 = vmax.xlane.f32.xlu0 %v2219
        %v2221 = vpop.xlane.xlu0 %2220
        %v2222 = vmax.f32 %v2077, %v2079
        %2223 = vmax.xlane.f32.xlu0 %v2222
        %v2224 = vpop.xlane.xlu0 %2223
        %v2225 = vmax.f32 %v2083, %v2085
        %2226 = vmax.xlane.f32.xlu0 %v2225
        %v2227 = vpop.xlane.xlu0 %2226
        %v2228 = vmax.f32 %v2087, %v2089
        %2229 = vmax.xlane.f32.xlu0 %v2228
        %v2230 = vpop.xlane.xlu0 %2229
        %v2231 = vmax.f32 %v2093, %v2095
        %2232 = vmax.xlane.f32.xlu0 %v2231
        %v2233 = vpop.xlane.xlu0 %2232
        %v2234 = vmax.f32 %v2097, %v2099
        %2235 = vmax.xlane.f32.xlu0 %v2234
        %v2236 = vpop.xlane.xlu0 %2235
        %v2237 = vmax.f32 %v2103, %v2105
        %2238 = vmax.xlane.f32.xlu0 %v2237
        %v2239 = vpop.xlane.xlu0 %2238
        %v2240 = vmax.f32 %v2107, %v2109
        %2241 = vmax.xlane.f32.xlu0 %v2240
        %v2242 = vpop.xlane.xlu0 %2241
        %v2243 = vmax.f32 %v2113, %v2115
        %2244 = vmax.xlane.f32.xlu0 %v2243
        %v2245 = vpop.xlane.xlu0 %2244
        %v2246 = vmax.f32 %v2117, %v2119
        %2247 = vmax.xlane.f32.xlu0 %v2246
        %v2248 = vpop.xlane.xlu0 %2247
        %v2249 = vmax.f32 %v2123, %v2125
        %2250 = vmax.xlane.f32.xlu0 %v2249
        %v2251 = vpop.xlane.xlu0 %2250
        %v2252 = vmax.f32 %v2127, %v2129
        %2253 = vmax.xlane.f32.xlu0 %v2252
        %v2254 = vpop.xlane.xlu0 %2253
        %v2255 = vmax.f32 %v2133, %v2135
        %2256 = vmax.xlane.f32.xlu0 %v2255
        %v2257 = vpop.xlane.xlu0 %2256
        %v2258 = vmax.f32 %v2137, %v2139
        %2259 = vmax.xlane.f32.xlu0 %v2258
        %v2260 = vpop.xlane.xlu0 %2259
        %v2261 = vmax.f32 %v2143, %v2145
        %2262 = vmax.xlane.f32.xlu0 %v2261
        %v2263 = vpop.xlane.xlu0 %2262
        %v2264 = vmax.f32 %v2147, %v2149
        %2265 = vmax.xlane.f32.xlu0 %v2264
        %v2266 = vpop.xlane.xlu0 %2265
        %v2267 = vmax.f32 %v2153, %v2155
        %2268 = vmax.xlane.f32.xlu0 %v2267
        %v2269 = vpop.xlane.xlu0 %2268
        %v2270 = vmax.f32 %v2157, %v2159
        %2271 = vmax.xlane.f32.xlu0 %v2270
        %v2272 = vpop.xlane.xlu0 %2271
        %v2273 = vmax.f32 %v2163, %v2165
        %2274 = vmax.xlane.f32.xlu0 %v2273
        %v2275 = vpop.xlane.xlu0 %2274
        %v2276 = vmax.f32 %v2167, %v2169
        %2277 = vmax.xlane.f32.xlu0 %v2276
        %v2278 = vpop.xlane.xlu0 %2277
        %v2279 = vmax.f32 %v2173, %v2175
        %2280 = vmax.xlane.f32.xlu0 %v2279
        %v2281 = vpop.xlane.xlu0 %2280
        %v2282 = vmax.f32 %v2177, %v2179
        %2283 = vmax.xlane.f32.xlu0 %v2282
        %v2284 = vpop.xlane.xlu0 %2283
        %v2285 = vmax.f32 %v2183, %v2185
        %2286 = vmax.xlane.f32.xlu0 %v2285
        %v2287 = vpop.xlane.xlu0 %2286
        %v2288 = vmax.f32 %v2187, %v2189
        %2289 = vmax.xlane.f32.xlu0 %v2288
        %v2290 = vpop.xlane.xlu0 %2289
        %v2291 = vmax.f32 %v2193, %v2195
        %2292 = vmax.xlane.f32.xlu0 %v2291
        %v2293 = vpop.xlane.xlu0 %2292
        %v2294 = vmax.f32 %v2197, %v2199
        %2295 = vmax.xlane.f32.xlu0 %v2294
        %v2296 = vpop.xlane.xlu0 %2295
        %v2297 = vsub.f32 %v2043, %v2203
        %v2298 = vsub.f32 %v2045, %v2203
        %v2299 = vsub.f32 %v2047, %v2206
        %v2300 = vsub.f32 %v2049, %v2206
        %v2301 = vsub.f32 %v2053, %v2209
        %v2302 = vsub.f32 %v2055, %v2209
        %v2303 = vsub.f32 %v2057, %v2212
        %v2304 = vsub.f32 %v2059, %v2212
        %v2305 = vsub.f32 %v2063, %v2215
        %v2306 = vsub.f32 %v2065, %v2215
        %v2307 = vsub.f32 %v2067, %v2218
        %v2308 = vsub.f32 %v2069, %v2218
        %v2309 = vsub.f32 %v2073, %v2221
        %v2310 = vsub.f32 %v2075, %v2221
        %v2311 = vsub.f32 %v2077, %v2224
        %v2312 = vsub.f32 %v2079, %v2224
        %v2313 = vsub.f32 %v2083, %v2227
        %v2314 = vsub.f32 %v2085, %v2227
        %v2315 = vsub.f32 %v2087, %v2230
        %v2316 = vsub.f32 %v2089, %v2230
        %v2317 = vsub.f32 %v2093, %v2233
        %v2318 = vsub.f32 %v2095, %v2233
        %v2319 = vsub.f32 %v2097, %v2236
        %v2320 = vsub.f32 %v2099, %v2236
        %v2321 = vsub.f32 %v2103, %v2239
        %v2322 = vsub.f32 %v2105, %v2239
        %v2323 = vsub.f32 %v2107, %v2242
        %v2324 = vsub.f32 %v2109, %v2242
        %v2325 = vsub.f32 %v2113, %v2245
        %v2326 = vsub.f32 %v2115, %v2245
        %v2327 = vsub.f32 %v2117, %v2248
        %v2328 = vsub.f32 %v2119, %v2248
        %v2329 = vsub.f32 %v2123, %v2251
        %v2330 = vsub.f32 %v2125, %v2251
        %v2331 = vsub.f32 %v2127, %v2254
        %v2332 = vsub.f32 %v2129, %v2254
        %v2333 = vsub.f32 %v2133, %v2257
        %v2334 = vsub.f32 %v2135, %v2257
        %v2335 = vsub.f32 %v2137, %v2260
        %v2336 = vsub.f32 %v2139, %v2260
        %v2337 = vsub.f32 %v2143, %v2263
        %v2338 = vsub.f32 %v2145, %v2263
        %v2339 = vsub.f32 %v2147, %v2266
        %v2340 = vsub.f32 %v2149, %v2266
        %v2341 = vsub.f32 %v2153, %v2269
        %v2342 = vsub.f32 %v2155, %v2269
        %v2343 = vsub.f32 %v2157, %v2272
        %v2344 = vsub.f32 %v2159, %v2272
        %v2345 = vsub.f32 %v2163, %v2275
        %v2346 = vsub.f32 %v2165, %v2275
        %v2347 = vsub.f32 %v2167, %v2278
        %v2348 = vsub.f32 %v2169, %v2278
        %v2349 = vsub.f32 %v2173, %v2281
        %v2350 = vsub.f32 %v2175, %v2281
        %v2351 = vsub.f32 %v2177, %v2284
        %v2352 = vsub.f32 %v2179, %v2284
        %v2353 = vsub.f32 %v2183, %v2287
        %v2354 = vsub.f32 %v2185, %v2287
        %v2355 = vsub.f32 %v2187, %v2290
        %v2356 = vsub.f32 %v2189, %v2290
        %v2357 = vsub.f32 %v2193, %v2293
        %v2358 = vsub.f32 %v2195, %v2293
        %v2359 = vsub.f32 %v2197, %v2296
        %v2360 = vsub.f32 %v2199, %v2296
        %v2361 = vmul.f32 %v2297, 1.442695
        %v2362 = vpow.pop %v2361
        %v2363 = vmul.f32 %v2298, 1.442695
        %v2364 = vpow.pop %v2363
        %v2365 = vmul.f32 %v2299, 1.442695
        %v2366 = vpow.pop %v2365
        %v2367 = vmul.f32 %v2300, 1.442695
        %v2368 = vpow.pop %v2367
        %v2369 = vmul.f32 %v2301, 1.442695
        %v2370 = vpow.pop %v2369
        %v2371 = vmul.f32 %v2302, 1.442695
        %v2372 = vpow.pop %v2371
        %v2373 = vmul.f32 %v2303, 1.442695
        %v2374 = vpow.pop %v2373
        %v2375 = vmul.f32 %v2304, 1.442695
        %v2376 = vpow.pop %v2375
        %v2377 = vmul.f32 %v2305, 1.442695
        %v2378 = vpow.pop %v2377
        %v2379 = vmul.f32 %v2306, 1.442695
        %v2380 = vpow.pop %v2379
        %v2381 = vmul.f32 %v2307, 1.442695
        %v2382 = vpow.pop %v2381
        %v2383 = vmul.f32 %v2308, 1.442695
        %v2384 = vpow.pop %v2383
        %v2385 = vmul.f32 %v2309, 1.442695
        %v2386 = vpow.pop %v2385
        %v2387 = vmul.f32 %v2310, 1.442695
        %v2388 = vpow.pop %v2387
        %v2389 = vmul.f32 %v2311, 1.442695
        %v2390 = vpow.pop %v2389
        %v2391 = vmul.f32 %v2312, 1.442695
        %v2392 = vpow.pop %v2391
        %v2393 = vmul.f32 %v2313, 1.442695
        %v2394 = vpow.pop %v2393
        %v2395 = vmul.f32 %v2314, 1.442695
        %v2396 = vpow.pop %v2395
        %v2397 = vmul.f32 %v2315, 1.442695
        %v2398 = vpow.pop %v2397
        %v2399 = vmul.f32 %v2316, 1.442695
        %v2400 = vpow.pop %v2399
        %v2401 = vmul.f32 %v2317, 1.442695
        %v2402 = vpow.pop %v2401
        %v2403 = vmul.f32 %v2318, 1.442695
        %v2404 = vpow.pop %v2403
        %v2405 = vmul.f32 %v2319, 1.442695
        %v2406 = vpow.pop %v2405
        %v2407 = vmul.f32 %v2320, 1.442695
        %v2408 = vpow.pop %v2407
        %v2409 = vmul.f32 %v2321, 1.442695
        %v2410 = vpow.pop %v2409
        %v2411 = vmul.f32 %v2322, 1.442695
        %v2412 = vpow.pop %v2411
        %v2413 = vmul.f32 %v2323, 1.442695
        %v2414 = vpow.pop %v2413
        %v2415 = vmul.f32 %v2324, 1.442695
        %v2416 = vpow.pop %v2415
        %v2417 = vmul.f32 %v2325, 1.442695
        %v2418 = vpow.pop %v2417
        %v2419 = vmul.f32 %v2326, 1.442695
        %v2420 = vpow.pop %v2419
        %v2421 = vmul.f32 %v2327, 1.442695
        %v2422 = vpow.pop %v2421
        %v2423 = vmul.f32 %v2328, 1.442695
        %v2424 = vpow.pop %v2423
        %v2425 = vmul.f32 %v2329, 1.442695
        %v2426 = vpow.pop %v2425
        %v2427 = vmul.f32 %v2330, 1.442695
        %v2428 = vpow.pop %v2427
        %v2429 = vmul.f32 %v2331, 1.442695
        %v2430 = vpow.pop %v2429
        %v2431 = vmul.f32 %v2332, 1.442695
        %v2432 = vpow.pop %v2431
        %v2433 = vmul.f32 %v2333, 1.442695
        %v2434 = vpow.pop %v2433
        %v2435 = vmul.f32 %v2334, 1.442695
        %v2436 = vpow.pop %v2435
        %v2437 = vmul.f32 %v2335, 1.442695
        %v2438 = vpow.pop %v2437
        %v2439 = vmul.f32 %v2336, 1.442695
        %v2440 = vpow.pop %v2439
        %v2441 = vmul.f32 %v2337, 1.442695
        %v2442 = vpow.pop %v2441
        %v2443 = vmul.f32 %v2338, 1.442695
        %v2444 = vpow.pop %v2443
        %v2445 = vmul.f32 %v2339, 1.442695
        %v2446 = vpow.pop %v2445
        %v2447 = vmul.f32 %v2340, 1.442695
        %v2448 = vpow.pop %v2447
        %v2449 = vmul.f32 %v2341, 1.442695
        %v2450 = vpow.pop %v2449
        %v2451 = vmul.f32 %v2342, 1.442695
        %v2452 = vpow.pop %v2451
        %v2453 = vmul.f32 %v2343, 1.442695
        %v2454 = vpow.pop %v2453
        %v2455 = vmul.f32 %v2344, 1.442695
        %v2456 = vpow.pop %v2455
        %v2457 = vmul.f32 %v2345, 1.442695
        %v2458 = vpow.pop %v2457
        %v2459 = vmul.f32 %v2346, 1.442695
        %v2460 = vpow.pop %v2459
        %v2461 = vmul.f32 %v2347, 1.442695
        %v2462 = vpow.pop %v2461
        %v2463 = vmul.f32 %v2348, 1.442695
        %v2464 = vpow.pop %v2463
        %v2465 = vmul.f32 %v2349, 1.442695
        %v2466 = vpow.pop %v2465
        %v2467 = vmul.f32 %v2350, 1.442695
        %v2468 = vpow.pop %v2467
        %v2469 = vmul.f32 %v2351, 1.442695
        %v2470 = vpow.pop %v2469
        %v2471 = vmul.f32 %v2352, 1.442695
        %v2472 = vpow.pop %v2471
        %v2473 = vmul.f32 %v2353, 1.442695
        %v2474 = vpow.pop %v2473
        %v2475 = vmul.f32 %v2354, 1.442695
        %v2476 = vpow.pop %v2475
        %v2477 = vmul.f32 %v2355, 1.442695
        %v2478 = vpow.pop %v2477
        %v2479 = vmul.f32 %v2356, 1.442695
        %v2480 = vpow.pop %v2479
        %v2481 = vmul.f32 %v2357, 1.442695
        %v2482 = vpow.pop %v2481
        %v2483 = vmul.f32 %v2358, 1.442695
        %v2484 = vpow.pop %v2483
        %v2485 = vmul.f32 %v2359, 1.442695
        %v2486 = vpow.pop %v2485
        %v2487 = vmul.f32 %v2360, 1.442695
        %v2488 = vpow.pop %v2487
        %v2489 = vadd.f32 %v2362, %v2364
        %2490 = vadd.xlane.f32.xlu0 %v2489
        %v2491 = vpop.xlane.xlu0 %2490
        %v2492 = vadd.f32 %v2366, %v2368
        %2493 = vadd.xlane.f32.xlu0 %v2492
        %v2494 = vpop.xlane.xlu0 %2493
        %v2495 = vadd.f32 %v2370, %v2372
        %2496 = vadd.xlane.f32.xlu0 %v2495
        %v2497 = vpop.xlane.xlu0 %2496
        %v2498 = vadd.f32 %v2374, %v2376
        %2499 = vadd.xlane.f32.xlu0 %v2498
        %v2500 = vpop.xlane.xlu0 %2499
        %v2501 = vadd.f32 %v2378, %v2380
        %2502 = vadd.xlane.f32.xlu0 %v2501
        %v2503 = vpop.xlane.xlu0 %2502
        %v2504 = vadd.f32 %v2382, %v2384
        %2505 = vadd.xlane.f32.xlu0 %v2504
        %v2506 = vpop.xlane.xlu0 %2505
        %v2507 = vadd.f32 %v2386, %v2388
        %2508 = vadd.xlane.f32.xlu0 %v2507
        %v2509 = vpop.xlane.xlu0 %2508
        %v2510 = vadd.f32 %v2390, %v2392
        %2511 = vadd.xlane.f32.xlu0 %v2510
        %v2512 = vpop.xlane.xlu0 %2511
        %v2513 = vadd.f32 %v2394, %v2396
        %2514 = vadd.xlane.f32.xlu0 %v2513
        %v2515 = vpop.xlane.xlu0 %2514
        %v2516 = vadd.f32 %v2398, %v2400
        %2517 = vadd.xlane.f32.xlu0 %v2516
        %v2518 = vpop.xlane.xlu0 %2517
        %v2519 = vadd.f32 %v2402, %v2404
        %2520 = vadd.xlane.f32.xlu0 %v2519
        %v2521 = vpop.xlane.xlu0 %2520
        %v2522 = vadd.f32 %v2406, %v2408
        %2523 = vadd.xlane.f32.xlu0 %v2522
        %v2524 = vpop.xlane.xlu0 %2523
        %v2525 = vadd.f32 %v2410, %v2412
        %2526 = vadd.xlane.f32.xlu0 %v2525
        %v2527 = vpop.xlane.xlu0 %2526
        %v2528 = vadd.f32 %v2414, %v2416
        %2529 = vadd.xlane.f32.xlu0 %v2528
        %v2530 = vpop.xlane.xlu0 %2529
        %v2531 = vadd.f32 %v2418, %v2420
        %2532 = vadd.xlane.f32.xlu0 %v2531
        %v2533 = vpop.xlane.xlu0 %2532
        %v2534 = vadd.f32 %v2422, %v2424
        %2535 = vadd.xlane.f32.xlu0 %v2534
        %v2536 = vpop.xlane.xlu0 %2535
        %v2537 = vadd.f32 %v2426, %v2428
        %2538 = vadd.xlane.f32.xlu0 %v2537
        %v2539 = vpop.xlane.xlu0 %2538
        %v2540 = vadd.f32 %v2430, %v2432
        %2541 = vadd.xlane.f32.xlu0 %v2540
        %v2542 = vpop.xlane.xlu0 %2541
        %v2543 = vadd.f32 %v2434, %v2436
        %2544 = vadd.xlane.f32.xlu0 %v2543
        %v2545 = vpop.xlane.xlu0 %2544
        %v2546 = vadd.f32 %v2438, %v2440
        %2547 = vadd.xlane.f32.xlu0 %v2546
        %v2548 = vpop.xlane.xlu0 %2547
        %v2549 = vadd.f32 %v2442, %v2444
        %2550 = vadd.xlane.f32.xlu0 %v2549
        %v2551 = vpop.xlane.xlu0 %2550
        %v2552 = vadd.f32 %v2446, %v2448
        %2553 = vadd.xlane.f32.xlu0 %v2552
        %v2554 = vpop.xlane.xlu0 %2553
        %v2555 = vadd.f32 %v2450, %v2452
        %2556 = vadd.xlane.f32.xlu0 %v2555
        %v2557 = vpop.xlane.xlu0 %2556
        %v2558 = vadd.f32 %v2454, %v2456
        %2559 = vadd.xlane.f32.xlu0 %v2558
        %v2560 = vpop.xlane.xlu0 %2559
        %v2561 = vadd.f32 %v2458, %v2460
        %2562 = vadd.xlane.f32.xlu0 %v2561
        %v2563 = vpop.xlane.xlu0 %2562
        %v2564 = vadd.f32 %v2462, %v2464
        %2565 = vadd.xlane.f32.xlu0 %v2564
        %v2566 = vpop.xlane.xlu0 %2565
        %v2567 = vadd.f32 %v2466, %v2468
        %2568 = vadd.xlane.f32.xlu0 %v2567
        %v2569 = vpop.xlane.xlu0 %2568
        %v2570 = vadd.f32 %v2470, %v2472
        %2571 = vadd.xlane.f32.xlu0 %v2570
        %v2572 = vpop.xlane.xlu0 %2571
        %v2573 = vadd.f32 %v2474, %v2476
        %2574 = vadd.xlane.f32.xlu0 %v2573
        %v2575 = vpop.xlane.xlu0 %2574
        %v2576 = vadd.f32 %v2478, %v2480
        %2577 = vadd.xlane.f32.xlu0 %v2576
        %v2578 = vpop.xlane.xlu0 %2577
        %v2579 = vadd.f32 %v2482, %v2484
        %2580 = vadd.xlane.f32.xlu0 %v2579
        %v2581 = vpop.xlane.xlu0 %2580
        %v2582 = vadd.f32 %v2486, %v2488
        %2583 = vadd.xlane.f32.xlu0 %v2582
        %v2584 = vpop.xlane.xlu0 %2583
        %v2585 = vrcp.pop %v2491
        %v2586 = vrcp.pop %v2494
        %v2587 = vrcp.pop %v2497
        %v2588 = vrcp.pop %v2500
        %v2589 = vrcp.pop %v2503
        %v2590 = vrcp.pop %v2506
        %v2591 = vrcp.pop %v2509
        %v2592 = vrcp.pop %v2512
        %v2593 = vrcp.pop %v2515
        %v2594 = vrcp.pop %v2518
        %v2595 = vrcp.pop %v2521
        %v2596 = vrcp.pop %v2524
        %v2597 = vrcp.pop %v2527
        %v2598 = vrcp.pop %v2530
        %v2599 = vrcp.pop %v2533
        %v2600 = vrcp.pop %v2536
        %v2601 = vrcp.pop %v2539
        %v2602 = vrcp.pop %v2542
        %v2603 = vrcp.pop %v2545
        %v2604 = vrcp.pop %v2548
        %v2605 = vrcp.pop %v2551
        %v2606 = vrcp.pop %v2554
        %v2607 = vrcp.pop %v2557
        %v2608 = vrcp.pop %v2560
        %v2609 = vrcp.pop %v2563
        %v2610 = vrcp.pop %v2566
        %v2611 = vrcp.pop %v2569
        %v2612 = vrcp.pop %v2572
        %v2613 = vrcp.pop %v2575
        %v2614 = vrcp.pop %v2578
        %v2615 = vrcp.pop %v2581
        %v2616 = vrcp.pop %v2584
        %v2617 = vmul.f32 %v2362, %v2585
        %v2618 = vmul.f32 %v2364, %v2585
        %v2619 = vmul.f32 %v2366, %v2586
        %v2620 = vmul.f32 %v2368, %v2586
        %v2621 = vmul.f32 %v2370, %v2587
        %v2622 = vmul.f32 %v2372, %v2587
        %v2623 = vmul.f32 %v2374, %v2588
        %v2624 = vmul.f32 %v2376, %v2588
        %v2625 = vmul.f32 %v2378, %v2589
        %v2626 = vmul.f32 %v2380, %v2589
        %v2627 = vmul.f32 %v2382, %v2590
        %v2628 = vmul.f32 %v2384, %v2590
        %v2629 = vmul.f32 %v2386, %v2591
        %v2630 = vmul.f32 %v2388, %v2591
        %v2631 = vmul.f32 %v2390, %v2592
        %v2632 = vmul.f32 %v2392, %v2592
        %v2633 = vmul.f32 %v2394, %v2593
        %v2634 = vmul.f32 %v2396, %v2593
        %v2635 = vmul.f32 %v2398, %v2594
        %v2636 = vmul.f32 %v2400, %v2594
        %v2637 = vmul.f32 %v2402, %v2595
        %v2638 = vmul.f32 %v2404, %v2595
        %v2639 = vmul.f32 %v2406, %v2596
        %v2640 = vmul.f32 %v2408, %v2596
        %v2641 = vmul.f32 %v2410, %v2597
        %v2642 = vmul.f32 %v2412, %v2597
        %v2643 = vmul.f32 %v2414, %v2598
        %v2644 = vmul.f32 %v2416, %v2598
        %v2645 = vmul.f32 %v2418, %v2599
        %v2646 = vmul.f32 %v2420, %v2599
        %v2647 = vmul.f32 %v2422, %v2600
        %v2648 = vmul.f32 %v2424, %v2600
        %v2649 = vmul.f32 %v2426, %v2601
        %v2650 = vmul.f32 %v2428, %v2601
        %v2651 = vmul.f32 %v2430, %v2602
        %v2652 = vmul.f32 %v2432, %v2602
        %v2653 = vmul.f32 %v2434, %v2603
        %v2654 = vmul.f32 %v2436, %v2603
        %v2655 = vmul.f32 %v2438, %v2604
        %v2656 = vmul.f32 %v2440, %v2604
        %v2657 = vmul.f32 %v2442, %v2605
        %v2658 = vmul.f32 %v2444, %v2605
        %v2659 = vmul.f32 %v2446, %v2606
        %v2660 = vmul.f32 %v2448, %v2606
        %v2661 = vmul.f32 %v2450, %v2607
        %v2662 = vmul.f32 %v2452, %v2607
        %v2663 = vmul.f32 %v2454, %v2608
        %v2664 = vmul.f32 %v2456, %v2608
        %v2665 = vmul.f32 %v2458, %v2609
        %v2666 = vmul.f32 %v2460, %v2609
        %v2667 = vmul.f32 %v2462, %v2610
        %v2668 = vmul.f32 %v2464, %v2610
        %v2669 = vmul.f32 %v2466, %v2611
        %v2670 = vmul.f32 %v2468, %v2611
        %v2671 = vmul.f32 %v2470, %v2612
        %v2672 = vmul.f32 %v2472, %v2612
        %v2673 = vmul.f32 %v2474, %v2613
        %v2674 = vmul.f32 %v2476, %v2613
        %v2675 = vmul.f32 %v2478, %v2614
        %v2676 = vmul.f32 %v2480, %v2614
        %v2677 = vmul.f32 %v2482, %v2615
        %v2678 = vmul.f32 %v2484, %v2615
        %v2679 = vmul.f32 %v2486, %v2616
        %v2680 = vmul.f32 %v2488, %v2616
        %v2681 = vpack.c.bf16 %v2619, %v2617
        %v2682 = vpack.c.bf16 %v2620, %v2618
        %v2683 = vpack.c.bf16 %v2623, %v2621
        %v2684 = vpack.c.bf16 %v2624, %v2622
        %v2685 = vpack.c.bf16 %v2627, %v2625
        %v2686 = vpack.c.bf16 %v2628, %v2626
        %v2687 = vpack.c.bf16 %v2631, %v2629
        %v2688 = vpack.c.bf16 %v2632, %v2630
        %v2689 = vpack.c.bf16 %v2635, %v2633
        %v2690 = vpack.c.bf16 %v2636, %v2634
        %v2691 = vpack.c.bf16 %v2639, %v2637
        %v2692 = vpack.c.bf16 %v2640, %v2638
        %v2693 = vpack.c.bf16 %v2643, %v2641
        %v2694 = vpack.c.bf16 %v2644, %v2642
        %v2695 = vpack.c.bf16 %v2647, %v2645
        %v2696 = vpack.c.bf16 %v2648, %v2646
        %v2697 = vpack.c.bf16 %v2651, %v2649
        %v2698 = vpack.c.bf16 %v2652, %v2650
        %v2699 = vpack.c.bf16 %v2655, %v2653
        %v2700 = vpack.c.bf16 %v2656, %v2654
        %v2701 = vpack.c.bf16 %v2659, %v2657
        %v2702 = vpack.c.bf16 %v2660, %v2658
        %v2703 = vpack.c.bf16 %v2663, %v2661
        %v2704 = vpack.c.bf16 %v2664, %v2662
        %v2705 = vpack.c.bf16 %v2667, %v2665
        %v2706 = vpack.c.bf16 %v2668, %v2666
        %v2707 = vpack.c.bf16 %v2671, %v2669
        %v2708 = vpack.c.bf16 %v2672, %v2670
        %v2709 = vpack.c.bf16 %v2675, %v2673
        %v2710 = vpack.c.bf16 %v2676, %v2674
        %v2711 = vpack.c.bf16 %v2679, %v2677
        %v2712 = vpack.c.bf16 %v2680, %v2678
        %2713 = vmatprep.subr.bf16.mxu0 %v2696
        %2714 = vmatpush1.bf16.xpose.msra.mxu0 %v2695
        %2715 = vmatprep.subr.bf16.mxu0 %v2694
        %2716 = vmatpush1.bf16.xpose.msra.mxu0 %v2693
        %2717 = vmatprep.subr.bf16.mxu0 %v2692
        %2718 = vmatpush1.bf16.xpose.msra.mxu0 %v2691
        %2719 = vmatprep.subr.bf16.mxu0 %v2690
        %2720 = vmatpush1.bf16.xpose.msra.mxu0 %v2689
        %2721 = vmatprep.subr.bf16.mxu0 %v2688
        %2722 = vmatpush1.bf16.xpose.msra.mxu0 %v2687
        %2723 = vmatprep.subr.bf16.mxu0 %v2686
        %2724 = vmatpush1.bf16.xpose.msra.mxu0 %v2685
        %2725 = vmatprep.subr.bf16.mxu0 %v2684
        %2726 = vmatpush1.bf16.xpose.msra.mxu0 %v2683
        %2727 = vmatprep.subr.bf16.mxu0 %v2682
        %2728 = vmatpush1.bf16.xpose.msra.mxu0 %v2681
        %2729 = vmatprep.subr.bf16.mxu0 %v2712
        %2730 = vmatpush2.bf16.xpose.msra.mxu0 %v2711
        %2731 = vmatprep.subr.bf16.mxu0 %v2710
        %2732 = vmatpush2.bf16.xpose.msra.mxu0 %v2709
        %2733 = vmatprep.subr.bf16.mxu0 %v2708
        %2734 = vmatpush2.bf16.xpose.msra.mxu0 %v2707
        %2735 = vmatprep.subr.bf16.mxu0 %v2706
        %2736 = vmatpush2.bf16.xpose.msra.mxu0 %v2705
        %2737 = vmatprep.subr.bf16.mxu0 %v2704
        %2738 = vmatpush2.bf16.xpose.msra.mxu0 %v2703
        %2739 = vmatprep.subr.bf16.mxu0 %v2702
        %2740 = vmatpush2.bf16.xpose.msra.mxu0 %v2701
        %2741 = vmatprep.subr.bf16.mxu0 %v2700
        %2742 = vmatpush2.bf16.xpose.msra.mxu0 %v2699
        %2743 = vmatprep.subr.bf16.mxu0 %v2698
        %2744 = vmatpush2.bf16.xpose.msra.mxu0 %v2697
        %2745 = vmatprep.mubr.bf16.mxu0 %v1828
        %2746 = vmatmul.mubr.bf16.gmra.mxu0 %v1827
        %v2747 = vpop.f32.mrf.mxu0
        %v2748 = vadd.f32 0.0, %v2747
        %v2749 = vpop.f32.mrf.mxu0
        %v2750 = vadd.f32 0.0, %v2749
        %v2751 = vpop.f32.mrf.mxu0
        %v2752 = vadd.f32 0.0, %v2751
        %v2753 = vpop.f32.mrf.mxu0
        %v2754 = vadd.f32 0.0, %v2753
        %2755 = vmatprep.mubr.bf16.mxu0 %v1830
        %2756 = vmatmul.mubr.bf16.gmra.mxu0 %v1829
        %v2757 = vpop.f32.mrf.mxu0
        %v2758 = vadd.f32 0.0, %v2757
        %v2759 = vpop.f32.mrf.mxu0
        %v2760 = vadd.f32 0.0, %v2759
        %v2761 = vpop.f32.mrf.mxu0
        %v2762 = vadd.f32 0.0, %v2761
        %v2763 = vpop.f32.mrf.mxu0
        %v2764 = vadd.f32 0.0, %v2763
        %2765 = vdwg.mxu0
        %v2766 = vadd.f32 %v2748, 3.0
        %v2767 = vadd.f32 %v2750, 3.0
        %v2768 = vadd.f32 %v2752, 3.0
        %v2769 = vadd.f32 %v2754, 3.0
        %v2770 = vadd.f32 %v2758, 3.0
        %v2771 = vadd.f32 %v2760, 3.0
        %v2772 = vadd.f32 %v2762, 3.0
        %v2773 = vadd.f32 %v2764, 3.0
        %v2774 = vmax.f32 %v2766, 0.0
        %v2775 = vmax.f32 %v2767, 0.0
        %v2776 = vmax.f32 %v2768, 0.0
        %v2777 = vmax.f32 %v2769, 0.0
        %v2778 = vmax.f32 %v2770, 0.0
        %v2779 = vmax.f32 %v2771, 0.0
        %v2780 = vmax.f32 %v2772, 0.0
        %v2781 = vmax.f32 %v2773, 0.0
        %v2782 = vmin.f32 %v2774, 6.0
        %v2783 = vmin.f32 %v2775, 6.0
        %v2784 = vmin.f32 %v2776, 6.0
        %v2785 = vmin.f32 %v2777, 6.0
        %v2786 = vmin.f32 %v2778, 6.0
        %v2787 = vmin.f32 %v2779, 6.0
        %v2788 = vmin.f32 %v2780, 6.0
        %v2789 = vmin.f32 %v2781, 6.0
        %v2790 = vmul.f32 %v2748, %v2782
        %v2791 = vmul.f32 %v2750, %v2783
        %v2792 = vmul.f32 %v2752, %v2784
        %v2793 = vmul.f32 %v2754, %v2785
        %v2794 = vmul.f32 %v2758, %v2786
        %v2795 = vmul.f32 %v2760, %v2787
        %v2796 = vmul.f32 %v2762, %v2788
        %v2797 = vmul.f32 %v2764, %v2789
        %v2798 = vmul.f32 %v2790, 0.16666667
        %v2799 = vmul.f32 %v2791, 0.16666667
        %v2800 = vmul.f32 %v2792, 0.16666667
        %v2801 = vmul.f32 %v2793, 0.16666667
        %v2802 = vmul.f32 %v2794, 0.16666667
        %v2803 = vmul.f32 %v2795, 0.16666667
        %v2804 = vmul.f32 %v2796, 0.16666667
        %v2805 = vmul.f32 %v2797, 0.16666667
        %v2806 = vpack.c.bf16 %v2800, %v2798
        %v2807 = vpack.c.bf16 %v2801, %v2799
        %v2808 = vpack.c.bf16 %v2804, %v2802
        %v2809 = vpack.c.bf16 %v2805, %v2803
        %v2810 = vpack.c.bf16 %v702, %v698
        %v2811 = vpack.c.bf16 %v704, %v700
        %v2812 = vpack.c.bf16 %v742, %v738
        %v2813 = vpack.c.bf16 %v744, %v740
        %v2814 = vpack.c.bf16 %v802, %v798
        %v2815 = vpack.c.bf16 %v804, %v800
        %v2816 = vpack.c.bf16 %v812, %v808
        %v2817 = vpack.c.bf16 %v814, %v810
        %s2818 = scalar_lea.vmem [#allocation2], 512
        %v2819 = vld [vmem:[%s2818] sm:$0xff]
        %v2820 = vld [vmem:[%s2818 + $0x8] sm:$0xff]
        %v2821 = vld [vmem:[%s2818 + $0x10] sm:$0xff]
        %v2822 = vld [vmem:[%s2818 + $0x18] sm:$0xff]
        %v2823 = vld [vmem:[%s2818 + $0x20] sm:$0xff]
        %v2824 = vld [vmem:[%s2818 + $0x28] sm:$0xff]
        %v2825 = vld [vmem:[%s2818 + $0x30] sm:$0xff]
        %v2826 = vld [vmem:[%s2818 + $0x38] sm:$0xff]
        %v2827 = vld [vmem:[%s2818 + $0x40] sm:$0xff]
        %v2828 = vld [vmem:[%s2818 + $0x48] sm:$0xff]
        %v2829 = vld [vmem:[%s2818 + $0x50] sm:$0xff]
        %v2830 = vld [vmem:[%s2818 + $0x58] sm:$0xff]
        %v2831 = vld [vmem:[%s2818 + $0x60] sm:$0xff]
        %v2832 = vld [vmem:[%s2818 + $0x68] sm:$0xff]
        %v2833 = vld [vmem:[%s2818 + $0x70] sm:$0xff]
        %v2834 = vld [vmem:[%s2818 + $0x78] sm:$0xff]
        %v2835 = vld [vmem:[%s2818 + $0x80] sm:$0xff]
        %v2836 = vld [vmem:[%s2818 + $0x88] sm:$0xff]
        %v2837 = vld [vmem:[%s2818 + $0x90] sm:$0xff]
        %v2838 = vld [vmem:[%s2818 + $0x98] sm:$0xff]
        %v2839 = vld [vmem:[%s2818 + $0xa0] sm:$0xff]
        %v2840 = vld [vmem:[%s2818 + $0xa8] sm:$0xff]
        %v2841 = vld [vmem:[%s2818 + $0xb0] sm:$0xff]
        %v2842 = vld [vmem:[%s2818 + $0xb8] sm:$0xff]
        %v2843 = vld [vmem:[%s2818 + $0xc0] sm:$0xff]
        %v2844 = vld [vmem:[%s2818 + $0xc8] sm:$0xff]
        %v2845 = vld [vmem:[%s2818 + $0xd0] sm:$0xff]
        %v2846 = vld [vmem:[%s2818 + $0xd8] sm:$0xff]
        %v2847 = vld [vmem:[%s2818 + $0xe0] sm:$0xff]
        %v2848 = vld [vmem:[%s2818 + $0xe8] sm:$0xff]
        %v2849 = vld [vmem:[%s2818 + $0xf0] sm:$0xff]
        %v2850 = vld [vmem:[%s2818 + $0xf8] sm:$0xff]
        %v2851 = vunpack.c.l.bf16 %v2819
        %v2852 = vunpack.c.h.bf16 %v2819
        %v2853 = vunpack.c.l.bf16 %v2820
        %v2854 = vunpack.c.h.bf16 %v2820
        %v2855 = vunpack.c.l.bf16 %v2821
        %v2856 = vunpack.c.h.bf16 %v2821
        %v2857 = vunpack.c.l.bf16 %v2822
        %v2858 = vunpack.c.h.bf16 %v2822
        %v2859 = vunpack.c.l.bf16 %v2823
        %v2860 = vunpack.c.h.bf16 %v2823
        %v2861 = vunpack.c.l.bf16 %v2824
        %v2862 = vunpack.c.h.bf16 %v2824
        %v2863 = vunpack.c.l.bf16 %v2825
        %v2864 = vunpack.c.h.bf16 %v2825
        %v2865 = vunpack.c.l.bf16 %v2826
        %v2866 = vunpack.c.h.bf16 %v2826
        %v2867 = vunpack.c.l.bf16 %v2827
        %v2868 = vunpack.c.h.bf16 %v2827
        %v2869 = vunpack.c.l.bf16 %v2828
        %v2870 = vunpack.c.h.bf16 %v2828
        %v2871 = vunpack.c.l.bf16 %v2829
        %v2872 = vunpack.c.h.bf16 %v2829
        %v2873 = vunpack.c.l.bf16 %v2830
        %v2874 = vunpack.c.h.bf16 %v2830
        %v2875 = vunpack.c.l.bf16 %v2831
        %v2876 = vunpack.c.h.bf16 %v2831
        %v2877 = vunpack.c.l.bf16 %v2832
        %v2878 = vunpack.c.h.bf16 %v2832
        %v2879 = vunpack.c.l.bf16 %v2833
        %v2880 = vunpack.c.h.bf16 %v2833
        %v2881 = vunpack.c.l.bf16 %v2834
        %v2882 = vunpack.c.h.bf16 %v2834
        %v2883 = vunpack.c.l.bf16 %v2835
        %v2884 = vunpack.c.h.bf16 %v2835
        %v2885 = vunpack.c.l.bf16 %v2836
        %v2886 = vunpack.c.h.bf16 %v2836
        %v2887 = vunpack.c.l.bf16 %v2837
        %v2888 = vunpack.c.h.bf16 %v2837
        %v2889 = vunpack.c.l.bf16 %v2838
        %v2890 = vunpack.c.h.bf16 %v2838
        %v2891 = vunpack.c.l.bf16 %v2839
        %v2892 = vunpack.c.h.bf16 %v2839
        %v2893 = vunpack.c.l.bf16 %v2840
        %v2894 = vunpack.c.h.bf16 %v2840
        %v2895 = vunpack.c.l.bf16 %v2841
        %v2896 = vunpack.c.h.bf16 %v2841
        %v2897 = vunpack.c.l.bf16 %v2842
        %v2898 = vunpack.c.h.bf16 %v2842
        %v2899 = vunpack.c.l.bf16 %v2843
        %v2900 = vunpack.c.h.bf16 %v2843
        %v2901 = vunpack.c.l.bf16 %v2844
        %v2902 = vunpack.c.h.bf16 %v2844
        %v2903 = vunpack.c.l.bf16 %v2845
        %v2904 = vunpack.c.h.bf16 %v2845
        %v2905 = vunpack.c.l.bf16 %v2846
        %v2906 = vunpack.c.h.bf16 %v2846
        %v2907 = vunpack.c.l.bf16 %v2847
        %v2908 = vunpack.c.h.bf16 %v2847
        %v2909 = vunpack.c.l.bf16 %v2848
        %v2910 = vunpack.c.h.bf16 %v2848
        %v2911 = vunpack.c.l.bf16 %v2849
        %v2912 = vunpack.c.h.bf16 %v2849
        %v2913 = vunpack.c.l.bf16 %v2850
        %v2914 = vunpack.c.h.bf16 %v2850
        %2915 = vxpose.xlu0.c.b16.start [1/8] %v2810, 128
        %2916 = vxpose.xlu0.c.b16.cont [2/8] 0, 128
        %2917 = vxpose.xlu0.c.b16.cont [3/8] 0, 128
        %2918 = vxpose.xlu0.c.b16.cont [4/8] 0, 128
        %2919 = vxpose.xlu0.c.b16.cont [5/8] 0, 128
        %2920 = vxpose.xlu0.c.b16.cont [6/8] 0, 128
        %2921 = vxpose.xlu0.c.b16.cont [7/8] 0, 128
        %2922 = vxpose.xlu0.c.b16.end [8/8] 0, 128
        %v2923 = vpop.trf.xlu0
        %v2924 = vpop.trf.xlu0
        %v2925 = vpop.trf.xlu0
        %v2926 = vpop.trf.xlu0
        %v2927 = vpop.trf.xlu0
        %v2928 = vpop.trf.xlu0
        %v2929 = vpop.trf.xlu0
        %v2930 = vpop.trf.xlu0
        %2931 = vxpose.xlu0.c.b16.start [1/8] %v2811, 128
        %2932 = vxpose.xlu0.c.b16.cont [2/8] 0, 128
        %2933 = vxpose.xlu0.c.b16.cont [3/8] 0, 128
        %2934 = vxpose.xlu0.c.b16.cont [4/8] 0, 128
        %2935 = vxpose.xlu0.c.b16.cont [5/8] 0, 128
        %2936 = vxpose.xlu0.c.b16.cont [6/8] 0, 128
        %2937 = vxpose.xlu0.c.b16.cont [7/8] 0, 128
        %2938 = vxpose.xlu0.c.b16.end [8/8] 0, 128
        %v2939 = vpop.trf.xlu0
        %v2940 = vpop.trf.xlu0
        %v2941 = vpop.trf.xlu0
        %v2942 = vpop.trf.xlu0
        %v2943 = vpop.trf.xlu0
        %v2944 = vpop.trf.xlu0
        %v2945 = vpop.trf.xlu0
        %v2946 = vpop.trf.xlu0
        %v2948 = vsel %vm972, %v2923, 0
        %v2951 = vsel %vm972, %v2924, 0
        %v2954 = vsel %vm972, %v2925, 0
        %v2957 = vsel %vm972, %v2926, 0
        %v2960 = vsel %vm972, %v2927, 0
        %v2963 = vsel %vm972, %v2928, 0
        %v2966 = vsel %vm972, %v2929, 0
        %v2969 = vsel %vm972, %v2930, 0
        %v2972 = vsel %vm972, %v2939, 0
        %v2975 = vsel %vm972, %v2940, 0
        %v2978 = vsel %vm972, %v2941, 0
        %v2981 = vsel %vm972, %v2942, 0
        %v2984 = vsel %vm972, %v2943, 0
        %v2987 = vsel %vm972, %v2944, 0
        %v2990 = vsel %vm972, %v2945, 0
        %v2993 = vsel %vm972, %v2946, 0
        %2995 = vmatprep.subr.bf16.mxu0 0
        %2996 = vmatpush1.bf16.msra.mxu0 0
        %2997 = vmatprep.subr.bf16.mxu0 0
        %2998 = vmatpush1.bf16.msra.mxu0 0
        %2999 = vmatprep.subr.bf16.mxu0 0
        %3000 = vmatpush1.bf16.msra.mxu0 0
        %3001 = vmatprep.subr.bf16.mxu0 0
        %3002 = vmatpush1.bf16.msra.mxu0 0
        %3003 = vmatprep.subr.bf16.mxu0 0
        %3004 = vmatpush1.bf16.msra.mxu0 0
        %3005 = vmatprep.subr.bf16.mxu0 0
        %3006 = vmatpush1.bf16.msra.mxu0 0
        %3007 = vmatprep.subr.bf16.mxu0 0
        %3008 = vmatpush1.bf16.msra.mxu0 0
        %3009 = vmatprep.subr.bf16.mxu0 %v2813
        %3010 = vmatpush1.bf16.msra.mxu0 %v2812
        %3011 = vmatprep.subr.bf16.mxu0 0
        %3012 = vmatpush2.bf16.msra.mxu0 0
        %3013 = vmatprep.subr.bf16.mxu0 0
        %3014 = vmatpush2.bf16.msra.mxu0 0
        %3015 = vmatprep.subr.bf16.mxu0 0
        %3016 = vmatpush2.bf16.msra.mxu0 0
        %3017 = vmatprep.subr.bf16.mxu0 0
        %3018 = vmatpush2.bf16.msra.mxu0 0
        %3019 = vmatprep.subr.bf16.mxu0 0
        %3020 = vmatpush2.bf16.msra.mxu0 0
        %3021 = vmatprep.subr.bf16.mxu0 0
        %3022 = vmatpush2.bf16.msra.mxu0 0
        %3023 = vmatprep.subr.bf16.mxu0 0
        %3024 = vmatpush2.bf16.msra.mxu0 0
        %3025 = vmatprep.subr.bf16.mxu0 0
        %3026 = vmatpush2.bf16.msra.mxu0 0
        %3027 = vmatprep.mubr.bf16.mxu0 0
        %3028 = vmatmul.mubr.bf16.gmra.mxu0 %v2948
        %v3029 = vpop.f32.mrf.mxu0
        %v3030 = vadd.f32 %v2851, %v3029
        %v3031 = vpop.f32.mrf.mxu0
        %v3032 = vadd.f32 %v2852, %v3031
        %v3033 = vpop.f32.mrf.mxu0
        %v3034 = vadd.f32 %v2853, %v3033
        %v3035 = vpop.f32.mrf.mxu0
        %v3036 = vadd.f32 %v2854, %v3035
        %3037 = vmatprep.mubr.bf16.mxu0 0
        %3038 = vmatmul.mubr.bf16.gmra.mxu0 %v2951
        %v3039 = vpop.f32.mrf.mxu0
        %v3040 = vadd.f32 %v2855, %v3039
        %v3041 = vpop.f32.mrf.mxu0
        %v3042 = vadd.f32 %v2856, %v3041
        %v3043 = vpop.f32.mrf.mxu0
        %v3044 = vadd.f32 %v2857, %v3043
        %v3045 = vpop.f32.mrf.mxu0
        %v3046 = vadd.f32 %v2858, %v3045
        %3047 = vmatprep.mubr.bf16.mxu0 0
        %3048 = vmatmul.mubr.bf16.gmra.mxu0 %v2954
        %v3049 = vpop.f32.mrf.mxu0
        %v3050 = vadd.f32 %v2859, %v3049
        %v3051 = vpop.f32.mrf.mxu0
        %v3052 = vadd.f32 %v2860, %v3051
        %v3053 = vpop.f32.mrf.mxu0
        %v3054 = vadd.f32 %v2861, %v3053
        %v3055 = vpop.f32.mrf.mxu0
        %v3056 = vadd.f32 %v2862, %v3055
        %3057 = vmatprep.mubr.bf16.mxu0 0
        %3058 = vmatmul.mubr.bf16.gmra.mxu0 %v2957
        %v3059 = vpop.f32.mrf.mxu0
        %v3060 = vadd.f32 %v2863, %v3059
        %v3061 = vpop.f32.mrf.mxu0
        %v3062 = vadd.f32 %v2864, %v3061
        %v3063 = vpop.f32.mrf.mxu0
        %v3064 = vadd.f32 %v2865, %v3063
        %v3065 = vpop.f32.mrf.mxu0
        %v3066 = vadd.f32 %v2866, %v3065
        %3067 = vmatprep.mubr.bf16.mxu0 0
        %3068 = vmatmul.mubr.bf16.gmra.mxu0 %v2960
        %v3069 = vpop.f32.mrf.mxu0
        %v3070 = vadd.f32 %v2867, %v3069
        %v3071 = vpop.f32.mrf.mxu0
        %v3072 = vadd.f32 %v2868, %v3071
        %v3073 = vpop.f32.mrf.mxu0
        %v3074 = vadd.f32 %v2869, %v3073
        %v3075 = vpop.f32.mrf.mxu0
        %v3076 = vadd.f32 %v2870, %v3075
        %3077 = vmatprep.mubr.bf16.mxu0 0
        %3078 = vmatmul.mubr.bf16.gmra.mxu0 %v2963
        %v3079 = vpop.f32.mrf.mxu0
        %v3080 = vadd.f32 %v2871, %v3079
        %v3081 = vpop.f32.mrf.mxu0
        %v3082 = vadd.f32 %v2872, %v3081
        %v3083 = vpop.f32.mrf.mxu0
        %v3084 = vadd.f32 %v2873, %v3083
        %v3085 = vpop.f32.mrf.mxu0
        %v3086 = vadd.f32 %v2874, %v3085
        %3087 = vmatprep.mubr.bf16.mxu0 0
        %3088 = vmatmul.mubr.bf16.gmra.mxu0 %v2966
        %v3089 = vpop.f32.mrf.mxu0
        %v3090 = vadd.f32 %v2875, %v3089
        %v3091 = vpop.f32.mrf.mxu0
        %v3092 = vadd.f32 %v2876, %v3091
        %v3093 = vpop.f32.mrf.mxu0
        %v3094 = vadd.f32 %v2877, %v3093
        %v3095 = vpop.f32.mrf.mxu0
        %v3096 = vadd.f32 %v2878, %v3095
        %3097 = vmatprep.mubr.bf16.mxu0 0
        %3098 = vmatmul.mubr.bf16.gmra.mxu0 %v2969
        %v3099 = vpop.f32.mrf.mxu0
        %v3100 = vadd.f32 %v2879, %v3099
        %v3101 = vpop.f32.mrf.mxu0
        %v3102 = vadd.f32 %v2880, %v3101
        %v3103 = vpop.f32.mrf.mxu0
        %v3104 = vadd.f32 %v2881, %v3103
        %v3105 = vpop.f32.mrf.mxu0
        %v3106 = vadd.f32 %v2882, %v3105
        %3107 = vmatprep.mubr.bf16.mxu0 0
        %3108 = vmatmul.mubr.bf16.gmra.mxu0 %v2972
        %v3109 = vpop.f32.mrf.mxu0
        %v3110 = vadd.f32 %v2883, %v3109
        %v3111 = vpop.f32.mrf.mxu0
        %v3112 = vadd.f32 %v2884, %v3111
        %v3113 = vpop.f32.mrf.mxu0
        %v3114 = vadd.f32 %v2885, %v3113
        %v3115 = vpop.f32.mrf.mxu0
        %v3116 = vadd.f32 %v2886, %v3115
        %3117 = vmatprep.mubr.bf16.mxu0 0
        %3118 = vmatmul.mubr.bf16.gmra.mxu0 %v2975
        %v3119 = vpop.f32.mrf.mxu0
        %v3120 = vadd.f32 %v2887, %v3119
        %v3121 = vpop.f32.mrf.mxu0
        %v3122 = vadd.f32 %v2888, %v3121
        %v3123 = vpop.f32.mrf.mxu0
        %v3124 = vadd.f32 %v2889, %v3123
        %v3125 = vpop.f32.mrf.mxu0
        %v3126 = vadd.f32 %v2890, %v3125
        %3127 = vmatprep.mubr.bf16.mxu0 0
        %3128 = vmatmul.mubr.bf16.gmra.mxu0 %v2978
        %v3129 = vpop.f32.mrf.mxu0
        %v3130 = vadd.f32 %v2891, %v3129
        %v3131 = vpop.f32.mrf.mxu0
        %v3132 = vadd.f32 %v2892, %v3131
        %v3133 = vpop.f32.mrf.mxu0
        %v3134 = vadd.f32 %v2893, %v3133
        %v3135 = vpop.f32.mrf.mxu0
        %v3136 = vadd.f32 %v2894, %v3135
        %3137 = vmatprep.mubr.bf16.mxu0 0
        %3138 = vmatmul.mubr.bf16.gmra.mxu0 %v2981
        %v3139 = vpop.f32.mrf.mxu0
        %v3140 = vadd.f32 %v2895, %v3139
        %v3141 = vpop.f32.mrf.mxu0
        %v3142 = vadd.f32 %v2896, %v3141
        %v3143 = vpop.f32.mrf.mxu0
        %v3144 = vadd.f32 %v2897, %v3143
        %v3145 = vpop.f32.mrf.mxu0
        %v3146 = vadd.f32 %v2898, %v3145
        %3147 = vmatprep.mubr.bf16.mxu0 0
        %3148 = vmatmul.mubr.bf16.gmra.mxu0 %v2984
        %v3149 = vpop.f32.mrf.mxu0
        %v3150 = vadd.f32 %v2899, %v3149
        %v3151 = vpop.f32.mrf.mxu0
        %v3152 = vadd.f32 %v2900, %v3151
        %v3153 = vpop.f32.mrf.mxu0
        %v3154 = vadd.f32 %v2901, %v3153
        %v3155 = vpop.f32.mrf.mxu0
        %v3156 = vadd.f32 %v2902, %v3155
        %3157 = vmatprep.mubr.bf16.mxu0 0
        %3158 = vmatmul.mubr.bf16.gmra.mxu0 %v2987
        %v3159 = vpop.f32.mrf.mxu0
        %v3160 = vadd.f32 %v2903, %v3159
        %v3161 = vpop.f32.mrf.mxu0
        %v3162 = vadd.f32 %v2904, %v3161
        %v3163 = vpop.f32.mrf.mxu0
        %v3164 = vadd.f32 %v2905, %v3163
        %v3165 = vpop.f32.mrf.mxu0
        %v3166 = vadd.f32 %v2906, %v3165
        %3167 = vmatprep.mubr.bf16.mxu0 0
        %3168 = vmatmul.mubr.bf16.gmra.mxu0 %v2990
        %v3169 = vpop.f32.mrf.mxu0
        %v3170 = vadd.f32 %v2907, %v3169
        %v3171 = vpop.f32.mrf.mxu0
        %v3172 = vadd.f32 %v2908, %v3171
        %v3173 = vpop.f32.mrf.mxu0
        %v3174 = vadd.f32 %v2909, %v3173
        %v3175 = vpop.f32.mrf.mxu0
        %v3176 = vadd.f32 %v2910, %v3175
        %3177 = vmatprep.mubr.bf16.mxu0 0
        %3178 = vmatmul.mubr.bf16.gmra.mxu0 %v2993
        %v3179 = vpop.f32.mrf.mxu0
        %v3180 = vadd.f32 %v2911, %v3179
        %v3181 = vpop.f32.mrf.mxu0
        %v3182 = vadd.f32 %v2912, %v3181
        %v3183 = vpop.f32.mrf.mxu0
        %v3184 = vadd.f32 %v2913, %v3183
        %v3185 = vpop.f32.mrf.mxu0
        %v3186 = vadd.f32 %v2914, %v3185
        %3187 = vdwg.mxu0
        %v3188 = vmax.f32 %v3030, %v3032
        %3189 = vmax.xlane.f32.xlu0 %v3188
        %v3190 = vpop.xlane.xlu0 %3189
        %v3191 = vmax.f32 %v3034, %v3036
        %3192 = vmax.xlane.f32.xlu0 %v3191
        %v3193 = vpop.xlane.xlu0 %3192
        %v3194 = vmax.f32 %v3040, %v3042
        %3195 = vmax.xlane.f32.xlu0 %v3194
        %v3196 = vpop.xlane.xlu0 %3195
        %v3197 = vmax.f32 %v3044, %v3046
        %3198 = vmax.xlane.f32.xlu0 %v3197
        %v3199 = vpop.xlane.xlu0 %3198
        %v3200 = vmax.f32 %v3050, %v3052
        %3201 = vmax.xlane.f32.xlu0 %v3200
        %v3202 = vpop.xlane.xlu0 %3201
        %v3203 = vmax.f32 %v3054, %v3056
        %3204 = vmax.xlane.f32.xlu0 %v3203
        %v3205 = vpop.xlane.xlu0 %3204
        %v3206 = vmax.f32 %v3060, %v3062
        %3207 = vmax.xlane.f32.xlu0 %v3206
        %v3208 = vpop.xlane.xlu0 %3207
        %v3209 = vmax.f32 %v3064, %v3066
        %3210 = vmax.xlane.f32.xlu0 %v3209
        %v3211 = vpop.xlane.xlu0 %3210
        %v3212 = vmax.f32 %v3070, %v3072
        %3213 = vmax.xlane.f32.xlu0 %v3212
        %v3214 = vpop.xlane.xlu0 %3213
        %v3215 = vmax.f32 %v3074, %v3076
        %3216 = vmax.xlane.f32.xlu0 %v3215
        %v3217 = vpop.xlane.xlu0 %3216
        %v3218 = vmax.f32 %v3080, %v3082
        %3219 = vmax.xlane.f32.xlu0 %v3218
        %v3220 = vpop.xlane.xlu0 %3219
        %v3221 = vmax.f32 %v3084, %v3086
        %3222 = vmax.xlane.f32.xlu0 %v3221
        %v3223 = vpop.xlane.xlu0 %3222
        %v3224 = vmax.f32 %v3090, %v3092
        %3225 = vmax.xlane.f32.xlu0 %v3224
        %v3226 = vpop.xlane.xlu0 %3225
        %v3227 = vmax.f32 %v3094, %v3096
        %3228 = vmax.xlane.f32.xlu0 %v3227
        %v3229 = vpop.xlane.xlu0 %3228
        %v3230 = vmax.f32 %v3100, %v3102
        %3231 = vmax.xlane.f32.xlu0 %v3230
        %v3232 = vpop.xlane.xlu0 %3231
        %v3233 = vmax.f32 %v3104, %v3106
        %3234 = vmax.xlane.f32.xlu0 %v3233
        %v3235 = vpop.xlane.xlu0 %3234
        %v3236 = vmax.f32 %v3110, %v3112
        %3237 = vmax.xlane.f32.xlu0 %v3236
        %v3238 = vpop.xlane.xlu0 %3237
        %v3239 = vmax.f32 %v3114, %v3116
        %3240 = vmax.xlane.f32.xlu0 %v3239
        %v3241 = vpop.xlane.xlu0 %3240
        %v3242 = vmax.f32 %v3120, %v3122
        %3243 = vmax.xlane.f32.xlu0 %v3242
        %v3244 = vpop.xlane.xlu0 %3243
        %v3245 = vmax.f32 %v3124, %v3126
        %3246 = vmax.xlane.f32.xlu0 %v3245
        %v3247 = vpop.xlane.xlu0 %3246
        %v3248 = vmax.f32 %v3130, %v3132
        %3249 = vmax.xlane.f32.xlu0 %v3248
        %v3250 = vpop.xlane.xlu0 %3249
        %v3251 = vmax.f32 %v3134, %v3136
        %3252 = vmax.xlane.f32.xlu0 %v3251
        %v3253 = vpop.xlane.xlu0 %3252
        %v3254 = vmax.f32 %v3140, %v3142
        %3255 = vmax.xlane.f32.xlu0 %v3254
        %v3256 = vpop.xlane.xlu0 %3255
        %v3257 = vmax.f32 %v3144, %v3146
        %3258 = vmax.xlane.f32.xlu0 %v3257
        %v3259 = vpop.xlane.xlu0 %3258
        %v3260 = vmax.f32 %v3150, %v3152
        %3261 = vmax.xlane.f32.xlu0 %v3260
        %v3262 = vpop.xlane.xlu0 %3261
        %v3263 = vmax.f32 %v3154, %v3156
        %3264 = vmax.xlane.f32.xlu0 %v3263
        %v3265 = vpop.xlane.xlu0 %3264
        %v3266 = vmax.f32 %v3160, %v3162
        %3267 = vmax.xlane.f32.xlu0 %v3266
        %v3268 = vpop.xlane.xlu0 %3267
        %v3269 = vmax.f32 %v3164, %v3166
        %3270 = vmax.xlane.f32.xlu0 %v3269
        %v3271 = vpop.xlane.xlu0 %3270
        %v3272 = vmax.f32 %v3170, %v3172
        %3273 = vmax.xlane.f32.xlu0 %v3272
        %v3274 = vpop.xlane.xlu0 %3273
        %v3275 = vmax.f32 %v3174, %v3176
        %3276 = vmax.xlane.f32.xlu0 %v3275
        %v3277 = vpop.xlane.xlu0 %3276
        %v3278 = vmax.f32 %v3180, %v3182
        %3279 = vmax.xlane.f32.xlu0 %v3278
        %v3280 = vpop.xlane.xlu0 %3279
        %v3281 = vmax.f32 %v3184, %v3186
        %3282 = vmax.xlane.f32.xlu0 %v3281
        %v3283 = vpop.xlane.xlu0 %3282
        %v3284 = vsub.f32 %v3030, %v3190
        %v3285 = vsub.f32 %v3032, %v3190
        %v3286 = vsub.f32 %v3034, %v3193
        %v3287 = vsub.f32 %v3036, %v3193
        %v3288 = vsub.f32 %v3040, %v3196
        %v3289 = vsub.f32 %v3042, %v3196
        %v3290 = vsub.f32 %v3044, %v3199
        %v3291 = vsub.f32 %v3046, %v3199
        %v3292 = vsub.f32 %v3050, %v3202
        %v3293 = vsub.f32 %v3052, %v3202
        %v3294 = vsub.f32 %v3054, %v3205
        %v3295 = vsub.f32 %v3056, %v3205
        %v3296 = vsub.f32 %v3060, %v3208
        %v3297 = vsub.f32 %v3062, %v3208
        %v3298 = vsub.f32 %v3064, %v3211
        %v3299 = vsub.f32 %v3066, %v3211
        %v3300 = vsub.f32 %v3070, %v3214
        %v3301 = vsub.f32 %v3072, %v3214
        %v3302 = vsub.f32 %v3074, %v3217
        %v3303 = vsub.f32 %v3076, %v3217
        %v3304 = vsub.f32 %v3080, %v3220
        %v3305 = vsub.f32 %v3082, %v3220
        %v3306 = vsub.f32 %v3084, %v3223
        %v3307 = vsub.f32 %v3086, %v3223
        %v3308 = vsub.f32 %v3090, %v3226
        %v3309 = vsub.f32 %v3092, %v3226
        %v3310 = vsub.f32 %v3094, %v3229
        %v3311 = vsub.f32 %v3096, %v3229
        %v3312 = vsub.f32 %v3100, %v3232
        %v3313 = vsub.f32 %v3102, %v3232
        %v3314 = vsub.f32 %v3104, %v3235
        %v3315 = vsub.f32 %v3106, %v3235
        %v3316 = vsub.f32 %v3110, %v3238
        %v3317 = vsub.f32 %v3112, %v3238
        %v3318 = vsub.f32 %v3114, %v3241
        %v3319 = vsub.f32 %v3116, %v3241
        %v3320 = vsub.f32 %v3120, %v3244
        %v3321 = vsub.f32 %v3122, %v3244
        %v3322 = vsub.f32 %v3124, %v3247
        %v3323 = vsub.f32 %v3126, %v3247
        %v3324 = vsub.f32 %v3130, %v3250
        %v3325 = vsub.f32 %v3132, %v3250
        %v3326 = vsub.f32 %v3134, %v3253
        %v3327 = vsub.f32 %v3136, %v3253
        %v3328 = vsub.f32 %v3140, %v3256
        %v3329 = vsub.f32 %v3142, %v3256
        %v3330 = vsub.f32 %v3144, %v3259
        %v3331 = vsub.f32 %v3146, %v3259
        %v3332 = vsub.f32 %v3150, %v3262
        %v3333 = vsub.f32 %v3152, %v3262
        %v3334 = vsub.f32 %v3154, %v3265
        %v3335 = vsub.f32 %v3156, %v3265
        %v3336 = vsub.f32 %v3160, %v3268
        %v3337 = vsub.f32 %v3162, %v3268
        %v3338 = vsub.f32 %v3164, %v3271
        %v3339 = vsub.f32 %v3166, %v3271
        %v3340 = vsub.f32 %v3170, %v3274
        %v3341 = vsub.f32 %v3172, %v3274
        %v3342 = vsub.f32 %v3174, %v3277
        %v3343 = vsub.f32 %v3176, %v3277
        %v3344 = vsub.f32 %v3180, %v3280
        %v3345 = vsub.f32 %v3182, %v3280
        %v3346 = vsub.f32 %v3184, %v3283
        %v3347 = vsub.f32 %v3186, %v3283
        %v3348 = vmul.f32 %v3284, 1.442695
        %v3349 = vpow.pop %v3348
        %v3350 = vmul.f32 %v3285, 1.442695
        %v3351 = vpow.pop %v3350
        %v3352 = vmul.f32 %v3286, 1.442695
        %v3353 = vpow.pop %v3352
        %v3354 = vmul.f32 %v3287, 1.442695
        %v3355 = vpow.pop %v3354
        %v3356 = vmul.f32 %v3288, 1.442695
        %v3357 = vpow.pop %v3356
        %v3358 = vmul.f32 %v3289, 1.442695
        %v3359 = vpow.pop %v3358
        %v3360 = vmul.f32 %v3290, 1.442695
        %v3361 = vpow.pop %v3360
        %v3362 = vmul.f32 %v3291, 1.442695
        %v3363 = vpow.pop %v3362
        %v3364 = vmul.f32 %v3292, 1.442695
        %v3365 = vpow.pop %v3364
        %v3366 = vmul.f32 %v3293, 1.442695
        %v3367 = vpow.pop %v3366
        %v3368 = vmul.f32 %v3294, 1.442695
        %v3369 = vpow.pop %v3368
        %v3370 = vmul.f32 %v3295, 1.442695
        %v3371 = vpow.pop %v3370
        %v3372 = vmul.f32 %v3296, 1.442695
        %v3373 = vpow.pop %v3372
        %v3374 = vmul.f32 %v3297, 1.442695
        %v3375 = vpow.pop %v3374
        %v3376 = vmul.f32 %v3298, 1.442695
        %v3377 = vpow.pop %v3376
        %v3378 = vmul.f32 %v3299, 1.442695
        %v3379 = vpow.pop %v3378
        %v3380 = vmul.f32 %v3300, 1.442695
        %v3381 = vpow.pop %v3380
        %v3382 = vmul.f32 %v3301, 1.442695
        %v3383 = vpow.pop %v3382
        %v3384 = vmul.f32 %v3302, 1.442695
        %v3385 = vpow.pop %v3384
        %v3386 = vmul.f32 %v3303, 1.442695
        %v3387 = vpow.pop %v3386
        %v3388 = vmul.f32 %v3304, 1.442695
        %v3389 = vpow.pop %v3388
        %v3390 = vmul.f32 %v3305, 1.442695
        %v3391 = vpow.pop %v3390
        %v3392 = vmul.f32 %v3306, 1.442695
        %v3393 = vpow.pop %v3392
        %v3394 = vmul.f32 %v3307, 1.442695
        %v3395 = vpow.pop %v3394
        %v3396 = vmul.f32 %v3308, 1.442695
        %v3397 = vpow.pop %v3396
        %v3398 = vmul.f32 %v3309, 1.442695
        %v3399 = vpow.pop %v3398
        %v3400 = vmul.f32 %v3310, 1.442695
        %v3401 = vpow.pop %v3400
        %v3402 = vmul.f32 %v3311, 1.442695
        %v3403 = vpow.pop %v3402
        %v3404 = vmul.f32 %v3312, 1.442695
        %v3405 = vpow.pop %v3404
        %v3406 = vmul.f32 %v3313, 1.442695
        %v3407 = vpow.pop %v3406
        %v3408 = vmul.f32 %v3314, 1.442695
        %v3409 = vpow.pop %v3408
        %v3410 = vmul.f32 %v3315, 1.442695
        %v3411 = vpow.pop %v3410
        %v3412 = vmul.f32 %v3316, 1.442695
        %v3413 = vpow.pop %v3412
        %v3414 = vmul.f32 %v3317, 1.442695
        %v3415 = vpow.pop %v3414
        %v3416 = vmul.f32 %v3318, 1.442695
        %v3417 = vpow.pop %v3416
        %v3418 = vmul.f32 %v3319, 1.442695
        %v3419 = vpow.pop %v3418
        %v3420 = vmul.f32 %v3320, 1.442695
        %v3421 = vpow.pop %v3420
        %v3422 = vmul.f32 %v3321, 1.442695
        %v3423 = vpow.pop %v3422
        %v3424 = vmul.f32 %v3322, 1.442695
        %v3425 = vpow.pop %v3424
        %v3426 = vmul.f32 %v3323, 1.442695
        %v3427 = vpow.pop %v3426
        %v3428 = vmul.f32 %v3324, 1.442695
        %v3429 = vpow.pop %v3428
        %v3430 = vmul.f32 %v3325, 1.442695
        %v3431 = vpow.pop %v3430
        %v3432 = vmul.f32 %v3326, 1.442695
        %v3433 = vpow.pop %v3432
        %v3434 = vmul.f32 %v3327, 1.442695
        %v3435 = vpow.pop %v3434
        %v3436 = vmul.f32 %v3328, 1.442695
        %v3437 = vpow.pop %v3436
        %v3438 = vmul.f32 %v3329, 1.442695
        %v3439 = vpow.pop %v3438
        %v3440 = vmul.f32 %v3330, 1.442695
        %v3441 = vpow.pop %v3440
        %v3442 = vmul.f32 %v3331, 1.442695
        %v3443 = vpow.pop %v3442
        %v3444 = vmul.f32 %v3332, 1.442695
        %v3445 = vpow.pop %v3444
        %v3446 = vmul.f32 %v3333, 1.442695
        %v3447 = vpow.pop %v3446
        %v3448 = vmul.f32 %v3334, 1.442695
        %v3449 = vpow.pop %v3448
        %v3450 = vmul.f32 %v3335, 1.442695
        %v3451 = vpow.pop %v3450
        %v3452 = vmul.f32 %v3336, 1.442695
        %v3453 = vpow.pop %v3452
        %v3454 = vmul.f32 %v3337, 1.442695
        %v3455 = vpow.pop %v3454
        %v3456 = vmul.f32 %v3338, 1.442695
        %v3457 = vpow.pop %v3456
        %v3458 = vmul.f32 %v3339, 1.442695
        %v3459 = vpow.pop %v3458
        %v3460 = vmul.f32 %v3340, 1.442695
        %v3461 = vpow.pop %v3460
        %v3462 = vmul.f32 %v3341, 1.442695
        %v3463 = vpow.pop %v3462
        %v3464 = vmul.f32 %v3342, 1.442695
        %v3465 = vpow.pop %v3464
        %v3466 = vmul.f32 %v3343, 1.442695
        %v3467 = vpow.pop %v3466
        %v3468 = vmul.f32 %v3344, 1.442695
        %v3469 = vpow.pop %v3468
        %v3470 = vmul.f32 %v3345, 1.442695
        %v3471 = vpow.pop %v3470
        %v3472 = vmul.f32 %v3346, 1.442695
        %v3473 = vpow.pop %v3472
        %v3474 = vmul.f32 %v3347, 1.442695
        %v3475 = vpow.pop %v3474
        %v3476 = vadd.f32 %v3349, %v3351
        %3477 = vadd.xlane.f32.xlu0 %v3476
        %v3478 = vpop.xlane.xlu0 %3477
        %v3479 = vadd.f32 %v3353, %v3355
        %3480 = vadd.xlane.f32.xlu0 %v3479
        %v3481 = vpop.xlane.xlu0 %3480
        %v3482 = vadd.f32 %v3357, %v3359
        %3483 = vadd.xlane.f32.xlu0 %v3482
        %v3484 = vpop.xlane.xlu0 %3483
        %v3485 = vadd.f32 %v3361, %v3363
        %3486 = vadd.xlane.f32.xlu0 %v3485
        %v3487 = vpop.xlane.xlu0 %3486
        %v3488 = vadd.f32 %v3365, %v3367
        %3489 = vadd.xlane.f32.xlu0 %v3488
        %v3490 = vpop.xlane.xlu0 %3489
        %v3491 = vadd.f32 %v3369, %v3371
        %3492 = vadd.xlane.f32.xlu0 %v3491
        %v3493 = vpop.xlane.xlu0 %3492
        %v3494 = vadd.f32 %v3373, %v3375
        %3495 = vadd.xlane.f32.xlu0 %v3494
        %v3496 = vpop.xlane.xlu0 %3495
        %v3497 = vadd.f32 %v3377, %v3379
        %3498 = vadd.xlane.f32.xlu0 %v3497
        %v3499 = vpop.xlane.xlu0 %3498
        %v3500 = vadd.f32 %v3381, %v3383
        %3501 = vadd.xlane.f32.xlu0 %v3500
        %v3502 = vpop.xlane.xlu0 %3501
        %v3503 = vadd.f32 %v3385, %v3387
        %3504 = vadd.xlane.f32.xlu0 %v3503
        %v3505 = vpop.xlane.xlu0 %3504
        %v3506 = vadd.f32 %v3389, %v3391
        %3507 = vadd.xlane.f32.xlu0 %v3506
        %v3508 = vpop.xlane.xlu0 %3507
        %v3509 = vadd.f32 %v3393, %v3395
        %3510 = vadd.xlane.f32.xlu0 %v3509
        %v3511 = vpop.xlane.xlu0 %3510
        %v3512 = vadd.f32 %v3397, %v3399
        %3513 = vadd.xlane.f32.xlu0 %v3512
        %v3514 = vpop.xlane.xlu0 %3513
        %v3515 = vadd.f32 %v3401, %v3403
        %3516 = vadd.xlane.f32.xlu0 %v3515
        %v3517 = vpop.xlane.xlu0 %3516
        %v3518 = vadd.f32 %v3405, %v3407
        %3519 = vadd.xlane.f32.xlu0 %v3518
        %v3520 = vpop.xlane.xlu0 %3519
        %v3521 = vadd.f32 %v3409, %v3411
        %3522 = vadd.xlane.f32.xlu0 %v3521
        %v3523 = vpop.xlane.xlu0 %3522
        %v3524 = vadd.f32 %v3413, %v3415
        %3525 = vadd.xlane.f32.xlu0 %v3524
        %v3526 = vpop.xlane.xlu0 %3525
        %v3527 = vadd.f32 %v3417, %v3419
        %3528 = vadd.xlane.f32.xlu0 %v3527
        %v3529 = vpop.xlane.xlu0 %3528
        %v3530 = vadd.f32 %v3421, %v3423
        %3531 = vadd.xlane.f32.xlu0 %v3530
        %v3532 = vpop.xlane.xlu0 %3531
        %v3533 = vadd.f32 %v3425, %v3427
        %3534 = vadd.xlane.f32.xlu0 %v3533
        %v3535 = vpop.xlane.xlu0 %3534
        %v3536 = vadd.f32 %v3429, %v3431
        %3537 = vadd.xlane.f32.xlu0 %v3536
        %v3538 = vpop.xlane.xlu0 %3537
        %v3539 = vadd.f32 %v3433, %v3435
        %3540 = vadd.xlane.f32.xlu0 %v3539
        %v3541 = vpop.xlane.xlu0 %3540
        %v3542 = vadd.f32 %v3437, %v3439
        %3543 = vadd.xlane.f32.xlu0 %v3542
        %v3544 = vpop.xlane.xlu0 %3543
        %v3545 = vadd.f32 %v3441, %v3443
        %3546 = vadd.xlane.f32.xlu0 %v3545
        %v3547 = vpop.xlane.xlu0 %3546
        %v3548 = vadd.f32 %v3445, %v3447
        %3549 = vadd.xlane.f32.xlu0 %v3548
        %v3550 = vpop.xlane.xlu0 %3549
        %v3551 = vadd.f32 %v3449, %v3451
        %3552 = vadd.xlane.f32.xlu0 %v3551
        %v3553 = vpop.xlane.xlu0 %3552
        %v3554 = vadd.f32 %v3453, %v3455
        %3555 = vadd.xlane.f32.xlu0 %v3554
        %v3556 = vpop.xlane.xlu0 %3555
        %v3557 = vadd.f32 %v3457, %v3459
        %3558 = vadd.xlane.f32.xlu0 %v3557
        %v3559 = vpop.xlane.xlu0 %3558
        %v3560 = vadd.f32 %v3461, %v3463
        %3561 = vadd.xlane.f32.xlu0 %v3560
        %v3562 = vpop.xlane.xlu0 %3561
        %v3563 = vadd.f32 %v3465, %v3467
        %3564 = vadd.xlane.f32.xlu0 %v3563
        %v3565 = vpop.xlane.xlu0 %3564
        %v3566 = vadd.f32 %v3469, %v3471
        %3567 = vadd.xlane.f32.xlu0 %v3566
        %v3568 = vpop.xlane.xlu0 %3567
        %v3569 = vadd.f32 %v3473, %v3475
        %3570 = vadd.xlane.f32.xlu0 %v3569
        %v3571 = vpop.xlane.xlu0 %3570
        %v3572 = vrcp.pop %v3478
        %v3573 = vrcp.pop %v3481
        %v3574 = vrcp.pop %v3484
        %v3575 = vrcp.pop %v3487
        %v3576 = vrcp.pop %v3490
        %v3577 = vrcp.pop %v3493
        %v3578 = vrcp.pop %v3496
        %v3579 = vrcp.pop %v3499
        %v3580 = vrcp.pop %v3502
        %v3581 = vrcp.pop %v3505
        %v3582 = vrcp.pop %v3508
        %v3583 = vrcp.pop %v3511
        %v3584 = vrcp.pop %v3514
        %v3585 = vrcp.pop %v3517
        %v3586 = vrcp.pop %v3520
        %v3587 = vrcp.pop %v3523
        %v3588 = vrcp.pop %v3526
        %v3589 = vrcp.pop %v3529
        %v3590 = vrcp.pop %v3532
        %v3591 = vrcp.pop %v3535
        %v3592 = vrcp.pop %v3538
        %v3593 = vrcp.pop %v3541
        %v3594 = vrcp.pop %v3544
        %v3595 = vrcp.pop %v3547
        %v3596 = vrcp.pop %v3550
        %v3597 = vrcp.pop %v3553
        %v3598 = vrcp.pop %v3556
        %v3599 = vrcp.pop %v3559
        %v3600 = vrcp.pop %v3562
        %v3601 = vrcp.pop %v3565
        %v3602 = vrcp.pop %v3568
        %v3603 = vrcp.pop %v3571
        %v3604 = vmul.f32 %v3349, %v3572
        %v3605 = vmul.f32 %v3351, %v3572
        %v3606 = vmul.f32 %v3353, %v3573
        %v3607 = vmul.f32 %v3355, %v3573
        %v3608 = vmul.f32 %v3357, %v3574
        %v3609 = vmul.f32 %v3359, %v3574
        %v3610 = vmul.f32 %v3361, %v3575
        %v3611 = vmul.f32 %v3363, %v3575
        %v3612 = vmul.f32 %v3365, %v3576
        %v3613 = vmul.f32 %v3367, %v3576
        %v3614 = vmul.f32 %v3369, %v3577
        %v3615 = vmul.f32 %v3371, %v3577
        %v3616 = vmul.f32 %v3373, %v3578
        %v3617 = vmul.f32 %v3375, %v3578
        %v3618 = vmul.f32 %v3377, %v3579
        %v3619 = vmul.f32 %v3379, %v3579
        %v3620 = vmul.f32 %v3381, %v3580
        %v3621 = vmul.f32 %v3383, %v3580
        %v3622 = vmul.f32 %v3385, %v3581
        %v3623 = vmul.f32 %v3387, %v3581
        %v3624 = vmul.f32 %v3389, %v3582
        %v3625 = vmul.f32 %v3391, %v3582
        %v3626 = vmul.f32 %v3393, %v3583
        %v3627 = vmul.f32 %v3395, %v3583
        %v3628 = vmul.f32 %v3397, %v3584
        %v3629 = vmul.f32 %v3399, %v3584
        %v3630 = vmul.f32 %v3401, %v3585
        %v3631 = vmul.f32 %v3403, %v3585
        %v3632 = vmul.f32 %v3405, %v3586
        %v3633 = vmul.f32 %v3407, %v3586
        %v3634 = vmul.f32 %v3409, %v3587
        %v3635 = vmul.f32 %v3411, %v3587
        %v3636 = vmul.f32 %v3413, %v3588
        %v3637 = vmul.f32 %v3415, %v3588
        %v3638 = vmul.f32 %v3417, %v3589
        %v3639 = vmul.f32 %v3419, %v3589
        %v3640 = vmul.f32 %v3421, %v3590
        %v3641 = vmul.f32 %v3423, %v3590
        %v3642 = vmul.f32 %v3425, %v3591
        %v3643 = vmul.f32 %v3427, %v3591
        %v3644 = vmul.f32 %v3429, %v3592
        %v3645 = vmul.f32 %v3431, %v3592
        %v3646 = vmul.f32 %v3433, %v3593
        %v3647 = vmul.f32 %v3435, %v3593
        %v3648 = vmul.f32 %v3437, %v3594
        %v3649 = vmul.f32 %v3439, %v3594
        %v3650 = vmul.f32 %v3441, %v3595
        %v3651 = vmul.f32 %v3443, %v3595
        %v3652 = vmul.f32 %v3445, %v3596
        %v3653 = vmul.f32 %v3447, %v3596
        %v3654 = vmul.f32 %v3449, %v3597
        %v3655 = vmul.f32 %v3451, %v3597
        %v3656 = vmul.f32 %v3453, %v3598
        %v3657 = vmul.f32 %v3455, %v3598
        %v3658 = vmul.f32 %v3457, %v3599
        %v3659 = vmul.f32 %v3459, %v3599
        %v3660 = vmul.f32 %v3461, %v3600
        %v3661 = vmul.f32 %v3463, %v3600
        %v3662 = vmul.f32 %v3465, %v3601
        %v3663 = vmul.f32 %v3467, %v3601
        %v3664 = vmul.f32 %v3469, %v3602
        %v3665 = vmul.f32 %v3471, %v3602
        %v3666 = vmul.f32 %v3473, %v3603
        %v3667 = vmul.f32 %v3475, %v3603
        %v3668 = vpack.c.bf16 %v3606, %v3604
        %v3669 = vpack.c.bf16 %v3607, %v3605
        %v3670 = vpack.c.bf16 %v3610, %v3608
        %v3671 = vpack.c.bf16 %v3611, %v3609
        %v3672 = vpack.c.bf16 %v3614, %v3612
        %v3673 = vpack.c.bf16 %v3615, %v3613
        %v3674 = vpack.c.bf16 %v3618, %v3616
        %v3675 = vpack.c.bf16 %v3619, %v3617
        %v3676 = vpack.c.bf16 %v3622, %v3620
        %v3677 = vpack.c.bf16 %v3623, %v3621
        %v3678 = vpack.c.bf16 %v3626, %v3624
        %v3679 = vpack.c.bf16 %v3627, %v3625
        %v3680 = vpack.c.bf16 %v3630, %v3628
        %v3681 = vpack.c.bf16 %v3631, %v3629
        %v3682 = vpack.c.bf16 %v3634, %v3632
        %v3683 = vpack.c.bf16 %v3635, %v3633
        %v3684 = vpack.c.bf16 %v3638, %v3636
        %v3685 = vpack.c.bf16 %v3639, %v3637
        %v3686 = vpack.c.bf16 %v3642, %v3640
        %v3687 = vpack.c.bf16 %v3643, %v3641
        %v3688 = vpack.c.bf16 %v3646, %v3644
        %v3689 = vpack.c.bf16 %v3647, %v3645
        %v3690 = vpack.c.bf16 %v3650, %v3648
        %v3691 = vpack.c.bf16 %v3651, %v3649
        %v3692 = vpack.c.bf16 %v3654, %v3652
        %v3693 = vpack.c.bf16 %v3655, %v3653
        %v3694 = vpack.c.bf16 %v3658, %v3656
        %v3695 = vpack.c.bf16 %v3659, %v3657
        %v3696 = vpack.c.bf16 %v3662, %v3660
        %v3697 = vpack.c.bf16 %v3663, %v3661
        %v3698 = vpack.c.bf16 %v3666, %v3664
        %v3699 = vpack.c.bf16 %v3667, %v3665
        %3700 = vmatprep.subr.bf16.mxu0 %v3683
        %3701 = vmatpush1.bf16.xpose.msra.mxu0 %v3682
        %3702 = vmatprep.subr.bf16.mxu0 %v3681
        %3703 = vmatpush1.bf16.xpose.msra.mxu0 %v3680
        %3704 = vmatprep.subr.bf16.mxu0 %v3679
        %3705 = vmatpush1.bf16.xpose.msra.mxu0 %v3678
        %3706 = vmatprep.subr.bf16.mxu0 %v3677
        %3707 = vmatpush1.bf16.xpose.msra.mxu0 %v3676
        %3708 = vmatprep.subr.bf16.mxu0 %v3675
        %3709 = vmatpush1.bf16.xpose.msra.mxu0 %v3674
        %3710 = vmatprep.subr.bf16.mxu0 %v3673
        %3711 = vmatpush1.bf16.xpose.msra.mxu0 %v3672
        %3712 = vmatprep.subr.bf16.mxu0 %v3671
        %3713 = vmatpush1.bf16.xpose.msra.mxu0 %v3670
        %3714 = vmatprep.subr.bf16.mxu0 %v3669
        %3715 = vmatpush1.bf16.xpose.msra.mxu0 %v3668
        %3716 = vmatprep.subr.bf16.mxu0 %v3699
        %3717 = vmatpush2.bf16.xpose.msra.mxu0 %v3698
        %3718 = vmatprep.subr.bf16.mxu0 %v3697
        %3719 = vmatpush2.bf16.xpose.msra.mxu0 %v3696
        %3720 = vmatprep.subr.bf16.mxu0 %v3695
        %3721 = vmatpush2.bf16.xpose.msra.mxu0 %v3694
        %3722 = vmatprep.subr.bf16.mxu0 %v3693
        %3723 = vmatpush2.bf16.xpose.msra.mxu0 %v3692
        %3724 = vmatprep.subr.bf16.mxu0 %v3691
        %3725 = vmatpush2.bf16.xpose.msra.mxu0 %v3690
        %3726 = vmatprep.subr.bf16.mxu0 %v3689
        %3727 = vmatpush2.bf16.xpose.msra.mxu0 %v3688
        %3728 = vmatprep.subr.bf16.mxu0 %v3687
        %3729 = vmatpush2.bf16.xpose.msra.mxu0 %v3686
        %3730 = vmatprep.subr.bf16.mxu0 %v3685
        %3731 = vmatpush2.bf16.xpose.msra.mxu0 %v3684
        %3732 = vmatprep.mubr.bf16.mxu0 %v2815
        %3733 = vmatmul.mubr.bf16.gmra.mxu0 %v2814
        %v3734 = vpop.f32.mrf.mxu0
        %v3735 = vadd.f32 0.0, %v3734
        %v3736 = vpop.f32.mrf.mxu0
        %v3737 = vadd.f32 0.0, %v3736
        %v3738 = vpop.f32.mrf.mxu0
        %v3739 = vadd.f32 0.0, %v3738
        %v3740 = vpop.f32.mrf.mxu0
        %v3741 = vadd.f32 0.0, %v3740
        %3742 = vmatprep.mubr.bf16.mxu0 %v2817
        %3743 = vmatmul.mubr.bf16.gmra.mxu0 %v2816
        %v3744 = vpop.f32.mrf.mxu0
        %v3745 = vadd.f32 0.0, %v3744
        %v3746 = vpop.f32.mrf.mxu0
        %v3747 = vadd.f32 0.0, %v3746
        %v3748 = vpop.f32.mrf.mxu0
        %v3749 = vadd.f32 0.0, %v3748
        %v3750 = vpop.f32.mrf.mxu0
        %v3751 = vadd.f32 0.0, %v3750
        %3752 = vdwg.mxu0
        %v3753 = vadd.f32 %v3735, 3.0
        %v3754 = vadd.f32 %v3737, 3.0
        %v3755 = vadd.f32 %v3739, 3.0
        %v3756 = vadd.f32 %v3741, 3.0
        %v3757 = vadd.f32 %v3745, 3.0
        %v3758 = vadd.f32 %v3747, 3.0
        %v3759 = vadd.f32 %v3749, 3.0
        %v3760 = vadd.f32 %v3751, 3.0
        %v3761 = vmax.f32 %v3753, 0.0
        %v3762 = vmax.f32 %v3754, 0.0
        %v3763 = vmax.f32 %v3755, 0.0
        %v3764 = vmax.f32 %v3756, 0.0
        %v3765 = vmax.f32 %v3757, 0.0
        %v3766 = vmax.f32 %v3758, 0.0
        %v3767 = vmax.f32 %v3759, 0.0
        %v3768 = vmax.f32 %v3760, 0.0
        %v3769 = vmin.f32 %v3761, 6.0
        %v3770 = vmin.f32 %v3762, 6.0
        %v3771 = vmin.f32 %v3763, 6.0
        %v3772 = vmin.f32 %v3764, 6.0
        %v3773 = vmin.f32 %v3765, 6.0
        %v3774 = vmin.f32 %v3766, 6.0
        %v3775 = vmin.f32 %v3767, 6.0
        %v3776 = vmin.f32 %v3768, 6.0
        %v3777 = vmul.f32 %v3735, %v3769
        %v3778 = vmul.f32 %v3737, %v3770
        %v3779 = vmul.f32 %v3739, %v3771
        %v3780 = vmul.f32 %v3741, %v3772
        %v3781 = vmul.f32 %v3745, %v3773
        %v3782 = vmul.f32 %v3747, %v3774
        %v3783 = vmul.f32 %v3749, %v3775
        %v3784 = vmul.f32 %v3751, %v3776
        %v3785 = vmul.f32 %v3777, 0.16666667
        %v3786 = vmul.f32 %v3778, 0.16666667
        %v3787 = vmul.f32 %v3779, 0.16666667
        %v3788 = vmul.f32 %v3780, 0.16666667
        %v3789 = vmul.f32 %v3781, 0.16666667
        %v3790 = vmul.f32 %v3782, 0.16666667
        %v3791 = vmul.f32 %v3783, 0.16666667
        %v3792 = vmul.f32 %v3784, 0.16666667
        %v3793 = vpack.c.bf16 %v3787, %v3785
        %v3794 = vpack.c.bf16 %v3788, %v3786
        %v3795 = vpack.c.bf16 %v3791, %v3789
        %v3796 = vpack.c.bf16 %v3792, %v3790
        %v3797 = vpack.c.bf16 %v712, %v708
        %v3798 = vpack.c.bf16 %v714, %v710
        %v3799 = vpack.c.bf16 %v752, %v748
        %v3800 = vpack.c.bf16 %v754, %v750
        %v3801 = vpack.c.bf16 %v822, %v818
        %v3802 = vpack.c.bf16 %v824, %v820
        %v3803 = vpack.c.bf16 %v832, %v828
        %v3804 = vpack.c.bf16 %v834, %v830
        %s3805 = scalar_lea.vmem [#allocation2], 768
        %v3806 = vld [vmem:[%s3805] sm:$0xff]
        %v3807 = vld [vmem:[%s3805 + $0x8] sm:$0xff]
        %v3808 = vld [vmem:[%s3805 + $0x10] sm:$0xff]
        %v3809 = vld [vmem:[%s3805 + $0x18] sm:$0xff]
        %v3810 = vld [vmem:[%s3805 + $0x20] sm:$0xff]
        %v3811 = vld [vmem:[%s3805 + $0x28] sm:$0xff]
        %v3812 = vld [vmem:[%s3805 + $0x30] sm:$0xff]
        %v3813 = vld [vmem:[%s3805 + $0x38] sm:$0xff]
        %v3814 = vld [vmem:[%s3805 + $0x40] sm:$0xff]
        %v3815 = vld [vmem:[%s3805 + $0x48] sm:$0xff]
        %v3816 = vld [vmem:[%s3805 + $0x50] sm:$0xff]
        %v3817 = vld [vmem:[%s3805 + $0x58] sm:$0xff]
        %v3818 = vld [vmem:[%s3805 + $0x60] sm:$0xff]
        %v3819 = vld [vmem:[%s3805 + $0x68] sm:$0xff]
        %v3820 = vld [vmem:[%s3805 + $0x70] sm:$0xff]
        %v3821 = vld [vmem:[%s3805 + $0x78] sm:$0xff]
        %v3822 = vld [vmem:[%s3805 + $0x80] sm:$0xff]
        %v3823 = vld [vmem:[%s3805 + $0x88] sm:$0xff]
        %v3824 = vld [vmem:[%s3805 + $0x90] sm:$0xff]
        %v3825 = vld [vmem:[%s3805 + $0x98] sm:$0xff]
        %v3826 = vld [vmem:[%s3805 + $0xa0] sm:$0xff]
        %v3827 = vld [vmem:[%s3805 + $0xa8] sm:$0xff]
        %v3828 = vld [vmem:[%s3805 + $0xb0] sm:$0xff]
        %v3829 = vld [vmem:[%s3805 + $0xb8] sm:$0xff]
        %v3830 = vld [vmem:[%s3805 + $0xc0] sm:$0xff]
        %v3831 = vld [vmem:[%s3805 + $0xc8] sm:$0xff]
        %v3832 = vld [vmem:[%s3805 + $0xd0] sm:$0xff]
        %v3833 = vld [vmem:[%s3805 + $0xd8] sm:$0xff]
        %v3834 = vld [vmem:[%s3805 + $0xe0] sm:$0xff]
        %v3835 = vld [vmem:[%s3805 + $0xe8] sm:$0xff]
        %v3836 = vld [vmem:[%s3805 + $0xf0] sm:$0xff]
        %v3837 = vld [vmem:[%s3805 + $0xf8] sm:$0xff]
        %v3838 = vunpack.c.l.bf16 %v3806
        %v3839 = vunpack.c.h.bf16 %v3806
        %v3840 = vunpack.c.l.bf16 %v3807
        %v3841 = vunpack.c.h.bf16 %v3807
        %v3842 = vunpack.c.l.bf16 %v3808
        %v3843 = vunpack.c.h.bf16 %v3808
        %v3844 = vunpack.c.l.bf16 %v3809
        %v3845 = vunpack.c.h.bf16 %v3809
        %v3846 = vunpack.c.l.bf16 %v3810
        %v3847 = vunpack.c.h.bf16 %v3810
        %v3848 = vunpack.c.l.bf16 %v3811
        %v3849 = vunpack.c.h.bf16 %v3811
        %v3850 = vunpack.c.l.bf16 %v3812
        %v3851 = vunpack.c.h.bf16 %v3812
        %v3852 = vunpack.c.l.bf16 %v3813
        %v3853 = vunpack.c.h.bf16 %v3813
        %v3854 = vunpack.c.l.bf16 %v3814
        %v3855 = vunpack.c.h.bf16 %v3814
        %v3856 = vunpack.c.l.bf16 %v3815
        %v3857 = vunpack.c.h.bf16 %v3815
        %v3858 = vunpack.c.l.bf16 %v3816
        %v3859 = vunpack.c.h.bf16 %v3816
        %v3860 = vunpack.c.l.bf16 %v3817
        %v3861 = vunpack.c.h.bf16 %v3817
        %v3862 = vunpack.c.l.bf16 %v3818
        %v3863 = vunpack.c.h.bf16 %v3818
        %v3864 = vunpack.c.l.bf16 %v3819
        %v3865 = vunpack.c.h.bf16 %v3819
        %v3866 = vunpack.c.l.bf16 %v3820
        %v3867 = vunpack.c.h.bf16 %v3820
        %v3868 = vunpack.c.l.bf16 %v3821
        %v3869 = vunpack.c.h.bf16 %v3821
        %v3870 = vunpack.c.l.bf16 %v3822
        %v3871 = vunpack.c.h.bf16 %v3822
        %v3872 = vunpack.c.l.bf16 %v3823
        %v3873 = vunpack.c.h.bf16 %v3823
        %v3874 = vunpack.c.l.bf16 %v3824
        %v3875 = vunpack.c.h.bf16 %v3824
        %v3876 = vunpack.c.l.bf16 %v3825
        %v3877 = vunpack.c.h.bf16 %v3825
        %v3878 = vunpack.c.l.bf16 %v3826
        %v3879 = vunpack.c.h.bf16 %v3826
        %v3880 = vunpack.c.l.bf16 %v3827
        %v3881 = vunpack.c.h.bf16 %v3827
        %v3882 = vunpack.c.l.bf16 %v3828
        %v3883 = vunpack.c.h.bf16 %v3828
        %v3884 = vunpack.c.l.bf16 %v3829
        %v3885 = vunpack.c.h.bf16 %v3829
        %v3886 = vunpack.c.l.bf16 %v3830
        %v3887 = vunpack.c.h.bf16 %v3830
        %v3888 = vunpack.c.l.bf16 %v3831
        %v3889 = vunpack.c.h.bf16 %v3831
        %v3890 = vunpack.c.l.bf16 %v3832
        %v3891 = vunpack.c.h.bf16 %v3832
        %v3892 = vunpack.c.l.bf16 %v3833
        %v3893 = vunpack.c.h.bf16 %v3833
        %v3894 = vunpack.c.l.bf16 %v3834
        %v3895 = vunpack.c.h.bf16 %v3834
        %v3896 = vunpack.c.l.bf16 %v3835
        %v3897 = vunpack.c.h.bf16 %v3835
        %v3898 = vunpack.c.l.bf16 %v3836
        %v3899 = vunpack.c.h.bf16 %v3836
        %v3900 = vunpack.c.l.bf16 %v3837
        %v3901 = vunpack.c.h.bf16 %v3837
        %3902 = vxpose.xlu0.c.b16.start [1/8] %v3797, 128
        %3903 = vxpose.xlu0.c.b16.cont [2/8] 0, 128
        %3904 = vxpose.xlu0.c.b16.cont [3/8] 0, 128
        %3905 = vxpose.xlu0.c.b16.cont [4/8] 0, 128
        %3906 = vxpose.xlu0.c.b16.cont [5/8] 0, 128
        %3907 = vxpose.xlu0.c.b16.cont [6/8] 0, 128
        %3908 = vxpose.xlu0.c.b16.cont [7/8] 0, 128
        %3909 = vxpose.xlu0.c.b16.end [8/8] 0, 128
        %v3910 = vpop.trf.xlu0
        %v3911 = vpop.trf.xlu0
        %v3912 = vpop.trf.xlu0
        %v3913 = vpop.trf.xlu0
        %v3914 = vpop.trf.xlu0
        %v3915 = vpop.trf.xlu0
        %v3916 = vpop.trf.xlu0
        %v3917 = vpop.trf.xlu0
        %3918 = vxpose.xlu0.c.b16.start [1/8] %v3798, 128
        %3919 = vxpose.xlu0.c.b16.cont [2/8] 0, 128
        %3920 = vxpose.xlu0.c.b16.cont [3/8] 0, 128
        %3921 = vxpose.xlu0.c.b16.cont [4/8] 0, 128
        %3922 = vxpose.xlu0.c.b16.cont [5/8] 0, 128
        %3923 = vxpose.xlu0.c.b16.cont [6/8] 0, 128
        %3924 = vxpose.xlu0.c.b16.cont [7/8] 0, 128
        %3925 = vxpose.xlu0.c.b16.end [8/8] 0, 128
        %v3926 = vpop.trf.xlu0
        %v3927 = vpop.trf.xlu0
        %v3928 = vpop.trf.xlu0
        %v3929 = vpop.trf.xlu0
        %v3930 = vpop.trf.xlu0
        %v3931 = vpop.trf.xlu0
        %v3932 = vpop.trf.xlu0
        %v3933 = vpop.trf.xlu0
        %v3935 = vsel %vm972, %v3910, 0
        %v3938 = vsel %vm972, %v3911, 0
        %v3941 = vsel %vm972, %v3912, 0
        %v3944 = vsel %vm972, %v3913, 0
        %v3947 = vsel %vm972, %v3914, 0
        %v3950 = vsel %vm972, %v3915, 0
        %v3953 = vsel %vm972, %v3916, 0
        %v3956 = vsel %vm972, %v3917, 0
        %v3959 = vsel %vm972, %v3926, 0
        %v3962 = vsel %vm972, %v3927, 0
        %v3965 = vsel %vm972, %v3928, 0
        %v3968 = vsel %vm972, %v3929, 0
        %v3971 = vsel %vm972, %v3930, 0
        %v3974 = vsel %vm972, %v3931, 0
        %v3977 = vsel %vm972, %v3932, 0
        %v3980 = vsel %vm972, %v3933, 0
        %3982 = vmatprep.subr.bf16.mxu0 0
        %3983 = vmatpush1.bf16.msra.mxu0 0
        %3984 = vmatprep.subr.bf16.mxu0 0
        %3985 = vmatpush1.bf16.msra.mxu0 0
        %3986 = vmatprep.subr.bf16.mxu0 0
        %3987 = vmatpush1.bf16.msra.mxu0 0
        %3988 = vmatprep.subr.bf16.mxu0 0
        %3989 = vmatpush1.bf16.msra.mxu0 0
        %3990 = vmatprep.subr.bf16.mxu0 0
        %3991 = vmatpush1.bf16.msra.mxu0 0
        %3992 = vmatprep.subr.bf16.mxu0 0
        %3993 = vmatpush1.bf16.msra.mxu0 0
        %3994 = vmatprep.subr.bf16.mxu0 0
        %3995 = vmatpush1.bf16.msra.mxu0 0
        %3996 = vmatprep.subr.bf16.mxu0 %v3800
        %3997 = vmatpush1.bf16.msra.mxu0 %v3799
        %3998 = vmatprep.subr.bf16.mxu0 0
        %3999 = vmatpush2.bf16.msra.mxu0 0
        %4000 = vmatprep.subr.bf16.mxu0 0
        %4001 = vmatpush2.bf16.msra.mxu0 0
        %4002 = vmatprep.subr.bf16.mxu0 0
        %4003 = vmatpush2.bf16.msra.mxu0 0
        %4004 = vmatprep.subr.bf16.mxu0 0
        %4005 = vmatpush2.bf16.msra.mxu0 0
        %4006 = vmatprep.subr.bf16.mxu0 0
        %4007 = vmatpush2.bf16.msra.mxu0 0
        %4008 = vmatprep.subr.bf16.mxu0 0
        %4009 = vmatpush2.bf16.msra.mxu0 0
        %4010 = vmatprep.subr.bf16.mxu0 0
        %4011 = vmatpush2.bf16.msra.mxu0 0
        %4012 = vmatprep.subr.bf16.mxu0 0
        %4013 = vmatpush2.bf16.msra.mxu0 0
        %4014 = vmatprep.mubr.bf16.mxu0 0
        %4015 = vmatmul.mubr.bf16.gmra.mxu0 %v3935
        %v4016 = vpop.f32.mrf.mxu0
        %v4017 = vadd.f32 %v3838, %v4016
        %v4018 = vpop.f32.mrf.mxu0
        %v4019 = vadd.f32 %v3839, %v4018
        %v4020 = vpop.f32.mrf.mxu0
        %v4021 = vadd.f32 %v3840, %v4020
        %v4022 = vpop.f32.mrf.mxu0
        %v4023 = vadd.f32 %v3841, %v4022
        %4024 = vmatprep.mubr.bf16.mxu0 0
        %4025 = vmatmul.mubr.bf16.gmra.mxu0 %v3938
        %v4026 = vpop.f32.mrf.mxu0
        %v4027 = vadd.f32 %v3842, %v4026
        %v4028 = vpop.f32.mrf.mxu0
        %v4029 = vadd.f32 %v3843, %v4028
        %v4030 = vpop.f32.mrf.mxu0
        %v4031 = vadd.f32 %v3844, %v4030
        %v4032 = vpop.f32.mrf.mxu0
        %v4033 = vadd.f32 %v3845, %v4032
        %4034 = vmatprep.mubr.bf16.mxu0 0
        %4035 = vmatmul.mubr.bf16.gmra.mxu0 %v3941
        %v4036 = vpop.f32.mrf.mxu0
        %v4037 = vadd.f32 %v3846, %v4036
        %v4038 = vpop.f32.mrf.mxu0
        %v4039 = vadd.f32 %v3847, %v4038
        %v4040 = vpop.f32.mrf.mxu0
        %v4041 = vadd.f32 %v3848, %v4040
        %v4042 = vpop.f32.mrf.mxu0
        %v4043 = vadd.f32 %v3849, %v4042
        %4044 = vmatprep.mubr.bf16.mxu0 0
        %4045 = vmatmul.mubr.bf16.gmra.mxu0 %v3944
        %v4046 = vpop.f32.mrf.mxu0
        %v4047 = vadd.f32 %v3850, %v4046
        %v4048 = vpop.f32.mrf.mxu0
        %v4049 = vadd.f32 %v3851, %v4048
        %v4050 = vpop.f32.mrf.mxu0
        %v4051 = vadd.f32 %v3852, %v4050
        %v4052 = vpop.f32.mrf.mxu0
        %v4053 = vadd.f32 %v3853, %v4052
        %4054 = vmatprep.mubr.bf16.mxu0 0
        %4055 = vmatmul.mubr.bf16.gmra.mxu0 %v3947
        %v4056 = vpop.f32.mrf.mxu0
        %v4057 = vadd.f32 %v3854, %v4056
        %v4058 = vpop.f32.mrf.mxu0
        %v4059 = vadd.f32 %v3855, %v4058
        %v4060 = vpop.f32.mrf.mxu0
        %v4061 = vadd.f32 %v3856, %v4060
        %v4062 = vpop.f32.mrf.mxu0
        %v4063 = vadd.f32 %v3857, %v4062
        %4064 = vmatprep.mubr.bf16.mxu0 0
        %4065 = vmatmul.mubr.bf16.gmra.mxu0 %v3950
        %v4066 = vpop.f32.mrf.mxu0
        %v4067 = vadd.f32 %v3858, %v4066
        %v4068 = vpop.f32.mrf.mxu0
        %v4069 = vadd.f32 %v3859, %v4068
        %v4070 = vpop.f32.mrf.mxu0
        %v4071 = vadd.f32 %v3860, %v4070
        %v4072 = vpop.f32.mrf.mxu0
        %v4073 = vadd.f32 %v3861, %v4072
        %4074 = vmatprep.mubr.bf16.mxu0 0
        %4075 = vmatmul.mubr.bf16.gmra.mxu0 %v3953
        %v4076 = vpop.f32.mrf.mxu0
        %v4077 = vadd.f32 %v3862, %v4076
        %v4078 = vpop.f32.mrf.mxu0
        %v4079 = vadd.f32 %v3863, %v4078
        %v4080 = vpop.f32.mrf.mxu0
        %v4081 = vadd.f32 %v3864, %v4080
        %v4082 = vpop.f32.mrf.mxu0
        %v4083 = vadd.f32 %v3865, %v4082
        %4084 = vmatprep.mubr.bf16.mxu0 0
        %4085 = vmatmul.mubr.bf16.gmra.mxu0 %v3956
        %v4086 = vpop.f32.mrf.mxu0
        %v4087 = vadd.f32 %v3866, %v4086
        %v4088 = vpop.f32.mrf.mxu0
        %v4089 = vadd.f32 %v3867, %v4088
        %v4090 = vpop.f32.mrf.mxu0
        %v4091 = vadd.f32 %v3868, %v4090
        %v4092 = vpop.f32.mrf.mxu0
        %v4093 = vadd.f32 %v3869, %v4092
        %4094 = vmatprep.mubr.bf16.mxu0 0
        %4095 = vmatmul.mubr.bf16.gmra.mxu0 %v3959
        %v4096 = vpop.f32.mrf.mxu0
        %v4097 = vadd.f32 %v3870, %v4096
        %v4098 = vpop.f32.mrf.mxu0
        %v4099 = vadd.f32 %v3871, %v4098
        %v4100 = vpop.f32.mrf.mxu0
        %v4101 = vadd.f32 %v3872, %v4100
        %v4102 = vpop.f32.mrf.mxu0
        %v4103 = vadd.f32 %v3873, %v4102
        %4104 = vmatprep.mubr.bf16.mxu0 0
        %4105 = vmatmul.mubr.bf16.gmra.mxu0 %v3962
        %v4106 = vpop.f32.mrf.mxu0
        %v4107 = vadd.f32 %v3874, %v4106
        %v4108 = vpop.f32.mrf.mxu0
        %v4109 = vadd.f32 %v3875, %v4108
        %v4110 = vpop.f32.mrf.mxu0
        %v4111 = vadd.f32 %v3876, %v4110
        %v4112 = vpop.f32.mrf.mxu0
        %v4113 = vadd.f32 %v3877, %v4112
        %4114 = vmatprep.mubr.bf16.mxu0 0
        %4115 = vmatmul.mubr.bf16.gmra.mxu0 %v3965
        %v4116 = vpop.f32.mrf.mxu0
        %v4117 = vadd.f32 %v3878, %v4116
        %v4118 = vpop.f32.mrf.mxu0
        %v4119 = vadd.f32 %v3879, %v4118
        %v4120 = vpop.f32.mrf.mxu0
        %v4121 = vadd.f32 %v3880, %v4120
        %v4122 = vpop.f32.mrf.mxu0
        %v4123 = vadd.f32 %v3881, %v4122
        %4124 = vmatprep.mubr.bf16.mxu0 0
        %4125 = vmatmul.mubr.bf16.gmra.mxu0 %v3968
        %v4126 = vpop.f32.mrf.mxu0
        %v4127 = vadd.f32 %v3882, %v4126
        %v4128 = vpop.f32.mrf.mxu0
        %v4129 = vadd.f32 %v3883, %v4128
        %v4130 = vpop.f32.mrf.mxu0
        %v4131 = vadd.f32 %v3884, %v4130
        %v4132 = vpop.f32.mrf.mxu0
        %v4133 = vadd.f32 %v3885, %v4132
        %4134 = vmatprep.mubr.bf16.mxu0 0
        %4135 = vmatmul.mubr.bf16.gmra.mxu0 %v3971
        %v4136 = vpop.f32.mrf.mxu0
        %v4137 = vadd.f32 %v3886, %v4136
        %v4138 = vpop.f32.mrf.mxu0
        %v4139 = vadd.f32 %v3887, %v4138
        %v4140 = vpop.f32.mrf.mxu0
        %v4141 = vadd.f32 %v3888, %v4140
        %v4142 = vpop.f32.mrf.mxu0
        %v4143 = vadd.f32 %v3889, %v4142
        %4144 = vmatprep.mubr.bf16.mxu0 0
        %4145 = vmatmul.mubr.bf16.gmra.mxu0 %v3974
        %v4146 = vpop.f32.mrf.mxu0
        %v4147 = vadd.f32 %v3890, %v4146
        %v4148 = vpop.f32.mrf.mxu0
        %v4149 = vadd.f32 %v3891, %v4148
        %v4150 = vpop.f32.mrf.mxu0
        %v4151 = vadd.f32 %v3892, %v4150
        %v4152 = vpop.f32.mrf.mxu0
        %v4153 = vadd.f32 %v3893, %v4152
        %4154 = vmatprep.mubr.bf16.mxu0 0
        %4155 = vmatmul.mubr.bf16.gmra.mxu0 %v3977
        %v4156 = vpop.f32.mrf.mxu0
        %v4157 = vadd.f32 %v3894, %v4156
        %v4158 = vpop.f32.mrf.mxu0
        %v4159 = vadd.f32 %v3895, %v4158
        %v4160 = vpop.f32.mrf.mxu0
        %v4161 = vadd.f32 %v3896, %v4160
        %v4162 = vpop.f32.mrf.mxu0
        %v4163 = vadd.f32 %v3897, %v4162
        %4164 = vmatprep.mubr.bf16.mxu0 0
        %4165 = vmatmul.mubr.bf16.gmra.mxu0 %v3980
        %v4166 = vpop.f32.mrf.mxu0
        %v4167 = vadd.f32 %v3898, %v4166
        %v4168 = vpop.f32.mrf.mxu0
        %v4169 = vadd.f32 %v3899, %v4168
        %v4170 = vpop.f32.mrf.mxu0
        %v4171 = vadd.f32 %v3900, %v4170
        %v4172 = vpop.f32.mrf.mxu0
        %v4173 = vadd.f32 %v3901, %v4172
        %4174 = vdwg.mxu0
        %v4175 = vmax.f32 %v4017, %v4019
        %4176 = vmax.xlane.f32.xlu0 %v4175
        %v4177 = vpop.xlane.xlu0 %4176
        %v4178 = vmax.f32 %v4021, %v4023
        %4179 = vmax.xlane.f32.xlu0 %v4178
        %v4180 = vpop.xlane.xlu0 %4179
        %v4181 = vmax.f32 %v4027, %v4029
        %4182 = vmax.xlane.f32.xlu0 %v4181
        %v4183 = vpop.xlane.xlu0 %4182
        %v4184 = vmax.f32 %v4031, %v4033
        %4185 = vmax.xlane.f32.xlu0 %v4184
        %v4186 = vpop.xlane.xlu0 %4185
        %v4187 = vmax.f32 %v4037, %v4039
        %4188 = vmax.xlane.f32.xlu0 %v4187
        %v4189 = vpop.xlane.xlu0 %4188
        %v4190 = vmax.f32 %v4041, %v4043
        %4191 = vmax.xlane.f32.xlu0 %v4190
        %v4192 = vpop.xlane.xlu0 %4191
        %v4193 = vmax.f32 %v4047, %v4049
        %4194 = vmax.xlane.f32.xlu0 %v4193
        %v4195 = vpop.xlane.xlu0 %4194
        %v4196 = vmax.f32 %v4051, %v4053
        %4197 = vmax.xlane.f32.xlu0 %v4196
        %v4198 = vpop.xlane.xlu0 %4197
        %v4199 = vmax.f32 %v4057, %v4059
        %4200 = vmax.xlane.f32.xlu0 %v4199
        %v4201 = vpop.xlane.xlu0 %4200
        %v4202 = vmax.f32 %v4061, %v4063
        %4203 = vmax.xlane.f32.xlu0 %v4202
        %v4204 = vpop.xlane.xlu0 %4203
        %v4205 = vmax.f32 %v4067, %v4069
        %4206 = vmax.xlane.f32.xlu0 %v4205
        %v4207 = vpop.xlane.xlu0 %4206
        %v4208 = vmax.f32 %v4071, %v4073
        %4209 = vmax.xlane.f32.xlu0 %v4208
        %v4210 = vpop.xlane.xlu0 %4209
        %v4211 = vmax.f32 %v4077, %v4079
        %4212 = vmax.xlane.f32.xlu0 %v4211
        %v4213 = vpop.xlane.xlu0 %4212
        %v4214 = vmax.f32 %v4081, %v4083
        %4215 = vmax.xlane.f32.xlu0 %v4214
        %v4216 = vpop.xlane.xlu0 %4215
        %v4217 = vmax.f32 %v4087, %v4089
        %4218 = vmax.xlane.f32.xlu0 %v4217
        %v4219 = vpop.xlane.xlu0 %4218
        %v4220 = vmax.f32 %v4091, %v4093
        %4221 = vmax.xlane.f32.xlu0 %v4220
        %v4222 = vpop.xlane.xlu0 %4221
        %v4223 = vmax.f32 %v4097, %v4099
        %4224 = vmax.xlane.f32.xlu0 %v4223
        %v4225 = vpop.xlane.xlu0 %4224
        %v4226 = vmax.f32 %v4101, %v4103
        %4227 = vmax.xlane.f32.xlu0 %v4226
        %v4228 = vpop.xlane.xlu0 %4227
        %v4229 = vmax.f32 %v4107, %v4109
        %4230 = vmax.xlane.f32.xlu0 %v4229
        %v4231 = vpop.xlane.xlu0 %4230
        %v4232 = vmax.f32 %v4111, %v4113
        %4233 = vmax.xlane.f32.xlu0 %v4232
        %v4234 = vpop.xlane.xlu0 %4233
        %v4235 = vmax.f32 %v4117, %v4119
        %4236 = vmax.xlane.f32.xlu0 %v4235
        %v4237 = vpop.xlane.xlu0 %4236
        %v4238 = vmax.f32 %v4121, %v4123
        %4239 = vmax.xlane.f32.xlu0 %v4238
        %v4240 = vpop.xlane.xlu0 %4239
        %v4241 = vmax.f32 %v4127, %v4129
        %4242 = vmax.xlane.f32.xlu0 %v4241
        %v4243 = vpop.xlane.xlu0 %4242
        %v4244 = vmax.f32 %v4131, %v4133
        %4245 = vmax.xlane.f32.xlu0 %v4244
        %v4246 = vpop.xlane.xlu0 %4245
        %v4247 = vmax.f32 %v4137, %v4139
        %4248 = vmax.xlane.f32.xlu0 %v4247
        %v4249 = vpop.xlane.xlu0 %4248
        %v4250 = vmax.f32 %v4141, %v4143
        %4251 = vmax.xlane.f32.xlu0 %v4250
        %v4252 = vpop.xlane.xlu0 %4251
        %v4253 = vmax.f32 %v4147, %v4149
        %4254 = vmax.xlane.f32.xlu0 %v4253
        %v4255 = vpop.xlane.xlu0 %4254
        %v4256 = vmax.f32 %v4151, %v4153
        %4257 = vmax.xlane.f32.xlu0 %v4256
        %v4258 = vpop.xlane.xlu0 %4257
        %v4259 = vmax.f32 %v4157, %v4159
        %4260 = vmax.xlane.f32.xlu0 %v4259
        %v4261 = vpop.xlane.xlu0 %4260
        %v4262 = vmax.f32 %v4161, %v4163
        %4263 = vmax.xlane.f32.xlu0 %v4262
        %v4264 = vpop.xlane.xlu0 %4263
        %v4265 = vmax.f32 %v4167, %v4169
        %4266 = vmax.xlane.f32.xlu0 %v4265
        %v4267 = vpop.xlane.xlu0 %4266
        %v4268 = vmax.f32 %v4171, %v4173
        %4269 = vmax.xlane.f32.xlu0 %v4268
        %v4270 = vpop.xlane.xlu0 %4269
        %v4271 = vsub.f32 %v4017, %v4177
        %v4272 = vsub.f32 %v4019, %v4177
        %v4273 = vsub.f32 %v4021, %v4180
        %v4274 = vsub.f32 %v4023, %v4180
        %v4275 = vsub.f32 %v4027, %v4183
        %v4276 = vsub.f32 %v4029, %v4183
        %v4277 = vsub.f32 %v4031, %v4186
        %v4278 = vsub.f32 %v4033, %v4186
        %v4279 = vsub.f32 %v4037, %v4189
        %v4280 = vsub.f32 %v4039, %v4189
        %v4281 = vsub.f32 %v4041, %v4192
        %v4282 = vsub.f32 %v4043, %v4192
        %v4283 = vsub.f32 %v4047, %v4195
        %v4284 = vsub.f32 %v4049, %v4195
        %v4285 = vsub.f32 %v4051, %v4198
        %v4286 = vsub.f32 %v4053, %v4198
        %v4287 = vsub.f32 %v4057, %v4201
        %v4288 = vsub.f32 %v4059, %v4201
        %v4289 = vsub.f32 %v4061, %v4204
        %v4290 = vsub.f32 %v4063, %v4204
        %v4291 = vsub.f32 %v4067, %v4207
        %v4292 = vsub.f32 %v4069, %v4207
        %v4293 = vsub.f32 %v4071, %v4210
        %v4294 = vsub.f32 %v4073, %v4210
        %v4295 = vsub.f32 %v4077, %v4213
        %v4296 = vsub.f32 %v4079, %v4213
        %v4297 = vsub.f32 %v4081, %v4216
        %v4298 = vsub.f32 %v4083, %v4216
        %v4299 = vsub.f32 %v4087, %v4219
        %v4300 = vsub.f32 %v4089, %v4219
        %v4301 = vsub.f32 %v4091, %v4222
        %v4302 = vsub.f32 %v4093, %v4222
        %v4303 = vsub.f32 %v4097, %v4225
        %v4304 = vsub.f32 %v4099, %v4225
        %v4305 = vsub.f32 %v4101, %v4228
        %v4306 = vsub.f32 %v4103, %v4228
        %v4307 = vsub.f32 %v4107, %v4231
        %v4308 = vsub.f32 %v4109, %v4231
        %v4309 = vsub.f32 %v4111, %v4234
        %v4310 = vsub.f32 %v4113, %v4234
        %v4311 = vsub.f32 %v4117, %v4237
        %v4312 = vsub.f32 %v4119, %v4237
        %v4313 = vsub.f32 %v4121, %v4240
        %v4314 = vsub.f32 %v4123, %v4240
        %v4315 = vsub.f32 %v4127, %v4243
        %v4316 = vsub.f32 %v4129, %v4243
        %v4317 = vsub.f32 %v4131, %v4246
        %v4318 = vsub.f32 %v4133, %v4246
        %v4319 = vsub.f32 %v4137, %v4249
        %v4320 = vsub.f32 %v4139, %v4249
        %v4321 = vsub.f32 %v4141, %v4252
        %v4322 = vsub.f32 %v4143, %v4252
        %v4323 = vsub.f32 %v4147, %v4255
        %v4324 = vsub.f32 %v4149, %v4255
        %v4325 = vsub.f32 %v4151, %v4258
        %v4326 = vsub.f32 %v4153, %v4258
        %v4327 = vsub.f32 %v4157, %v4261
        %v4328 = vsub.f32 %v4159, %v4261
        %v4329 = vsub.f32 %v4161, %v4264
        %v4330 = vsub.f32 %v4163, %v4264
        %v4331 = vsub.f32 %v4167, %v4267
        %v4332 = vsub.f32 %v4169, %v4267
        %v4333 = vsub.f32 %v4171, %v4270
        %v4334 = vsub.f32 %v4173, %v4270
        %v4335 = vmul.f32 %v4271, 1.442695
        %v4336 = vpow.pop %v4335
        %v4337 = vmul.f32 %v4272, 1.442695
        %v4338 = vpow.pop %v4337
        %v4339 = vmul.f32 %v4273, 1.442695
        %v4340 = vpow.pop %v4339
        %v4341 = vmul.f32 %v4274, 1.442695
        %v4342 = vpow.pop %v4341
        %v4343 = vmul.f32 %v4275, 1.442695
        %v4344 = vpow.pop %v4343
        %v4345 = vmul.f32 %v4276, 1.442695
        %v4346 = vpow.pop %v4345
        %v4347 = vmul.f32 %v4277, 1.442695
        %v4348 = vpow.pop %v4347
        %v4349 = vmul.f32 %v4278, 1.442695
        %v4350 = vpow.pop %v4349
        %v4351 = vmul.f32 %v4279, 1.442695
        %v4352 = vpow.pop %v4351
        %v4353 = vmul.f32 %v4280, 1.442695
        %v4354 = vpow.pop %v4353
        %v4355 = vmul.f32 %v4281, 1.442695
        %v4356 = vpow.pop %v4355
        %v4357 = vmul.f32 %v4282, 1.442695
        %v4358 = vpow.pop %v4357
        %v4359 = vmul.f32 %v4283, 1.442695
        %v4360 = vpow.pop %v4359
        %v4361 = vmul.f32 %v4284, 1.442695
        %v4362 = vpow.pop %v4361
        %v4363 = vmul.f32 %v4285, 1.442695
        %v4364 = vpow.pop %v4363
        %v4365 = vmul.f32 %v4286, 1.442695
        %v4366 = vpow.pop %v4365
        %v4367 = vmul.f32 %v4287, 1.442695
        %v4368 = vpow.pop %v4367
        %v4369 = vmul.f32 %v4288, 1.442695
        %v4370 = vpow.pop %v4369
        %v4371 = vmul.f32 %v4289, 1.442695
        %v4372 = vpow.pop %v4371
        %v4373 = vmul.f32 %v4290, 1.442695
        %v4374 = vpow.pop %v4373
        %v4375 = vmul.f32 %v4291, 1.442695
        %v4376 = vpow.pop %v4375
        %v4377 = vmul.f32 %v4292, 1.442695
        %v4378 = vpow.pop %v4377
        %v4379 = vmul.f32 %v4293, 1.442695
        %v4380 = vpow.pop %v4379
        %v4381 = vmul.f32 %v4294, 1.442695
        %v4382 = vpow.pop %v4381
        %v4383 = vmul.f32 %v4295, 1.442695
        %v4384 = vpow.pop %v4383
        %v4385 = vmul.f32 %v4296, 1.442695
        %v4386 = vpow.pop %v4385
        %v4387 = vmul.f32 %v4297, 1.442695
        %v4388 = vpow.pop %v4387
        %v4389 = vmul.f32 %v4298, 1.442695
        %v4390 = vpow.pop %v4389
        %v4391 = vmul.f32 %v4299, 1.442695
        %v4392 = vpow.pop %v4391
        %v4393 = vmul.f32 %v4300, 1.442695
        %v4394 = vpow.pop %v4393
        %v4395 = vmul.f32 %v4301, 1.442695
        %v4396 = vpow.pop %v4395
        %v4397 = vmul.f32 %v4302, 1.442695
        %v4398 = vpow.pop %v4397
        %v4399 = vmul.f32 %v4303, 1.442695
        %v4400 = vpow.pop %v4399
        %v4401 = vmul.f32 %v4304, 1.442695
        %v4402 = vpow.pop %v4401
        %v4403 = vmul.f32 %v4305, 1.442695
        %v4404 = vpow.pop %v4403
        %v4405 = vmul.f32 %v4306, 1.442695
        %v4406 = vpow.pop %v4405
        %v4407 = vmul.f32 %v4307, 1.442695
        %v4408 = vpow.pop %v4407
        %v4409 = vmul.f32 %v4308, 1.442695
        %v4410 = vpow.pop %v4409
        %v4411 = vmul.f32 %v4309, 1.442695
        %v4412 = vpow.pop %v4411
        %v4413 = vmul.f32 %v4310, 1.442695
        %v4414 = vpow.pop %v4413
        %v4415 = vmul.f32 %v4311, 1.442695
        %v4416 = vpow.pop %v4415
        %v4417 = vmul.f32 %v4312, 1.442695
        %v4418 = vpow.pop %v4417
        %v4419 = vmul.f32 %v4313, 1.442695
        %v4420 = vpow.pop %v4419
        %v4421 = vmul.f32 %v4314, 1.442695
        %v4422 = vpow.pop %v4421
        %v4423 = vmul.f32 %v4315, 1.442695
        %v4424 = vpow.pop %v4423
        %v4425 = vmul.f32 %v4316, 1.442695
        %v4426 = vpow.pop %v4425
        %v4427 = vmul.f32 %v4317, 1.442695
        %v4428 = vpow.pop %v4427
        %v4429 = vmul.f32 %v4318, 1.442695
        %v4430 = vpow.pop %v4429
        %v4431 = vmul.f32 %v4319, 1.442695
        %v4432 = vpow.pop %v4431
        %v4433 = vmul.f32 %v4320, 1.442695
        %v4434 = vpow.pop %v4433
        %v4435 = vmul.f32 %v4321, 1.442695
        %v4436 = vpow.pop %v4435
        %v4437 = vmul.f32 %v4322, 1.442695
        %v4438 = vpow.pop %v4437
        %v4439 = vmul.f32 %v4323, 1.442695
        %v4440 = vpow.pop %v4439
        %v4441 = vmul.f32 %v4324, 1.442695
        %v4442 = vpow.pop %v4441
        %v4443 = vmul.f32 %v4325, 1.442695
        %v4444 = vpow.pop %v4443
        %v4445 = vmul.f32 %v4326, 1.442695
        %v4446 = vpow.pop %v4445
        %v4447 = vmul.f32 %v4327, 1.442695
        %v4448 = vpow.pop %v4447
        %v4449 = vmul.f32 %v4328, 1.442695
        %v4450 = vpow.pop %v4449
        %v4451 = vmul.f32 %v4329, 1.442695
        %v4452 = vpow.pop %v4451
        %v4453 = vmul.f32 %v4330, 1.442695
        %v4454 = vpow.pop %v4453
        %v4455 = vmul.f32 %v4331, 1.442695
        %v4456 = vpow.pop %v4455
        %v4457 = vmul.f32 %v4332, 1.442695
        %v4458 = vpow.pop %v4457
        %v4459 = vmul.f32 %v4333, 1.442695
        %v4460 = vpow.pop %v4459
        %v4461 = vmul.f32 %v4334, 1.442695
        %v4462 = vpow.pop %v4461
        %v4463 = vadd.f32 %v4336, %v4338
        %4464 = vadd.xlane.f32.xlu0 %v4463
        %v4465 = vpop.xlane.xlu0 %4464
        %v4466 = vadd.f32 %v4340, %v4342
        %4467 = vadd.xlane.f32.xlu0 %v4466
        %v4468 = vpop.xlane.xlu0 %4467
        %v4469 = vadd.f32 %v4344, %v4346
        %4470 = vadd.xlane.f32.xlu0 %v4469
        %v4471 = vpop.xlane.xlu0 %4470
        %v4472 = vadd.f32 %v4348, %v4350
        %4473 = vadd.xlane.f32.xlu0 %v4472
        %v4474 = vpop.xlane.xlu0 %4473
        %v4475 = vadd.f32 %v4352, %v4354
        %4476 = vadd.xlane.f32.xlu0 %v4475
        %v4477 = vpop.xlane.xlu0 %4476
        %v4478 = vadd.f32 %v4356, %v4358
        %4479 = vadd.xlane.f32.xlu0 %v4478
        %v4480 = vpop.xlane.xlu0 %4479
        %v4481 = vadd.f32 %v4360, %v4362
        %4482 = vadd.xlane.f32.xlu0 %v4481
        %v4483 = vpop.xlane.xlu0 %4482
        %v4484 = vadd.f32 %v4364, %v4366
        %4485 = vadd.xlane.f32.xlu0 %v4484
        %v4486 = vpop.xlane.xlu0 %4485
        %v4487 = vadd.f32 %v4368, %v4370
        %4488 = vadd.xlane.f32.xlu0 %v4487
        %v4489 = vpop.xlane.xlu0 %4488
        %v4490 = vadd.f32 %v4372, %v4374
        %4491 = vadd.xlane.f32.xlu0 %v4490
        %v4492 = vpop.xlane.xlu0 %4491
        %v4493 = vadd.f32 %v4376, %v4378
        %4494 = vadd.xlane.f32.xlu0 %v4493
        %v4495 = vpop.xlane.xlu0 %4494
        %v4496 = vadd.f32 %v4380, %v4382
        %4497 = vadd.xlane.f32.xlu0 %v4496
        %v4498 = vpop.xlane.xlu0 %4497
        %v4499 = vadd.f32 %v4384, %v4386
        %4500 = vadd.xlane.f32.xlu0 %v4499
        %v4501 = vpop.xlane.xlu0 %4500
        %v4502 = vadd.f32 %v4388, %v4390
        %4503 = vadd.xlane.f32.xlu0 %v4502
        %v4504 = vpop.xlane.xlu0 %4503
        %v4505 = vadd.f32 %v4392, %v4394
        %4506 = vadd.xlane.f32.xlu0 %v4505
        %v4507 = vpop.xlane.xlu0 %4506
        %v4508 = vadd.f32 %v4396, %v4398
        %4509 = vadd.xlane.f32.xlu0 %v4508
        %v4510 = vpop.xlane.xlu0 %4509
        %v4511 = vadd.f32 %v4400, %v4402
        %4512 = vadd.xlane.f32.xlu0 %v4511
        %v4513 = vpop.xlane.xlu0 %4512
        %v4514 = vadd.f32 %v4404, %v4406
        %4515 = vadd.xlane.f32.xlu0 %v4514
        %v4516 = vpop.xlane.xlu0 %4515
        %v4517 = vadd.f32 %v4408, %v4410
        %4518 = vadd.xlane.f32.xlu0 %v4517
        %v4519 = vpop.xlane.xlu0 %4518
        %v4520 = vadd.f32 %v4412, %v4414
        %4521 = vadd.xlane.f32.xlu0 %v4520
        %v4522 = vpop.xlane.xlu0 %4521
        %v4523 = vadd.f32 %v4416, %v4418
        %4524 = vadd.xlane.f32.xlu0 %v4523
        %v4525 = vpop.xlane.xlu0 %4524
        %v4526 = vadd.f32 %v4420, %v4422
        %4527 = vadd.xlane.f32.xlu0 %v4526
        %v4528 = vpop.xlane.xlu0 %4527
        %v4529 = vadd.f32 %v4424, %v4426
        %4530 = vadd.xlane.f32.xlu0 %v4529
        %v4531 = vpop.xlane.xlu0 %4530
        %v4532 = vadd.f32 %v4428, %v4430
        %4533 = vadd.xlane.f32.xlu0 %v4532
        %v4534 = vpop.xlane.xlu0 %4533
        %v4535 = vadd.f32 %v4432, %v4434
        %4536 = vadd.xlane.f32.xlu0 %v4535
        %v4537 = vpop.xlane.xlu0 %4536
        %v4538 = vadd.f32 %v4436, %v4438
        %4539 = vadd.xlane.f32.xlu0 %v4538
        %v4540 = vpop.xlane.xlu0 %4539
        %v4541 = vadd.f32 %v4440, %v4442
        %4542 = vadd.xlane.f32.xlu0 %v4541
        %v4543 = vpop.xlane.xlu0 %4542
        %v4544 = vadd.f32 %v4444, %v4446
        %4545 = vadd.xlane.f32.xlu0 %v4544
        %v4546 = vpop.xlane.xlu0 %4545
        %v4547 = vadd.f32 %v4448, %v4450
        %4548 = vadd.xlane.f32.xlu0 %v4547
        %v4549 = vpop.xlane.xlu0 %4548
        %v4550 = vadd.f32 %v4452, %v4454
        %4551 = vadd.xlane.f32.xlu0 %v4550
        %v4552 = vpop.xlane.xlu0 %4551
        %v4553 = vadd.f32 %v4456, %v4458
        %4554 = vadd.xlane.f32.xlu0 %v4553
        %v4555 = vpop.xlane.xlu0 %4554
        %v4556 = vadd.f32 %v4460, %v4462
        %4557 = vadd.xlane.f32.xlu0 %v4556
        %v4558 = vpop.xlane.xlu0 %4557
        %v4559 = vrcp.pop %v4465
        %v4560 = vrcp.pop %v4468
        %v4561 = vrcp.pop %v4471
        %v4562 = vrcp.pop %v4474
        %v4563 = vrcp.pop %v4477
        %v4564 = vrcp.pop %v4480
        %v4565 = vrcp.pop %v4483
        %v4566 = vrcp.pop %v4486
        %v4567 = vrcp.pop %v4489
        %v4568 = vrcp.pop %v4492
        %v4569 = vrcp.pop %v4495
        %v4570 = vrcp.pop %v4498
        %v4571 = vrcp.pop %v4501
        %v4572 = vrcp.pop %v4504
        %v4573 = vrcp.pop %v4507
        %v4574 = vrcp.pop %v4510
        %v4575 = vrcp.pop %v4513
        %v4576 = vrcp.pop %v4516
        %v4577 = vrcp.pop %v4519
        %v4578 = vrcp.pop %v4522
        %v4579 = vrcp.pop %v4525
        %v4580 = vrcp.pop %v4528
        %v4581 = vrcp.pop %v4531
        %v4582 = vrcp.pop %v4534
        %v4583 = vrcp.pop %v4537
        %v4584 = vrcp.pop %v4540
        %v4585 = vrcp.pop %v4543
        %v4586 = vrcp.pop %v4546
        %v4587 = vrcp.pop %v4549
        %v4588 = vrcp.pop %v4552
        %v4589 = vrcp.pop %v4555
        %v4590 = vrcp.pop %v4558
        %v4591 = vmul.f32 %v4336, %v4559
        %v4592 = vmul.f32 %v4338, %v4559
        %v4593 = vmul.f32 %v4340, %v4560
        %v4594 = vmul.f32 %v4342, %v4560
        %v4595 = vmul.f32 %v4344, %v4561
        %v4596 = vmul.f32 %v4346, %v4561
        %v4597 = vmul.f32 %v4348, %v4562
        %v4598 = vmul.f32 %v4350, %v4562
        %v4599 = vmul.f32 %v4352, %v4563
        %v4600 = vmul.f32 %v4354, %v4563
        %v4601 = vmul.f32 %v4356, %v4564
        %v4602 = vmul.f32 %v4358, %v4564
        %v4603 = vmul.f32 %v4360, %v4565
        %v4604 = vmul.f32 %v4362, %v4565
        %v4605 = vmul.f32 %v4364, %v4566
        %v4606 = vmul.f32 %v4366, %v4566
        %v4607 = vmul.f32 %v4368, %v4567
        %v4608 = vmul.f32 %v4370, %v4567
        %v4609 = vmul.f32 %v4372, %v4568
        %v4610 = vmul.f32 %v4374, %v4568
        %v4611 = vmul.f32 %v4376, %v4569
        %v4612 = vmul.f32 %v4378, %v4569
        %v4613 = vmul.f32 %v4380, %v4570
        %v4614 = vmul.f32 %v4382, %v4570
        %v4615 = vmul.f32 %v4384, %v4571
        %v4616 = vmul.f32 %v4386, %v4571
        %v4617 = vmul.f32 %v4388, %v4572
        %v4618 = vmul.f32 %v4390, %v4572
        %v4619 = vmul.f32 %v4392, %v4573
        %v4620 = vmul.f32 %v4394, %v4573
        %v4621 = vmul.f32 %v4396, %v4574
        %v4622 = vmul.f32 %v4398, %v4574
        %v4623 = vmul.f32 %v4400, %v4575
        %v4624 = vmul.f32 %v4402, %v4575
        %v4625 = vmul.f32 %v4404, %v4576
        %v4626 = vmul.f32 %v4406, %v4576
        %v4627 = vmul.f32 %v4408, %v4577
        %v4628 = vmul.f32 %v4410, %v4577
        %v4629 = vmul.f32 %v4412, %v4578
        %v4630 = vmul.f32 %v4414, %v4578
        %v4631 = vmul.f32 %v4416, %v4579
        %v4632 = vmul.f32 %v4418, %v4579
        %v4633 = vmul.f32 %v4420, %v4580
        %v4634 = vmul.f32 %v4422, %v4580
        %v4635 = vmul.f32 %v4424, %v4581
        %v4636 = vmul.f32 %v4426, %v4581
        %v4637 = vmul.f32 %v4428, %v4582
        %v4638 = vmul.f32 %v4430, %v4582
        %v4639 = vmul.f32 %v4432, %v4583
        %v4640 = vmul.f32 %v4434, %v4583
        %v4641 = vmul.f32 %v4436, %v4584
        %v4642 = vmul.f32 %v4438, %v4584
        %v4643 = vmul.f32 %v4440, %v4585
        %v4644 = vmul.f32 %v4442, %v4585
        %v4645 = vmul.f32 %v4444, %v4586
        %v4646 = vmul.f32 %v4446, %v4586
        %v4647 = vmul.f32 %v4448, %v4587
        %v4648 = vmul.f32 %v4450, %v4587
        %v4649 = vmul.f32 %v4452, %v4588
        %v4650 = vmul.f32 %v4454, %v4588
        %v4651 = vmul.f32 %v4456, %v4589
        %v4652 = vmul.f32 %v4458, %v4589
        %v4653 = vmul.f32 %v4460, %v4590
        %v4654 = vmul.f32 %v4462, %v4590
        %v4655 = vpack.c.bf16 %v4593, %v4591
        %v4656 = vpack.c.bf16 %v4594, %v4592
        %v4657 = vpack.c.bf16 %v4597, %v4595
        %v4658 = vpack.c.bf16 %v4598, %v4596
        %v4659 = vpack.c.bf16 %v4601, %v4599
        %v4660 = vpack.c.bf16 %v4602, %v4600
        %v4661 = vpack.c.bf16 %v4605, %v4603
        %v4662 = vpack.c.bf16 %v4606, %v4604
        %v4663 = vpack.c.bf16 %v4609, %v4607
        %v4664 = vpack.c.bf16 %v4610, %v4608
        %v4665 = vpack.c.bf16 %v4613, %v4611
        %v4666 = vpack.c.bf16 %v4614, %v4612
        %v4667 = vpack.c.bf16 %v4617, %v4615
        %v4668 = vpack.c.bf16 %v4618, %v4616
        %v4669 = vpack.c.bf16 %v4621, %v4619
        %v4670 = vpack.c.bf16 %v4622, %v4620
        %v4671 = vpack.c.bf16 %v4625, %v4623
        %v4672 = vpack.c.bf16 %v4626, %v4624
        %v4673 = vpack.c.bf16 %v4629, %v4627
        %v4674 = vpack.c.bf16 %v4630, %v4628
        %v4675 = vpack.c.bf16 %v4633, %v4631
        %v4676 = vpack.c.bf16 %v4634, %v4632
        %v4677 = vpack.c.bf16 %v4637, %v4635
        %v4678 = vpack.c.bf16 %v4638, %v4636
        %v4679 = vpack.c.bf16 %v4641, %v4639
        %v4680 = vpack.c.bf16 %v4642, %v4640
        %v4681 = vpack.c.bf16 %v4645, %v4643
        %v4682 = vpack.c.bf16 %v4646, %v4644
        %v4683 = vpack.c.bf16 %v4649, %v4647
        %v4684 = vpack.c.bf16 %v4650, %v4648
        %v4685 = vpack.c.bf16 %v4653, %v4651
        %v4686 = vpack.c.bf16 %v4654, %v4652
        %4687 = vmatprep.subr.bf16.mxu0 %v4670
        %4688 = vmatpush1.bf16.xpose.msra.mxu0 %v4669
        %4689 = vmatprep.subr.bf16.mxu0 %v4668
        %4690 = vmatpush1.bf16.xpose.msra.mxu0 %v4667
        %4691 = vmatprep.subr.bf16.mxu0 %v4666
        %4692 = vmatpush1.bf16.xpose.msra.mxu0 %v4665
        %4693 = vmatprep.subr.bf16.mxu0 %v4664
        %4694 = vmatpush1.bf16.xpose.msra.mxu0 %v4663
        %4695 = vmatprep.subr.bf16.mxu0 %v4662
        %4696 = vmatpush1.bf16.xpose.msra.mxu0 %v4661
        %4697 = vmatprep.subr.bf16.mxu0 %v4660
        %4698 = vmatpush1.bf16.xpose.msra.mxu0 %v4659
        %4699 = vmatprep.subr.bf16.mxu0 %v4658
        %4700 = vmatpush1.bf16.xpose.msra.mxu0 %v4657
        %4701 = vmatprep.subr.bf16.mxu0 %v4656
        %4702 = vmatpush1.bf16.xpose.msra.mxu0 %v4655
        %4703 = vmatprep.subr.bf16.mxu0 %v4686
        %4704 = vmatpush2.bf16.xpose.msra.mxu0 %v4685
        %4705 = vmatprep.subr.bf16.mxu0 %v4684
        %4706 = vmatpush2.bf16.xpose.msra.mxu0 %v4683
        %4707 = vmatprep.subr.bf16.mxu0 %v4682
        %4708 = vmatpush2.bf16.xpose.msra.mxu0 %v4681
        %4709 = vmatprep.subr.bf16.mxu0 %v4680
        %4710 = vmatpush2.bf16.xpose.msra.mxu0 %v4679
        %4711 = vmatprep.subr.bf16.mxu0 %v4678
        %4712 = vmatpush2.bf16.xpose.msra.mxu0 %v4677
        %4713 = vmatprep.subr.bf16.mxu0 %v4676
        %4714 = vmatpush2.bf16.xpose.msra.mxu0 %v4675
        %4715 = vmatprep.subr.bf16.mxu0 %v4674
        %4716 = vmatpush2.bf16.xpose.msra.mxu0 %v4673
        %4717 = vmatprep.subr.bf16.mxu0 %v4672
        %4718 = vmatpush2.bf16.xpose.msra.mxu0 %v4671
        %4719 = vmatprep.mubr.bf16.mxu0 %v3802
        %4720 = vmatmul.mubr.bf16.gmra.mxu0 %v3801
        %v4721 = vpop.f32.mrf.mxu0
        %v4722 = vadd.f32 0.0, %v4721
        %v4723 = vpop.f32.mrf.mxu0
        %v4724 = vadd.f32 0.0, %v4723
        %v4725 = vpop.f32.mrf.mxu0
        %v4726 = vadd.f32 0.0, %v4725
        %v4727 = vpop.f32.mrf.mxu0
        %v4728 = vadd.f32 0.0, %v4727
        %4729 = vmatprep.mubr.bf16.mxu0 %v3804
        %4730 = vmatmul.mubr.bf16.gmra.mxu0 %v3803
        %v4731 = vpop.f32.mrf.mxu0
        %v4732 = vadd.f32 0.0, %v4731
        %v4733 = vpop.f32.mrf.mxu0
        %v4734 = vadd.f32 0.0, %v4733
        %v4735 = vpop.f32.mrf.mxu0
        %v4736 = vadd.f32 0.0, %v4735
        %v4737 = vpop.f32.mrf.mxu0
        %v4738 = vadd.f32 0.0, %v4737
        %4739 = vdwg.mxu0
        %v4740 = vadd.f32 %v4722, 3.0
        %v4741 = vadd.f32 %v4724, 3.0
        %v4742 = vadd.f32 %v4726, 3.0
        %v4743 = vadd.f32 %v4728, 3.0
        %v4744 = vadd.f32 %v4732, 3.0
        %v4745 = vadd.f32 %v4734, 3.0
        %v4746 = vadd.f32 %v4736, 3.0
        %v4747 = vadd.f32 %v4738, 3.0
        %v4748 = vmax.f32 %v4740, 0.0
        %v4749 = vmax.f32 %v4741, 0.0
        %v4750 = vmax.f32 %v4742, 0.0
        %v4751 = vmax.f32 %v4743, 0.0
        %v4752 = vmax.f32 %v4744, 0.0
        %v4753 = vmax.f32 %v4745, 0.0
        %v4754 = vmax.f32 %v4746, 0.0
        %v4755 = vmax.f32 %v4747, 0.0
        %v4756 = vmin.f32 %v4748, 6.0
        %v4757 = vmin.f32 %v4749, 6.0
        %v4758 = vmin.f32 %v4750, 6.0
        %v4759 = vmin.f32 %v4751, 6.0
        %v4760 = vmin.f32 %v4752, 6.0
        %v4761 = vmin.f32 %v4753, 6.0
        %v4762 = vmin.f32 %v4754, 6.0
        %v4763 = vmin.f32 %v4755, 6.0
        %v4764 = vmul.f32 %v4722, %v4756
        %v4765 = vmul.f32 %v4724, %v4757
        %v4766 = vmul.f32 %v4726, %v4758
        %v4767 = vmul.f32 %v4728, %v4759
        %v4768 = vmul.f32 %v4732, %v4760
        %v4769 = vmul.f32 %v4734, %v4761
        %v4770 = vmul.f32 %v4736, %v4762
        %v4771 = vmul.f32 %v4738, %v4763
        %v4772 = vmul.f32 %v4764, 0.16666667
        %v4773 = vmul.f32 %v4765, 0.16666667
        %v4774 = vmul.f32 %v4766, 0.16666667
        %v4775 = vmul.f32 %v4767, 0.16666667
        %v4776 = vmul.f32 %v4768, 0.16666667
        %v4777 = vmul.f32 %v4769, 0.16666667
        %v4778 = vmul.f32 %v4770, 0.16666667
        %v4779 = vmul.f32 %v4771, 0.16666667
        %v4780 = vpack.c.bf16 %v4774, %v4772
        %v4781 = vpack.c.bf16 %v4775, %v4773
        %v4782 = vpack.c.bf16 %v4778, %v4776
        %v4783 = vpack.c.bf16 %v4779, %v4777
        %v4784 = vld [vmem:[%s4] sm:$0xf]
        %v4785 = vld [vmem:[%s4 + $0x4] sm:$0xf]
        %v4786 = vld [vmem:[%s4 + $0x8] sm:$0xf]
        %v4787 = vld [vmem:[%s4 + $0xc] sm:$0xf]
        %v4788 = vld [vmem:[%s5] sm:$0xff]
        %v4789 = vld [vmem:[%s5 + $0x8] sm:$0xff]
        %v4790 = vld [vmem:[%s5 + $0x10] sm:$0xff]
        %v4791 = vld [vmem:[%s5 + $0x18] sm:$0xff]
        %4793 = vset.pattern.permute.xlu0 0
        %4794 = vperm.xlu0 %4793, %v4788
        %v4795 = vpop.permute.xlu0 %4794
        %4798 = vset.pattern.permute.xlu0 0
        %4799 = vperm.xlu0 %4798, %v4789
        %v4800 = vpop.permute.xlu0 %4799
        %4803 = vset.pattern.permute.xlu0 0
        %4804 = vperm.xlu0 %4803, %v4790
        %v4805 = vpop.permute.xlu0 %4804
        %4808 = vset.pattern.permute.xlu0 0
        %4809 = vperm.xlu0 %4808, %v4791
        %v4810 = vpop.permute.xlu0 %4809
        %v4816 = vunpack.c.l.b16 %v4784
        %v4817 = vunpack.c.l.b16 %v4785
        %v4818 = vunpack.c.l.b16 %v4786
        %v4819 = vunpack.c.l.b16 %v4787
        %v4820 = vpack.c.b16 %v4817, %v4816
        %v4821 = vpack.c.b16 %v4819, %v4818
        %4824 = vmatprep.subr.bf16.mxu0 %v4783
        %4825 = vmatpush1.bf16.msra.mxu0 %v4782
        %4826 = vmatprep.subr.bf16.mxu0 %v4781
        %4827 = vmatpush1.bf16.msra.mxu0 %v4780
        %4828 = vmatprep.subr.bf16.mxu0 %v3796
        %4829 = vmatpush1.bf16.msra.mxu0 %v3795
        %4830 = vmatprep.subr.bf16.mxu0 %v3794
        %4831 = vmatpush1.bf16.msra.mxu0 %v3793
        %4832 = vmatprep.subr.bf16.mxu0 %v2809
        %4833 = vmatpush1.bf16.msra.mxu0 %v2808
        %4834 = vmatprep.subr.bf16.mxu0 %v2807
        %4835 = vmatpush1.bf16.msra.mxu0 %v2806
        %4836 = vmatprep.subr.bf16.mxu0 %v1822
        %4837 = vmatpush1.bf16.msra.mxu0 %v1821
        %4838 = vmatprep.subr.bf16.mxu0 %v1820
        %4839 = vmatpush1.bf16.msra.mxu0 %v1819
        %4840 = vmatprep.subr.bf16.mxu0 0
        %4841 = vmatpush2.bf16.msra.mxu0 0
        %4842 = vmatprep.subr.bf16.mxu0 0
        %4843 = vmatpush2.bf16.msra.mxu0 0
        %4844 = vmatprep.subr.bf16.mxu0 0
        %4845 = vmatpush2.bf16.msra.mxu0 0
        %4846 = vmatprep.subr.bf16.mxu0 0
        %4847 = vmatpush2.bf16.msra.mxu0 0
        %4848 = vmatprep.subr.bf16.mxu0 0
        %4849 = vmatpush2.bf16.msra.mxu0 0
        %4850 = vmatprep.subr.bf16.mxu0 0
        %4851 = vmatpush2.bf16.msra.mxu0 0
        %4852 = vmatprep.subr.bf16.mxu0 0
        %4853 = vmatpush2.bf16.msra.mxu0 0
        %4854 = vmatprep.subr.bf16.mxu0 0
        %4855 = vmatpush2.bf16.msra.mxu0 0
        %4856 = vmatprep.mubr.bf16.mxu0 0
        %4857 = vmatmul.mubr.bf16.gmra.mxu0 %v4820
        %v4858 = vpop.f32.mrf.mxu0
        %v4859 = vadd.f32 %v4795, %v4858
        %v4860 = vpop.f32.mrf.mxu0
        %v4861 = vadd.f32 %v4795, %v4860
        %v4862 = vpop.f32.mrf.mxu0
        %v4863 = vadd.f32 %v4800, %v4862
        %v4864 = vpop.f32.mrf.mxu0
        %v4865 = vadd.f32 %v4800, %v4864
        %4866 = vmatprep.mubr.bf16.mxu0 0
        %4867 = vmatmul.mubr.bf16.gmra.mxu0 %v4821
        %v4868 = vpop.f32.mrf.mxu0
        %v4869 = vadd.f32 %v4805, %v4868
        %v4870 = vpop.f32.mrf.mxu0
        %v4871 = vadd.f32 %v4805, %v4870
        %v4872 = vpop.f32.mrf.mxu0
        %v4873 = vadd.f32 %v4810, %v4872
        %v4874 = vpop.f32.mrf.mxu0
        %v4875 = vadd.f32 %v4810, %v4874
        %4876 = vdwg.mxu0
        %4877 = vst [vmem:[%s259] sm:$0xff] %v4859
        %4878 = vst [vmem:[%s259 + $0x8] sm:$0xff] %v4861
        %4879 = vst [vmem:[%s259 + $0x10] sm:$0xff] %v4863
        %4880 = vst [vmem:[%s259 + $0x18] sm:$0xff] %v4865
        %4881 = vst [vmem:[%s259 + $0x20] sm:$0xff] %v4869
        %4882 = vst [vmem:[%s259 + $0x28] sm:$0xff] %v4871
        %4883 = vst [vmem:[%s259 + $0x30] sm:$0xff] %v4873
        %4884 = vst [vmem:[%s259 + $0x38] sm:$0xff] %v4875
        %s4885 = sand.u32 %s160, 1
        %s4886 = scalar_lea.sflag [#allocation4], %s4885
        %s4887 = sand.u32 %s160, 1
        %s4888 = smul.addr %s4887, 64
        %s4889 = scalar_lea.vmem [#allocation5], %s4888
        // Predicated region
        $region49: #{tpu_custom_call.1} parent=43 // pred_check
          %p4890 = pneg %p170
        $region50: #{tpu_custom_call.1} parent=43 // pred_check_branch
          %4892 = sbr.rel (%p4890) target = $region52
        $region51: #{tpu_custom_call.1} parent=43 // pred_region
          %s4894 = ssub.s32 1024, 1024
          %4895 = vsyncadd %s4886, %s4894
          %s4896 = smul.addr %s21, 8
          %s4897 = smul.addr %s4896, 128
          %s4898 = scalar_lea.hbm %s6, %s4897
          %s4899 = sshll.u32 %s4889, 4
          %s4900 = int_to_ptr.vmem [resolvable:$true] %s4899
          %4905 = dma.vmem_to_hbm [thread:$0]  %s4900, 1024, %s4898, %s4886, 256, 256, 16
        $region52: #{tpu_custom_call.1} parent=43 // pred_fallthru
          _
      $region44: #{tpu_custom_call.1} parent=5 // pred_fallthru
        _
      %p4906 = scmp.le.s32.totalorder 2, %s16
      // Predicated region
      $region53: #{tpu_custom_call.1} parent=5 // pred_check
        %p4907 = pneg %p4906
      $region54: #{tpu_custom_call.1} parent=5 // pred_check_branch
        %4909 = sbr.rel (%p4907) target = $region56
      $region55: #{tpu_custom_call.1} parent=5 // pred_region
        %s4910 = ssub.s32 %s16, 2
        // Predicated region
        $region57: #{tpu_custom_call.1} parent=55 // pred_check
          %p4911 = pneg %p176
        $region58: #{tpu_custom_call.1} parent=55 // pred_check_branch
          %4913 = sbr.rel (%p4911) target = $region60
        $region59: #{tpu_custom_call.1} parent=55 // pred_region
          %s4914 = sand.u32 %s161, 1
          %s4915 = scalar_lea.sflag [#allocation4], %s4914
          %s4916 = sand.u32 %s161, 1
          %s4917 = smul.addr %s4916, 64
          %s4918 = scalar_lea.vmem [#allocation5], %s4917
          %4919 = dma.done %s4915, 1024
        $region60: #{tpu_custom_call.1} parent=55 // pred_fallthru
          _
      $region56: #{tpu_custom_call.1} parent=5 // pred_fallthru
        _
    $region6: #{tpu_custom_call.1} parent=1 // loop_footer
      %s20 = sadd.s32 1, %s16
    $region7: #{tpu_custom_call.1} parent=1 // loop_footer_branch
      %15 = sbr.rel target = $region3
    $region8: #{tpu_custom_call.1} parent=1 // loop_exit
      _
    %4920 = vsyncpa [#allocation3], 1
    %s4921 = scalar_lea.sflag [#allocation3], 1
    %4922 = vsyncpa %s4921, 1
    %4923 = vsyncpa [#allocation4], 1
    %s4924 = scalar_lea.sflag [#allocation4], 1
    %4925 = vsyncpa %s4924, 1

</llo_original>
